<compile_context>
chip_gen: v7x
topology: tpu7x:2x2x1
jax: 0.10.0
libtpu: 0.0.40
codegen_flags: <defaults>
</compile_context>

<pallas_src>
import functools

import jax
import jax.numpy as jnp
from jax import lax
from jax.experimental import pallas as pl
from jax.experimental.pallas import tpu as pltpu

NEG_SLOPE = 0.2


# --------------------------------------------------------------------------- #
# Kernel 1: fused fc projection + per-node attention logits (all heads fused)  #
# --------------------------------------------------------------------------- #
def _proj_kernel(x_ref, w_ref, al_ref, ar_ref,          # inputs
                 fp_ref, el_ref, er_ref):                # outputs
    # bf16 MXU operands, f32 accumulation.
    fp = jnp.dot(x_ref[...], w_ref[...],
                 preferred_element_type=jnp.float32)                      # (Tp, HD) f32
    # el[h, u] = <fp[u, hD:(h+1)D], attn_l[h]>   (row-per-head layout)
    el_ref[...] = lax.dot_general(al_ref[...], fp,
                                  (((1,), (1,)), ((), ())),
                                  preferred_element_type=jnp.float32)     # (H, Tp)
    # er[u, h] = <fp[u, hD:(h+1)D], attn_r[h]>   (column-per-head layout)
    er_ref[...] = jnp.dot(fp, ar_ref[...],
                          preferred_element_type=jnp.float32)             # (Tp, H)
    fp_ref[...] = fp.astype(jnp.bfloat16)                                 # resident ft


# --------------------------------------------------------------------------- #
# Kernel 2: attention + edge_softmax + aggregation, one strip of dst rows      #
# --------------------------------------------------------------------------- #
def _gat_attn_kernel(fp_ref, el_ref, er_ref, adj_ref,    # inputs
                     out_ref, alpha_ref):                # outputs
    H = el_ref.shape[0]
    HD = fp_ref.shape[1]
    D = HD // H

    # Boolean edge mask for this strip (kept compact; no full-strip f32 adj copy).
    edge = adj_ref[...] > 0                                               # (T, N)
    el_all = el_ref[...]                                                  # (H, N)

    parts = []
    for h in range(H):                                                    # static unroll
        el_row = el_all[h:h + 1, :]                                       # (1, N) src
        er_col = er_ref[:, h:h + 1]                                       # (T, 1) dst

        # apply_edges(u_add_v) + leaky_relu (single VALU max instead of cmp+select)
        e = er_col + el_row                                               # (T, N)
        e = jnp.maximum(e, NEG_SLOPE * e)

        # edge_softmax over incoming edges (src axis).
        # Mask BEFORE the max so a huge non-edge logit cannot underflow the real edges;
        # the post-exp select keeps zero-in-degree rows at alpha == 0 (not 1/N).
        e = jnp.where(edge, e, jnp.float32(-1e30))
        m = jnp.max(e, axis=-1, keepdims=True)
        p = jnp.where(edge, jnp.exp(e - m), jnp.float32(0.0))
        s = jnp.sum(p, axis=-1, keepdims=True)
        inv = pl.reciprocal(jnp.maximum(s, jnp.float32(1e-30)), approx=True)
        alpha = (p * inv).astype(jnp.bfloat16)                            # (T, N) bf16
        alpha_ref[h, :, :] = alpha

        # update_all(u_mul_e('ft','a'), sum): rst[v] = sum_u alpha[v, u] * ft[u]
        ft_h = fp_ref[:, h * D:(h + 1) * D]                               # (N, D) bf16
        parts.append(jnp.dot(alpha, ft_h,
                             preferred_element_type=jnp.float32))         # (T, D) f32

    # One unmasked, lane-dense (T, HD) store instead of H narrow masked stores.
    out_ref[...] = jnp.concatenate(parts, axis=-1).astype(out_ref.dtype)


# --------------------------------------------------------------------------- #
# Planning helpers (generation / shape dependent tiling)                       #
# --------------------------------------------------------------------------- #
def _vmem_capacity_bytes():
    try:
        return int(pltpu.get_tpu_info().vmem_capacity_bytes)
    except Exception:
        return 64 * 1024 * 1024      # conservative fallback (v7x per-TensorCore VMEM)


def _row_tile(N, cap=512):
    for t in (512, 256, 128, 64, 32, 16, 8):
        if t <= cap and N % t == 0:
            return t
    return N


def _plan_tiles(N, H, HD, tile_rows=None):
    """Pick the dst-row strip T and a vmem_limit from shapes + VMEM capacity."""
    cap = _vmem_capacity_bytes()
    budget = int(cap * 0.75)
    # Resident (double-buffered) inputs: fp bf16 + el f32.
    resident = 2 * (N * HD * 2 + H * N * 4)

    def streamed(t):
        # adj bf16 + er f32 strips in, rst f32 + alpha bf16 strips out (x2 buffers).
        return 2 * (t * N * 2 + t * H * 4 + t * HD * 4 + H * t * N * 2)

    candidates = [t for t in (512, 256, 128, 64, 32, 16, 8) if N % t == 0] or [N]
    if tile_rows is not None:
        T = min(tile_rows, N)
        assert N % T == 0, "tile_rows must divide N"
    else:
        T = candidates[-1]
        for t in candidates:                       # largest first
            if resident + streamed(t) <= budget:
                T = t
                break
    need = resident + streamed(T)
    vmem_limit = max(32 * 1024 * 1024,
                     min(int(need * 2) + (8 << 20), int(cap * 0.85)))
    return T, vmem_limit


# --------------------------------------------------------------------------- #
# Forward wrapper                                                              #
# --------------------------------------------------------------------------- #
@functools.partial(jax.jit, static_argnames=("dst_tile", "vmem_limit"))
def _gat_conv_impl(feat, adj, W, attn_l, attn_r, *, dst_tile, vmem_limit):
    H, D_in, D_out = W.shape
    N = feat.shape[0]
    HD = H * D_out
    T = dst_tile
    n_tiles = N // T

    # Fused fc weight: columns [h*D_out, (h+1)*D_out) belong to head h.
    W2d = jnp.transpose(W, (1, 0, 2)).reshape(D_in, HD)
    al2d = attn_l.reshape(H, D_out).astype(jnp.float32)
    ar2d = attn_r.reshape(H, D_out).astype(jnp.float32)
    eye = jnp.eye(H, dtype=jnp.float32)
    # AL2[h, g*D+d] = attn_l[h, d] if g == h else 0    ->  el = AL2 @ fp^T   (H, N)
    AL2 = (eye[:, :, None] * al2d[:, None, :]).reshape(H, HD)
    # ARb[g*D+d, h] = attn_r[h, d] if g == h else 0    ->  er = fp @ ARb     (N, H)
    ARb = (eye[:, None, :] * jnp.transpose(ar2d)[None, :, :]).reshape(HD, H)

    feat_bf = feat.astype(jnp.bfloat16)      # half feat DMA + native MXU bf16 rate
    W2d_bf = W2d.astype(jnp.bfloat16)
    adj_bf = adj.astype(jnp.bfloat16)        # 0/1 mask is exact in bf16

    # ---- pass 1: projection + attention logits (hoisted prologue) -------------------
    Tp = _row_tile(N)
    fp, el, er = pl.pallas_call(
        _proj_kernel,
        out_shape=(
            jax.ShapeDtypeStruct((N, HD), jnp.bfloat16),   # ft (projected features)
            jax.ShapeDtypeStruct((H, N), jnp.float32),     # el (row-per-head)
            jax.ShapeDtypeStruct((N, H), jnp.float32),     # er (col-per-head)
        ),
        grid_spec=pltpu.PrefetchScalarGridSpec(
            num_scalar_prefetch=0,
            grid=(N // Tp,),
            in_specs=[
                pl.BlockSpec((Tp, D_in), lambda i: (i, 0)),   # feat strip (bf16)
                pl.BlockSpec((D_in, HD), lambda i: (0, 0)),   # fused fc weight (bf16)
                pl.BlockSpec((H, HD), lambda i: (0, 0)),      # attn_l (block-diag rows)
                pl.BlockSpec((HD, H), lambda i: (0, 0)),      # attn_r (block-diag cols)
            ],
            out_specs=[
                pl.BlockSpec((Tp, HD), lambda i: (i, 0)),
                pl.BlockSpec((H, Tp), lambda i: (0, i)),
                pl.BlockSpec((Tp, H), lambda i: (i, 0)),
            ],
        ),
        compiler_params=pltpu.CompilerParams(
            dimension_semantics=("parallel",)),
    )(feat_bf, W2d_bf, AL2, ARb)

    # ---- pass 2: attention + edge_softmax + aggregation over dst-row strips ---------
    out2d, alpha = pl.pallas_call(
        _gat_attn_kernel,
        out_shape=(
            jax.ShapeDtypeStruct((N, HD), jnp.float32),     # rst (lane-dense)
            jax.ShapeDtypeStruct((H, N, N), jnp.bfloat16),  # alpha (bf16 -> half HBM)
        ),
        grid_spec=pltpu.PrefetchScalarGridSpec(
            num_scalar_prefetch=0,
            grid=(n_tiles,),
            in_specs=[
                pl.BlockSpec((N, HD), lambda i: (0, 0)),    # fp resident (bf16)
                pl.BlockSpec((H, N), lambda i: (0, 0)),     # el resident
                pl.BlockSpec((T, H), lambda i: (i, 0)),     # er strip
                pl.BlockSpec((T, N), lambda i: (i, 0)),     # adjacency strip (bf16)
            ],
            out_specs=[
                pl.BlockSpec((T, HD), lambda i: (i, 0)),        # rst strip, lane-dense
                pl.BlockSpec((H, T, N), lambda i: (0, i, 0)),   # alpha strip (bf16)
            ],
        ),
        compiler_params=pltpu.CompilerParams(
            # No cross-iteration state any more -> true parallel axis (v7x megacore).
            dimension_semantics=("parallel",),
            vmem_limit_bytes=vmem_limit,
        ),
    )(fp, el, er, adj_bf)

    rst = out2d.reshape(N, H, D_out)    # pure reshape — no transpose HBM round trip
    return rst, alpha


def gat_conv_forward(feat, adj, W, attn_l, attn_r, tile_rows=None):
    """Dense GATConv forward. Returns (rst (N,H,D_out) f32, alpha (H,N,N) bf16)."""
    H, D_in, D_out = W.shape
    N = feat.shape[0]
    T, vmem_limit = _plan_tiles(N, H, H * D_out, tile_rows)
    return _gat_conv_impl(feat, adj, W, attn_l, attn_r,
                          dst_tile=T, vmem_limit=vmem_limit)


# --------------------------------------------------------------------------- #
# Pure-JAX (f32) dense GAT reference                                           #
# --------------------------------------------------------------------------- #
def _reference(feat, adj, W, attn_l, attn_r):
    H, D_in, D_out = W.shape
    f = jnp.einsum('nd,hdo->nho', feat, W)                        # (N, H, D)
    el = jnp.sum(f * attn_l.reshape(1, H, D_out), axis=-1)        # (N, H) per src
    er = jnp.sum(f * attn_r.reshape(1, H, D_out), axis=-1)        # (N, H) per dst
    e = el[None, :, :] + er[:, None, :]                           # (dst, src, H)
    e = jnp.where(e > 0, e, NEG_SLOPE * e)
    mask = adj[:, :, None] > 0
    e = jnp.where(mask, e, -1e30)
    m = jnp.max(e, axis=1, keepdims=True)
    p = jnp.exp(e - m) * adj[:, :, None]
    s = jnp.sum(p, axis=1, keepdims=True)
    alpha = p / jnp.maximum(s, 1e-30)                             # (dst, src, H)
    rst = jnp.einsum('vuh,uho->vho', alpha, f)                    # (N, H, D)
    return rst, jnp.transpose(alpha, (2, 0, 1))


if __name__ == "__main__":
    # Small deterministic problem: N nodes, D_in input feats, H heads, D_out per head.
    N, D_IN, H, D_OUT = 128, 64, 4, 32

    key = jax.random.PRNGKey(0)
    k_feat, k_w, k_al, k_ar, k_adj = jax.random.split(key, 5)

    feat = jax.random.normal(k_feat, (N, D_IN), dtype=jnp.float32)

    # Parameters (xavier_normal with gain=sqrt(2), matching reset_parameters shapes).
    gain = jnp.sqrt(2.0)
    std_fc = gain * jnp.sqrt(2.0 / (D_IN + H * D_OUT))
    W_cols = std_fc * jax.random.normal(k_w, (D_IN, H * D_OUT), dtype=jnp.float32)
    W = jnp.transpose(W_cols.reshape(D_IN, H, D_OUT), (1, 0, 2))      # (H, D_in, D_out)

    std_attn = gain * jnp.sqrt(2.0 / (H * D_OUT + D_OUT))
    attn_l = std_attn * jax.random.normal(k_al, (H, 1, D_OUT), dtype=jnp.float32)
    attn_r = std_attn * jax.random.normal(k_ar, (H, 1, D_OUT), dtype=jnp.float32)

    # Deterministic sparse-ish adjacency (dst, src) with self-loops so every dst
    # has at least one incoming edge (matches edge_softmax on a real graph).
    adj = (jax.random.uniform(k_adj, (N, N)) < 0.1).astype(jnp.float32)
    adj = jnp.maximum(adj, jnp.eye(N, dtype=jnp.float32))

    rst, alpha = gat_conv_forward(feat, adj, W, attn_l, attn_r)
    jax.block_until_ready((rst, alpha))

    rst_ref, alpha_ref = _reference(feat, adj, W, attn_l, attn_r)
    assert rst.shape == (N, H, D_OUT)
    assert alpha.shape == (H, N, N)
    # Tolerances account for bf16 projection operands, bf16 alpha storage, bf16
    # aggregation operands and the EUP approximate reciprocal (all accumulation /
    # softmax arithmetic stays f32).
    assert jnp.allclose(alpha.astype(jnp.float32), alpha_ref, atol=2e-2, rtol=2e-2)
    assert jnp.allclose(rst, rst_ref, atol=5e-2, rtol=5e-2)

    print("KERNEL_OK")
</pallas_src>

<mosaic_0001>
module attributes {stable_mosaic.version = 11 : i64} {
  func.func @_proj_kernel(%arg0: i32, %arg1: memref<128x64xbf16, #tpu.memory_space<vmem>>, %arg2: memref<64x128xbf16, #tpu.memory_space<vmem>>, %arg3: memref<4x128xf32, #tpu.memory_space<vmem>>, %arg4: memref<128x4xf32, #tpu.memory_space<vmem>>, %arg5: memref<128x128xbf16, #tpu.memory_space<vmem>>, %arg6: memref<4x128xf32, #tpu.memory_space<vmem>>, %arg7: memref<128x4xf32, #tpu.memory_space<vmem>>) attributes {dimension_semantics = [#tpu.dimension_semantics<parallel>], iteration_bounds = array<i64: 1>, scalar_prefetch = 0 : i64, scratch_operands = 0 : i64, tpu.core_type = #tpu.core_type<tc>, window_params = [{transform_indices = @transform_0, window_bounds = array<i64: 128, 64>}, {pipeline_mode = #tpu.pipeline_mode<synchronous>, transform_indices = @transform_1, window_bounds = array<i64: 64, 128>}, {pipeline_mode = #tpu.pipeline_mode<synchronous>, transform_indices = @transform_2, window_bounds = array<i64: 4, 128>}, {pipeline_mode = #tpu.pipeline_mode<synchronous>, transform_indices = @transform_3, window_bounds = array<i64: 128, 4>}, {transform_indices = @transform_4, window_bounds = array<i64: 128, 128>}, {transform_indices = @transform_5, window_bounds = array<i64: 4, 128>}, {transform_indices = @transform_6, window_bounds = array<i64: 128, 4>}]} {
    %c0 = arith.constant 0 : index
    %c0_0 = arith.constant 0 : index
    %0 = vector.load %arg1[%c0, %c0_0] : memref<128x64xbf16, #tpu.memory_space<vmem>>, vector<128x64xbf16>
    %c0_1 = arith.constant 0 : index
    %c0_2 = arith.constant 0 : index
    %1 = vector.load %arg2[%c0_1, %c0_2] : memref<64x128xbf16, #tpu.memory_space<vmem>>, vector<64x128xbf16>
    %cst = arith.constant dense<0.000000e+00> : vector<128x128xf32>
    %2 = tpu.matmul %0, %1, %cst {dimension_numbers = #tpu.dot_dimension_numbers<[1], [0], [0], [1], [0, 0, 1, 1], [], []>} : vector<128x64xbf16>, vector<64x128xbf16>, vector<128x128xf32> -> vector<128x128xf32>
    %c0_3 = arith.constant 0 : index
    %c0_4 = arith.constant 0 : index
    %3 = vector.load %arg3[%c0_3, %c0_4] : memref<4x128xf32, #tpu.memory_space<vmem>>, vector<4x128xf32>
    %cst_5 = arith.constant dense<0.000000e+00> : vector<4x128xf32>
    %4 = tpu.matmul %3, %2, %cst_5 {dimension_numbers = #tpu.dot_dimension_numbers<[1], [1], [0], [0], [0, 0, 1, 0], [], []>} : vector<4x128xf32>, vector<128x128xf32>, vector<4x128xf32> -> vector<4x128xf32>
    %c0_6 = arith.constant 0 : index
    %c0_7 = arith.constant 0 : index
    %5 = vector.load %arg6[%c0_6, %c0_7] : memref<4x128xf32, #tpu.memory_space<vmem>>, vector<4x128xf32>
    tpu.vector_store %arg6[%c0_6, %c0_7], %4 {strides = array<i32>} : memref<4x128xf32, #tpu.memory_space<vmem>>, vector<4x128xf32>,
    %c0_8 = arith.constant 0 : index
    %c0_9 = arith.constant 0 : index
    %6 = vector.load %arg4[%c0_8, %c0_9] : memref<128x4xf32, #tpu.memory_space<vmem>>, vector<128x4xf32>
    %cst_10 = arith.constant dense<0.000000e+00> : vector<128x4xf32>
    %7 = tpu.matmul %2, %6, %cst_10 {dimension_numbers = #tpu.dot_dimension_numbers<[1], [0], [0], [1], [0, 0, 1, 1], [], []>} : vector<128x128xf32>, vector<128x4xf32>, vector<128x4xf32> -> vector<128x4xf32>
    %c0_11 = arith.constant 0 : index
    %c0_12 = arith.constant 0 : index
    %8 = vector.load %arg7[%c0_11, %c0_12] : memref<128x4xf32, #tpu.memory_space<vmem>>, vector<128x4xf32>
    tpu.vector_store %arg7[%c0_11, %c0_12], %7 {strides = array<i32>} : memref<128x4xf32, #tpu.memory_space<vmem>>, vector<128x4xf32>,
    %9 = arith.truncf %2 : vector<128x128xf32> to vector<128x128xbf16>
    %c0_13 = arith.constant 0 : index
    %c0_14 = arith.constant 0 : index
    %10 = vector.load %arg5[%c0_13, %c0_14] : memref<128x128xbf16, #tpu.memory_space<vmem>>, vector<128x128xbf16>
    tpu.vector_store %arg5[%c0_13, %c0_14], %9 {strides = array<i32>} : memref<128x128xbf16, #tpu.memory_space<vmem>>, vector<128x128xbf16>,
    return
  }
  func.func @transform_0(%arg0: i32) -> (i32, i32) {
    %c0_i32 = arith.constant 0 : i32
    %c0_i32_0 = arith.constant 0 : i32
    return %arg0, %c0_i32 : i32, i32
  }
  func.func @transform_1(%arg0: i32) -> (i32, i32) {
    %c0_i32 = arith.constant 0 : i32
    %c0_i32_0 = arith.constant 0 : i32
    %c0_i32_1 = arith.constant 0 : i32
    return %c0_i32, %c0_i32_0 : i32, i32
  }
  func.func @transform_2(%arg0: i32) -> (i32, i32) {
    %c0_i32 = arith.constant 0 : i32
    %c0_i32_0 = arith.constant 0 : i32
    %c0_i32_1 = arith.constant 0 : i32
    return %c0_i32, %c0_i32_0 : i32, i32
  }
  func.func @transform_3(%arg0: i32) -> (i32, i32) {
    %c0_i32 = arith.constant 0 : i32
    %c0_i32_0 = arith.constant 0 : i32
    %c0_i32_1 = arith.constant 0 : i32
    return %c0_i32, %c0_i32_0 : i32, i32
  }
  func.func @transform_4(%arg0: i32) -> (i32, i32) {
    %c0_i32 = arith.constant 0 : i32
    %c0_i32_0 = arith.constant 0 : i32
    return %arg0, %c0_i32 : i32, i32
  }
  func.func @transform_5(%arg0: i32) -> (i32, i32) {
    %c0_i32 = arith.constant 0 : i32
    %c0_i32_0 = arith.constant 0 : i32
    return %c0_i32, %arg0 : i32, i32
  }
  func.func @transform_6(%arg0: i32) -> (i32, i32) {
    %c0_i32 = arith.constant 0 : i32
    %c0_i32_0 = arith.constant 0 : i32
    return %arg0, %c0_i32 : i32, i32
  }
}

module attributes {stable_mosaic.version = 11 : i64} {
  func.func @_gat_attn_kernel(%arg0: i32, %arg1: memref<128x128xbf16, #tpu.memory_space<vmem>>, %arg2: memref<4x128xf32, #tpu.memory_space<vmem>>, %arg3: memref<128x4xf32, #tpu.memory_space<vmem>>, %arg4: memref<128x128xbf16, #tpu.memory_space<vmem>>, %arg5: memref<128x128xf32, #tpu.memory_space<vmem>>, %arg6: memref<4x128x128xbf16, #tpu.memory_space<vmem>>) attributes {dimension_semantics = [#tpu.dimension_semantics<parallel>], iteration_bounds = array<i64: 1>, scalar_prefetch = 0 : i64, scratch_operands = 0 : i64, tpu.core_type = #tpu.core_type<tc>, window_params = [{pipeline_mode = #tpu.pipeline_mode<synchronous>, transform_indices = @transform_0, window_bounds = array<i64: 128, 128>}, {pipeline_mode = #tpu.pipeline_mode<synchronous>, transform_indices = @transform_1, window_bounds = array<i64: 4, 128>}, {transform_indices = @transform_2, window_bounds = array<i64: 128, 4>}, {transform_indices = @transform_3, window_bounds = array<i64: 128, 128>}, {transform_indices = @transform_4, window_bounds = array<i64: 128, 128>}, {transform_indices = @transform_5, window_bounds = array<i64: 4, 128, 128>}]} {
    %c0 = arith.constant 0 : index
    %c0_0 = arith.constant 0 : index
    %0 = vector.load %arg4[%c0, %c0_0] : memref<128x128xbf16, #tpu.memory_space<vmem>>, vector<128x128xbf16>
    %cst = arith.constant 0.000000e+00 : bf16
    %1 = vector.broadcast %cst : bf16 to vector<128x128xbf16>
    %2 = arith.cmpf ogt, %0, %1 : vector<128x128xbf16>
    %c0_1 = arith.constant 0 : index
    %c0_2 = arith.constant 0 : index
    %3 = vector.load %arg2[%c0_1, %c0_2] : memref<4x128xf32, #tpu.memory_space<vmem>>, vector<4x128xf32>
    %4 = vector.extract_strided_slice %3 {offsets = [0, 0], sizes = [1, 128], strides = [1, 1]} : vector<4x128xf32> to vector<1x128xf32>
    %c0_3 = arith.constant 0 : index
    %c0_4 = arith.constant 0 : index
    %5 = vector.load %arg3[%c0_3, %c0_4] : memref<128x4xf32, #tpu.memory_space<vmem>>, vector<128x1xf32>
    %6 = vector.broadcast %5 : vector<128x1xf32> to vector<128x128xf32>
    %7 = vector.broadcast %4 : vector<1x128xf32> to vector<128x128xf32>
    %8 = arith.addf %6, %7 : vector<128x128xf32>
    %cst_5 = arith.constant 2.000000e-01 : f32
    %9 = vector.broadcast %cst_5 : f32 to vector<128x128xf32>
    %10 = arith.mulf %9, %8 : vector<128x128xf32>
    %11 = arith.maximumf %8, %10 : vector<128x128xf32>
    %cst_6 = arith.constant -1.000000e+30 : f32
    %12 = vector.broadcast %cst_6 : f32 to vector<128x128xf32>
    %13 = arith.select %2, %11, %12 : vector<128x128xi1>, vector<128x128xf32>
    %cst_7 = arith.constant dense<0xFF800000> : vector<128xf32>
    %14 = vector.multi_reduction <maximumf>, %13, %cst_7 [1] : vector<128x128xf32> to vector<128xf32>
    %15 = vector.shape_cast %14 : vector<128xf32> to vector<128x1xf32>
    %16 = vector.broadcast %15 : vector<128x1xf32> to vector<128x128xf32>
    %17 = arith.subf %13, %16 : vector<128x128xf32>
    %18 = math.exp %17 : vector<128x128xf32>
    %cst_8 = arith.constant 0.000000e+00 : f32
    %19 = vector.broadcast %cst_8 : f32 to vector<128x128xf32>
    %20 = arith.select %2, %18, %19 : vector<128x128xi1>, vector<128x128xf32>
    %cst_9 = arith.constant dense<0.000000e+00> : vector<128xf32>
    %21 = vector.multi_reduction <add>, %20, %cst_9 [1] : vector<128x128xf32> to vector<128xf32>
    %22 = vector.shape_cast %21 : vector<128xf32> to vector<128x1xf32>
    %cst_10 = arith.constant 1.000000e-30 : f32
    %23 = vector.broadcast %cst_10 : f32 to vector<128x1xf32>
    %24 = arith.maximumf %22, %23 : vector<128x1xf32>
    %25 = tpu.reciprocal %24 {approx = true} : vector<128x1xf32> -> vector<128x1xf32>
    %26 = vector.broadcast %25 : vector<128x1xf32> to vector<128x128xf32>
    %27 = arith.mulf %20, %26 : vector<128x128xf32>
    %28 = arith.truncf %27 : vector<128x128xf32> to vector<128x128xbf16>
    %c0_11 = arith.constant 0 : index
    %c0_12 = arith.constant 0 : index
    %c0_13 = arith.constant 0 : index
    %29 = vector.load %arg6[%c0_11, %c0_12, %c0_13] : memref<4x128x128xbf16, #tpu.memory_space<vmem>>, vector<1x128x128xbf16>
    %30 = vector.shape_cast %29 : vector<1x128x128xbf16> to vector<128x128xbf16>
    %31 = vector.shape_cast %28 : vector<128x128xbf16> to vector<1x128x128xbf16>
    tpu.vector_store %arg6[%c0_11, %c0_12, %c0_13], %31 {strides = array<i32>} : memref<4x128x128xbf16, #tpu.memory_space<vmem>>, vector<1x128x128xbf16>,
    %c0_14 = arith.constant 0 : index
    %c0_15 = arith.constant 0 : index
    %32 = vector.load %arg1[%c0_14, %c0_15] : memref<128x128xbf16, #tpu.memory_space<vmem>>, vector<128x32xbf16>
    %cst_16 = arith.constant dense<0.000000e+00> : vector<128x32xf32>
    %33 = tpu.matmul %28, %32, %cst_16 {dimension_numbers = #tpu.dot_dimension_numbers<[1], [0], [0], [1], [0, 0, 1, 1], [], []>} : vector<128x128xbf16>, vector<128x32xbf16>, vector<128x32xf32> -> vector<128x32xf32>
    %34 = vector.extract_strided_slice %3 {offsets = [1, 0], sizes = [1, 128], strides = [1, 1]} : vector<4x128xf32> to vector<1x128xf32>
    %c0_17 = arith.constant 0 : index
    %c1 = arith.constant 1 : index
    %35 = vector.load %arg3[%c0_17, %c1] : memref<128x4xf32, #tpu.memory_space<vmem>>, vector<128x1xf32>
    %36 = vector.broadcast %35 : vector<128x1xf32> to vector<128x128xf32>
    %37 = vector.broadcast %34 : vector<1x128xf32> to vector<128x128xf32>
    %38 = arith.addf %36, %37 : vector<128x128xf32>
    %cst_18 = arith.constant 2.000000e-01 : f32
    %39 = vector.broadcast %cst_18 : f32 to vector<128x128xf32>
    %40 = arith.mulf %39, %38 : vector<128x128xf32>
    %41 = arith.maximumf %38, %40 : vector<128x128xf32>
    %cst_19 = arith.constant -1.000000e+30 : f32
    %42 = vector.broadcast %cst_19 : f32 to vector<128x128xf32>
    %43 = arith.select %2, %41, %42 : vector<128x128xi1>, vector<128x128xf32>
    %cst_20 = arith.constant dense<0xFF800000> : vector<128xf32>
    %44 = vector.multi_reduction <maximumf>, %43, %cst_20 [1] : vector<128x128xf32> to vector<128xf32>
    %45 = vector.shape_cast %44 : vector<128xf32> to vector<128x1xf32>
    %46 = vector.broadcast %45 : vector<128x1xf32> to vector<128x128xf32>
    %47 = arith.subf %43, %46 : vector<128x128xf32>
    %48 = math.exp %47 : vector<128x128xf32>
    %cst_21 = arith.constant 0.000000e+00 : f32
    %49 = vector.broadcast %cst_21 : f32 to vector<128x128xf32>
    %50 = arith.select %2, %48, %49 : vector<128x128xi1>, vector<128x128xf32>
    %cst_22 = arith.constant dense<0.000000e+00> : vector<128xf32>
    %51 = vector.multi_reduction <add>, %50, %cst_22 [1] : vector<128x128xf32> to vector<128xf32>
    %52 = vector.shape_cast %51 : vector<128xf32> to vector<128x1xf32>
    %cst_23 = arith.constant 1.000000e-30 : f32
    %53 = vector.broadcast %cst_23 : f32 to vector<128x1xf32>
    %54 = arith.maximumf %52, %53 : vector<128x1xf32>
    %55 = tpu.reciprocal %54 {approx = true} : vector<128x1xf32> -> vector<128x1xf32>
    %56 = vector.broadcast %55 : vector<128x1xf32> to vector<128x128xf32>
    %57 = arith.mulf %50, %56 : vector<128x128xf32>
    %58 = arith.truncf %57 : vector<128x128xf32> to vector<128x128xbf16>
    %c1_24 = arith.constant 1 : index
    %c0_25 = arith.constant 0 : index
    %c0_26 = arith.constant 0 : index
    %59 = vector.load %arg6[%c1_24, %c0_25, %c0_26] : memref<4x128x128xbf16, #tpu.memory_space<vmem>>, vector<1x128x128xbf16>
    %60 = vector.shape_cast %59 : vector<1x128x128xbf16> to vector<128x128xbf16>
    %61 = vector.shape_cast %58 : vector<128x128xbf16> to vector<1x128x128xbf16>
    tpu.vector_store %arg6[%c1_24, %c0_25, %c0_26], %61 {strides = array<i32>} : memref<4x128x128xbf16, #tpu.memory_space<vmem>>, vector<1x128x128xbf16>,
    %c0_27 = arith.constant 0 : index
    %c32 = arith.constant 32 : index
    %62 = vector.load %arg1[%c0_27, %c32] : memref<128x128xbf16, #tpu.memory_space<vmem>>, vector<128x32xbf16>
    %cst_28 = arith.constant dense<0.000000e+00> : vector<128x32xf32>
    %63 = tpu.matmul %58, %62, %cst_28 {dimension_numbers = #tpu.dot_dimension_numbers<[1], [0], [0], [1], [0, 0, 1, 1], [], []>} : vector<128x128xbf16>, vector<128x32xbf16>, vector<128x32xf32> -> vector<128x32xf32>
    %64 = vector.extract_strided_slice %3 {offsets = [2, 0], sizes = [1, 128], strides = [1, 1]} : vector<4x128xf32> to vector<1x128xf32>
    %c0_29 = arith.constant 0 : index
    %c2 = arith.constant 2 : index
    %65 = vector.load %arg3[%c0_29, %c2] : memref<128x4xf32, #tpu.memory_space<vmem>>, vector<128x1xf32>
    %66 = vector.broadcast %65 : vector<128x1xf32> to vector<128x128xf32>
    %67 = vector.broadcast %64 : vector<1x128xf32> to vector<128x128xf32>
    %68 = arith.addf %66, %67 : vector<128x128xf32>
    %cst_30 = arith.constant 2.000000e-01 : f32
    %69 = vector.broadcast %cst_30 : f32 to vector<128x128xf32>
    %70 = arith.mulf %69, %68 : vector<128x128xf32>
    %71 = arith.maximumf %68, %70 : vector<128x128xf32>
    %cst_31 = arith.constant -1.000000e+30 : f32
    %72 = vector.broadcast %cst_31 : f32 to vector<128x128xf32>
    %73 = arith.select %2, %71, %72 : vector<128x128xi1>, vector<128x128xf32>
    %cst_32 = arith.constant dense<0xFF800000> : vector<128xf32>
    %74 = vector.multi_reduction <maximumf>, %73, %cst_32 [1] : vector<128x128xf32> to vector<128xf32>
    %75 = vector.shape_cast %74 : vector<128xf32> to vector<128x1xf32>
    %76 = vector.broadcast %75 : vector<128x1xf32> to vector<128x128xf32>
    %77 = arith.subf %73, %76 : vector<128x128xf32>
    %78 = math.exp %77 : vector<128x128xf32>
    %cst_33 = arith.constant 0.000000e+00 : f32
    %79 = vector.broadcast %cst_33 : f32 to vector<128x128xf32>
    %80 = arith.select %2, %78, %79 : vector<128x128xi1>, vector<128x128xf32>
    %cst_34 = arith.constant dense<0.000000e+00> : vector<128xf32>
    %81 = vector.multi_reduction <add>, %80, %cst_34 [1] : vector<128x128xf32> to vector<128xf32>
    %82 = vector.shape_cast %81 : vector<128xf32> to vector<128x1xf32>
    %cst_35 = arith.constant 1.000000e-30 : f32
    %83 = vector.broadcast %cst_35 : f32 to vector<128x1xf32>
    %84 = arith.maximumf %82, %83 : vector<128x1xf32>
    %85 = tpu.reciprocal %84 {approx = true} : vector<128x1xf32> -> vector<128x1xf32>
    %86 = vector.broadcast %85 : vector<128x1xf32> to vector<128x128xf32>
    %87 = arith.mulf %80, %86 : vector<128x128xf32>
    %88 = arith.truncf %87 : vector<128x128xf32> to vector<128x128xbf16>
    %c2_36 = arith.constant 2 : index
    %c0_37 = arith.constant 0 : index
    %c0_38 = arith.constant 0 : index
    %89 = vector.load %arg6[%c2_36, %c0_37, %c0_38] : memref<4x128x128xbf16, #tpu.memory_space<vmem>>, vector<1x128x128xbf16>
    %90 = vector.shape_cast %89 : vector<1x128x128xbf16> to vector<128x128xbf16>
    %91 = vector.shape_cast %88 : vector<128x128xbf16> to vector<1x128x128xbf16>
    tpu.vector_store %arg6[%c2_36, %c0_37, %c0_38], %91 {strides = array<i32>} : memref<4x128x128xbf16, #tpu.memory_space<vmem>>, vector<1x128x128xbf16>,
    %c0_39 = arith.constant 0 : index
    %c64 = arith.constant 64 : index
    %92 = vector.load %arg1[%c0_39, %c64] : memref<128x128xbf16, #tpu.memory_space<vmem>>, vector<128x32xbf16>
    %cst_40 = arith.constant dense<0.000000e+00> : vector<128x32xf32>
    %93 = tpu.matmul %88, %92, %cst_40 {dimension_numbers = #tpu.dot_dimension_numbers<[1], [0], [0], [1], [0, 0, 1, 1], [], []>} : vector<128x128xbf16>, vector<128x32xbf16>, vector<128x32xf32> -> vector<128x32xf32>
    %94 = vector.extract_strided_slice %3 {offsets = [3, 0], sizes = [1, 128], strides = [1, 1]} : vector<4x128xf32> to vector<1x128xf32>
    %c0_41 = arith.constant 0 : index
    %c3 = arith.constant 3 : index
    %95 = vector.load %arg3[%c0_41, %c3] : memref<128x4xf32, #tpu.memory_space<vmem>>, vector<128x1xf32>
    %96 = vector.broadcast %95 : vector<128x1xf32> to vector<128x128xf32>
    %97 = vector.broadcast %94 : vector<1x128xf32> to vector<128x128xf32>
    %98 = arith.addf %96, %97 : vector<128x128xf32>
    %cst_42 = arith.constant 2.000000e-01 : f32
    %99 = vector.broadcast %cst_42 : f32 to vector<128x128xf32>
    %100 = arith.mulf %99, %98 : vector<128x128xf32>
    %101 = arith.maximumf %98, %100 : vector<128x128xf32>
    %cst_43 = arith.constant -1.000000e+30 : f32
    %102 = vector.broadcast %cst_43 : f32 to vector<128x128xf32>
    %103 = arith.select %2, %101, %102 : vector<128x128xi1>, vector<128x128xf32>
    %cst_44 = arith.constant dense<0xFF800000> : vector<128xf32>
    %104 = vector.multi_reduction <maximumf>, %103, %cst_44 [1] : vector<128x128xf32> to vector<128xf32>
    %105 = vector.shape_cast %104 : vector<128xf32> to vector<128x1xf32>
    %106 = vector.broadcast %105 : vector<128x1xf32> to vector<128x128xf32>
    %107 = arith.subf %103, %106 : vector<128x128xf32>
    %108 = math.exp %107 : vector<128x128xf32>
    %cst_45 = arith.constant 0.000000e+00 : f32
    %109 = vector.broadcast %cst_45 : f32 to vector<128x128xf32>
    %110 = arith.select %2, %108, %109 : vector<128x128xi1>, vector<128x128xf32>
    %cst_46 = arith.constant dense<0.000000e+00> : vector<128xf32>
    %111 = vector.multi_reduction <add>, %110, %cst_46 [1] : vector<128x128xf32> to vector<128xf32>
    %112 = vector.shape_cast %111 : vector<128xf32> to vector<128x1xf32>
    %cst_47 = arith.constant 1.000000e-30 : f32
    %113 = vector.broadcast %cst_47 : f32 to vector<128x1xf32>
    %114 = arith.maximumf %112, %113 : vector<128x1xf32>
    %115 = tpu.reciprocal %114 {approx = true} : vector<128x1xf32> -> vector<128x1xf32>
    %116 = vector.broadcast %115 : vector<128x1xf32> to vector<128x128xf32>
    %117 = arith.mulf %110, %116 : vector<128x128xf32>
    %118 = arith.truncf %117 : vector<128x128xf32> to vector<128x128xbf16>
    %c3_48 = arith.constant 3 : index
    %c0_49 = arith.constant 0 : index
    %c0_50 = arith.constant 0 : index
    %119 = vector.load %arg6[%c3_48, %c0_49, %c0_50] : memref<4x128x128xbf16, #tpu.memory_space<vmem>>, vector<1x128x128xbf16>
    %120 = vector.shape_cast %119 : vector<1x128x128xbf16> to vector<128x128xbf16>
    %121 = vector.shape_cast %118 : vector<128x128xbf16> to vector<1x128x128xbf16>
    tpu.vector_store %arg6[%c3_48, %c0_49, %c0_50], %121 {strides = array<i32>} : memref<4x128x128xbf16, #tpu.memory_space<vmem>>, vector<1x128x128xbf16>,
    %c0_51 = arith.constant 0 : index
    %c96 = arith.constant 96 : index
    %122 = vector.load %arg1[%c0_51, %c96] : memref<128x128xbf16, #tpu.memory_space<vmem>>, vector<128x32xbf16>
    %cst_52 = arith.constant dense<0.000000e+00> : vector<128x32xf32>
    %123 = tpu.matmul %118, %122, %cst_52 {dimension_numbers = #tpu.dot_dimension_numbers<[1], [0], [0], [1], [0, 0, 1, 1], [], []>} : vector<128x128xbf16>, vector<128x32xbf16>, vector<128x32xf32> -> vector<128x32xf32>
    %124 = tpu.concatenate %33, %63, %93, %123 in 1 : vector<128x32xf32>, vector<128x32xf32>, vector<128x32xf32>, vector<128x32xf32> -> vector<128x128xf32>
    %c0_53 = arith.constant 0 : index
    %c0_54 = arith.constant 0 : index
    %125 = vector.load %arg5[%c0_53, %c0_54] : memref<128x128xf32, #tpu.memory_space<vmem>>, vector<128x128xf32>
    tpu.vector_store %arg5[%c0_53, %c0_54], %124 {strides = array<i32>} : memref<128x128xf32, #tpu.memory_space<vmem>>, vector<128x128xf32>,
    return
  }
  func.func @transform_0(%arg0: i32) -> (i32, i32) {
    %c0_i32 = arith.constant 0 : i32
    %c0_i32_0 = arith.constant 0 : i32
    %c0_i32_1 = arith.constant 0 : i32
    return %c0_i32, %c0_i32_0 : i32, i32
  }
  func.func @transform_1(%arg0: i32) -> (i32, i32) {
    %c0_i32 = arith.constant 0 : i32
    %c0_i32_0 = arith.constant 0 : i32
    %c0_i32_1 = arith.constant 0 : i32
    return %c0_i32, %c0_i32_0 : i32, i32
  }
  func.func @transform_2(%arg0: i32) -> (i32, i32) {
    %c0_i32 = arith.constant 0 : i32
    %c0_i32_0 = arith.constant 0 : i32
    return %arg0, %c0_i32 : i32, i32
  }
  func.func @transform_3(%arg0: i32) -> (i32, i32) {
    %c0_i32 = arith.constant 0 : i32
    %c0_i32_0 = arith.constant 0 : i32
    return %arg0, %c0_i32 : i32, i32
  }
  func.func @transform_4(%arg0: i32) -> (i32, i32) {
    %c0_i32 = arith.constant 0 : i32
    %c0_i32_0 = arith.constant 0 : i32
    return %arg0, %c0_i32 : i32, i32
  }
  func.func @transform_5(%arg0: i32) -> (i32, i32, i32) {
    %c0_i32 = arith.constant 0 : i32
    %c0_i32_0 = arith.constant 0 : i32
    %c0_i32_1 = arith.constant 0 : i32
    return %c0_i32, %arg0, %c0_i32_0 : i32, i32, i32
  }
}

</mosaic_0001>

<llo_original>
// kernel: _gat_conv_impl.2
$region0: #{_gat_conv_impl.2}
  #allocation0 [shape = 'u32[]', space=smem, size = 0x4, offset = 0x4, fixed_abs, tag = 'smem constant byte address 0x4 - core index']
  #allocation1 [shape = 'u32[144,128]{1,0:T(1,128)}', space=vmem, size = 0x12000, scoped, tag = 'internal scratch']
  %s0 = inlined_call_operand.vmem [shape: bf16[128,64], index: 0, kind: input, shape index: {}]
  %s1 = inlined_call_operand.vmem [shape: bf16[64,128], index: 1, kind: input, shape index: {}]
  %s2 = inlined_call_operand.vmem [shape: f32[4,128], index: 2, kind: input, shape index: {}]
  %s3 = inlined_call_operand.vmem [shape: f32[128,4], index: 3, kind: input, shape index: {}]
  %s4 = inlined_call_operand.vmem [shape: bf16[128,128], index: 4, kind: output, shape index: {0}]
  %s5 = inlined_call_operand.vmem [shape: f32[4,128], index: 5, kind: output, shape index: {1}]
  %s6 = inlined_call_operand.vmem [shape: f32[128,4], index: 6, kind: output, shape index: {2}]
  %7 = xla_tuple %s4, %s5, %s6
  %s8 = sld [smem:[#allocation0]]
  $region42: #{_gat_conv_impl.2} parent=0
    _
  %s10 = ssub.s32 1, %s8
  %s11 = scalar_select 0, %s10, %s8
  // Predicated region
  $region2: #{_gat_conv_impl.2} parent=0 // pred_check
    _
  $region3: #{_gat_conv_impl.2} parent=0 // pred_check_branch
    %13 = sbr.rel (0) target = $region5
  $region4: #{_gat_conv_impl.2} parent=0 // pred_region
    _
  $region5: #{_gat_conv_impl.2} parent=0 // pred_fallthru
    _
  // Predicated region
  $region6: #{_gat_conv_impl.2} parent=0 // pred_check
    _
  $region7: #{_gat_conv_impl.2} parent=0 // pred_check_branch
    %15 = sbr.rel (0) target = $region9
  $region8: #{_gat_conv_impl.2} parent=0 // pred_region
    _
  $region9: #{_gat_conv_impl.2} parent=0 // pred_fallthru
    _
  // Predicated region
  $region10: #{_gat_conv_impl.2} parent=0 // pred_check
    _
  $region11: #{_gat_conv_impl.2} parent=0 // pred_check_branch
    %17 = sbr.rel (0) target = $region13
  $region12: #{_gat_conv_impl.2} parent=0 // pred_region
    _
  $region13: #{_gat_conv_impl.2} parent=0 // pred_fallthru
    _
  // Predicated region
  $region14: #{_gat_conv_impl.2} parent=0 // pred_check
    _
  $region15: #{_gat_conv_impl.2} parent=0 // pred_check_branch
    %19 = sbr.rel (0) target = $region17
  $region16: #{_gat_conv_impl.2} parent=0 // pred_region
    _
  $region17: #{_gat_conv_impl.2} parent=0 // pred_fallthru
    _
  %v21 = vld [vmem:[%s0] sm:$0xf]
  %v22 = vld [vmem:[%s0 + $0x4] sm:$0xf]
  %v23 = vld [vmem:[%s0 + $0x8] sm:$0xf]
  %v24 = vld [vmem:[%s0 + $0xc] sm:$0xf]
  %v25 = vld [vmem:[%s0 + $0x10] sm:$0xf]
  %v26 = vld [vmem:[%s0 + $0x14] sm:$0xf]
  %v27 = vld [vmem:[%s0 + $0x18] sm:$0xf]
  %v28 = vld [vmem:[%s0 + $0x1c] sm:$0xf]
  %v29 = vld [vmem:[%s0 + $0x20] sm:$0xf]
  %v30 = vld [vmem:[%s0 + $0x24] sm:$0xf]
  %v31 = vld [vmem:[%s0 + $0x28] sm:$0xf]
  %v32 = vld [vmem:[%s0 + $0x2c] sm:$0xf]
  %v33 = vld [vmem:[%s0 + $0x30] sm:$0xf]
  %v34 = vld [vmem:[%s0 + $0x34] sm:$0xf]
  %v35 = vld [vmem:[%s0 + $0x38] sm:$0xf]
  %v36 = vld [vmem:[%s0 + $0x3c] sm:$0xf]
  %v37 = vld [vmem:[%s1] sm:$0xf]
  %v38 = vld [vmem:[%s1 + $0x4] sm:$0xf]
  %v39 = vld [vmem:[%s1 + $0x8] sm:$0xf]
  %v40 = vld [vmem:[%s1 + $0xc] sm:$0xf]
  %v41 = vld [vmem:[%s1 + $0x10] sm:$0xf]
  %v42 = vld [vmem:[%s1 + $0x14] sm:$0xf]
  %v43 = vld [vmem:[%s1 + $0x18] sm:$0xf]
  %v44 = vld [vmem:[%s1 + $0x1c] sm:$0xf]
  %v61 = vunpack.c.l.b16 %v21
  %v62 = vunpack.c.l.b16 %v22
  %v63 = vunpack.c.l.b16 %v23
  %v64 = vunpack.c.l.b16 %v24
  %v65 = vunpack.c.l.b16 %v25
  %v66 = vunpack.c.l.b16 %v26
  %v67 = vunpack.c.l.b16 %v27
  %v68 = vunpack.c.l.b16 %v28
  %v69 = vunpack.c.l.b16 %v29
  %v70 = vunpack.c.l.b16 %v30
  %v71 = vunpack.c.l.b16 %v31
  %v72 = vunpack.c.l.b16 %v32
  %v73 = vunpack.c.l.b16 %v33
  %v74 = vunpack.c.l.b16 %v34
  %v75 = vunpack.c.l.b16 %v35
  %v76 = vunpack.c.l.b16 %v36
  %v77 = vpack.c.b16 %v62, %v61
  %v78 = vpack.c.b16 %v64, %v63
  %v79 = vpack.c.b16 %v66, %v65
  %v80 = vpack.c.b16 %v68, %v67
  %v81 = vpack.c.b16 %v70, %v69
  %v82 = vpack.c.b16 %v72, %v71
  %v83 = vpack.c.b16 %v74, %v73
  %v84 = vpack.c.b16 %v76, %v75
  %v93 = vunpack.c.l.b16 %v37
  %v94 = vunpack.c.l.b16 %v38
  %v95 = vunpack.c.l.b16 %v39
  %v96 = vunpack.c.l.b16 %v40
  %v97 = vunpack.c.l.b16 %v41
  %v98 = vunpack.c.l.b16 %v42
  %v99 = vunpack.c.l.b16 %v43
  %v100 = vunpack.c.l.b16 %v44
  %v101 = vpack.c.b16 %v94, %v93
  %v102 = vpack.c.b16 %v96, %v95
  %v103 = vpack.c.b16 %v98, %v97
  %v104 = vpack.c.b16 %v100, %v99
  %vm109 = vcmask 523264
  %v111 = vsel %vm109, %v77, 0
  %v114 = vsel %vm109, %v78, 0
  %v117 = vsel %vm109, %v79, 0
  %v120 = vsel %vm109, %v80, 0
  %v123 = vsel %vm109, %v81, 0
  %v126 = vsel %vm109, %v82, 0
  %v129 = vsel %vm109, %v83, 0
  %v132 = vsel %vm109, %v84, 0
  %134 = vmatprep.subr.bf16.mxu0 0
  %135 = vmatpush1.bf16.msra.mxu0 %v101
  %136 = vmatprep.subr.bf16.mxu0 0
  %137 = vmatpush1.bf16.msra.mxu0 %v102
  %138 = vmatprep.subr.bf16.mxu0 0
  %139 = vmatpush1.bf16.msra.mxu0 %v103
  %140 = vmatprep.subr.bf16.mxu0 0
  %141 = vmatpush1.bf16.msra.mxu0 %v104
  %142 = vmatprep.subr.bf16.mxu0 0
  %143 = vmatpush1.bf16.msra.mxu0 0
  %144 = vmatprep.subr.bf16.mxu0 0
  %145 = vmatpush1.bf16.msra.mxu0 0
  %146 = vmatprep.subr.bf16.mxu0 0
  %147 = vmatpush1.bf16.msra.mxu0 0
  %148 = vmatprep.subr.bf16.mxu0 0
  %149 = vmatpush1.bf16.msra.mxu0 0
  %150 = vmatprep.subr.bf16.mxu0 0
  %151 = vmatpush1.bf16.msra.mxu0 0
  %152 = vmatprep.subr.bf16.mxu0 0
  %153 = vmatpush1.bf16.msra.mxu0 0
  %154 = vmatprep.subr.bf16.mxu0 0
  %155 = vmatpush1.bf16.msra.mxu0 0
  %156 = vmatprep.subr.bf16.mxu0 0
  %157 = vmatpush1.bf16.msra.mxu0 0
  %158 = vmatprep.subr.bf16.mxu0 0
  %159 = vmatpush1.bf16.msra.mxu0 0
  %160 = vmatprep.subr.bf16.mxu0 0
  %161 = vmatpush1.bf16.msra.mxu0 0
  %162 = vmatprep.subr.bf16.mxu0 0
  %163 = vmatpush1.bf16.msra.mxu0 0
  %164 = vmatprep.subr.bf16.mxu0 0
  %165 = vmatpush1.bf16.msra.mxu0 0
  %166 = vmatprep.mubr.bf16.mxu0 0
  %167 = vmatmul.mubr.bf16.gmra.mrb[0].mxu0 %v111
  %v168 = vpop.f32.mrb[0].mxu0
  %v169 = vadd.f32 0.0, %v168
  %v170 = vpop.f32.mrb[0].mxu0
  %v171 = vpop.f32.mrb[0].mxu0
  %v172 = vadd.f32 0.0, %v171
  %v173 = vpop.f32.mrb[0].mxu0
  %174 = vmatprep.mubr.bf16.mxu0 0
  %175 = vmatmul.mubr.bf16.gmra.mrb[0].mxu0 %v114
  %v176 = vpop.f32.mrb[0].mxu0
  %v177 = vadd.f32 0.0, %v176
  %v178 = vpop.f32.mrb[0].mxu0
  %v179 = vpop.f32.mrb[0].mxu0
  %v180 = vadd.f32 0.0, %v179
  %v181 = vpop.f32.mrb[0].mxu0
  %182 = vmatprep.mubr.bf16.mxu0 0
  %183 = vmatmul.mubr.bf16.gmra.mrb[0].mxu0 %v117
  %v184 = vpop.f32.mrb[0].mxu0
  %v185 = vadd.f32 0.0, %v184
  %v186 = vpop.f32.mrb[0].mxu0
  %v187 = vpop.f32.mrb[0].mxu0
  %v188 = vadd.f32 0.0, %v187
  %v189 = vpop.f32.mrb[0].mxu0
  %190 = vmatprep.mubr.bf16.mxu0 0
  %191 = vmatmul.mubr.bf16.gmra.mrb[0].mxu0 %v120
  %v192 = vpop.f32.mrb[0].mxu0
  %v193 = vadd.f32 0.0, %v192
  %v194 = vpop.f32.mrb[0].mxu0
  %v195 = vpop.f32.mrb[0].mxu0
  %v196 = vadd.f32 0.0, %v195
  %v197 = vpop.f32.mrb[0].mxu0
  %198 = vmatprep.mubr.bf16.mxu0 0
  %199 = vmatmul.mubr.bf16.gmra.mrb[0].mxu0 %v123
  %v200 = vpop.f32.mrb[0].mxu0
  %v201 = vadd.f32 0.0, %v200
  %v202 = vpop.f32.mrb[0].mxu0
  %v203 = vpop.f32.mrb[0].mxu0
  %v204 = vadd.f32 0.0, %v203
  %v205 = vpop.f32.mrb[0].mxu0
  %206 = vmatprep.mubr.bf16.mxu0 0
  %207 = vmatmul.mubr.bf16.gmra.mrb[0].mxu0 %v126
  %v208 = vpop.f32.mrb[0].mxu0
  %v209 = vadd.f32 0.0, %v208
  %v210 = vpop.f32.mrb[0].mxu0
  %v211 = vpop.f32.mrb[0].mxu0
  %v212 = vadd.f32 0.0, %v211
  %v213 = vpop.f32.mrb[0].mxu0
  %214 = vmatprep.mubr.bf16.mxu0 0
  %215 = vmatmul.mubr.bf16.gmra.mrb[0].mxu0 %v129
  %v216 = vpop.f32.mrb[0].mxu0
  %v217 = vadd.f32 0.0, %v216
  %v218 = vpop.f32.mrb[0].mxu0
  %v219 = vpop.f32.mrb[0].mxu0
  %v220 = vadd.f32 0.0, %v219
  %v221 = vpop.f32.mrb[0].mxu0
  %222 = vmatprep.mubr.bf16.mxu0 0
  %223 = vmatmul.mubr.bf16.gmra.mrb[0].mxu0 %v132
  %v224 = vpop.f32.mrb[0].mxu0
  %v225 = vadd.f32 0.0, %v224
  %v226 = vpop.f32.mrb[0].mxu0
  %v227 = vpop.f32.mrb[0].mxu0
  %v228 = vadd.f32 0.0, %v227
  %v229 = vpop.f32.mrb[0].mxu0
  %230 = vdwg.mxu0
  %v231 = vld [vmem:[%s2] sm:$0xf]
  %232 = vmatprep.subr.mxu0 0.0
  %233 = vmatpush1.xpose.msra.mxu0 %v169
  %234 = vmatprep.subr.mxu0 0.0
  %235 = vmatpush1.xpose.msra.mxu0 %v172
  %236 = vmatprep.subr.mxu0 0.0
  %237 = vmatpush1.xpose.msra.mxu0 %v177
  %238 = vmatprep.subr.mxu0 0.0
  %239 = vmatpush1.xpose.msra.mxu0 %v180
  %240 = vmatprep.subr.mxu0 0.0
  %241 = vmatpush1.xpose.msra.mxu0 %v185
  %242 = vmatprep.subr.mxu0 0.0
  %243 = vmatpush1.xpose.msra.mxu0 %v188
  %244 = vmatprep.subr.mxu0 0.0
  %245 = vmatpush1.xpose.msra.mxu0 %v193
  %246 = vmatprep.subr.mxu0 0.0
  %247 = vmatpush1.xpose.msra.mxu0 %v196
  %248 = vmatprep.subr.mxu0 0.0
  %249 = vmatpush1.xpose.msra.mxu0 %v201
  %250 = vmatprep.subr.mxu0 0.0
  %251 = vmatpush1.xpose.msra.mxu0 %v204
  %252 = vmatprep.subr.mxu0 0.0
  %253 = vmatpush1.xpose.msra.mxu0 %v209
  %254 = vmatprep.subr.mxu0 0.0
  %255 = vmatpush1.xpose.msra.mxu0 %v212
  %256 = vmatprep.subr.mxu0 0.0
  %257 = vmatpush1.xpose.msra.mxu0 %v217
  %258 = vmatprep.subr.mxu0 0.0
  %259 = vmatpush1.xpose.msra.mxu0 %v220
  %260 = vmatprep.subr.mxu0 0.0
  %261 = vmatpush1.xpose.msra.mxu0 %v225
  %262 = vmatprep.subr.mxu0 0.0
  %263 = vmatpush1.xpose.msra.mxu0 %v228
  %264 = vmatprep.subr.mxu0 0.0
  %265 = vmatpush1.xpose.msra.mxu0 0.0
  %266 = vmatprep.subr.mxu0 0.0
  %267 = vmatpush1.xpose.msra.mxu0 0.0
  %268 = vmatprep.subr.mxu0 0.0
  %269 = vmatpush1.xpose.msra.mxu0 0.0
  %270 = vmatprep.subr.mxu0 0.0
  %271 = vmatpush1.xpose.msra.mxu0 0.0
  %272 = vmatprep.subr.mxu0 0.0
  %273 = vmatpush1.xpose.msra.mxu0 0.0
  %274 = vmatprep.subr.mxu0 0.0
  %275 = vmatpush1.xpose.msra.mxu0 0.0
  %276 = vmatprep.subr.mxu0 0.0
  %277 = vmatpush1.xpose.msra.mxu0 0.0
  %278 = vmatprep.subr.mxu0 0.0
  %279 = vmatpush1.xpose.msra.mxu0 0.0
  %280 = vmatprep.subr.mxu0 0.0
  %281 = vmatpush1.xpose.msra.mxu0 0.0
  %282 = vmatprep.subr.mxu0 0.0
  %283 = vmatpush1.xpose.msra.mxu0 0.0
  %284 = vmatprep.subr.mxu0 0.0
  %285 = vmatpush1.xpose.msra.mxu0 0.0
  %286 = vmatprep.subr.mxu0 0.0
  %287 = vmatpush1.xpose.msra.mxu0 0.0
  %288 = vmatprep.subr.mxu0 0.0
  %289 = vmatpush1.xpose.msra.mxu0 0.0
  %290 = vmatprep.subr.mxu0 0.0
  %291 = vmatpush1.xpose.msra.mxu0 0.0
  %292 = vmatprep.subr.mxu0 0.0
  %293 = vmatpush1.xpose.msra.mxu0 0.0
  %294 = vmatprep.subr.mxu0 0.0
  %295 = vmatpush1.xpose.msra.mxu0 0.0
  %296 = vmatprep.mubr.f32.mxu0 0.0
  %297 = vmatmul.mubr.f32.gmra.mrb[0].mxu0 %v231
  %v298 = vpop.f32.mrb[0].mxu0
  %v299 = vadd.f32 0.0, %v298
  %v300 = vpop.f32.mrb[0].mxu0
  %301 = vdwg.mxu0
  %302 = vst [vmem:[%s5] sm:$0xf] %v299
  %v303 = vld [vmem:[%s3] sm:$0xff]
  %v304 = vld [vmem:[%s3 + $0x8] sm:$0xff]
  %v305 = vld [vmem:[%s3 + $0x10] sm:$0xff]
  %v306 = vld [vmem:[%s3 + $0x18] sm:$0xff]
  %v307 = vld [vmem:[%s3 + $0x20] sm:$0xff]
  %v308 = vld [vmem:[%s3 + $0x28] sm:$0xff]
  %v309 = vld [vmem:[%s3 + $0x30] sm:$0xff]
  %v310 = vld [vmem:[%s3 + $0x38] sm:$0xff]
  %v311 = vld [vmem:[%s3 + $0x40] sm:$0xff]
  %v312 = vld [vmem:[%s3 + $0x48] sm:$0xff]
  %v313 = vld [vmem:[%s3 + $0x50] sm:$0xff]
  %v314 = vld [vmem:[%s3 + $0x58] sm:$0xff]
  %v315 = vld [vmem:[%s3 + $0x60] sm:$0xff]
  %v316 = vld [vmem:[%s3 + $0x68] sm:$0xff]
  %v317 = vld [vmem:[%s3 + $0x70] sm:$0xff]
  %v318 = vld [vmem:[%s3 + $0x78] sm:$0xff]
  %319 = vmatprep.subr.mxu0 0.0
  %320 = vmatpush1.msra.mxu0 %v303
  %321 = vmatprep.subr.mxu0 0.0
  %322 = vmatpush1.msra.mxu0 %v304
  %323 = vmatprep.subr.mxu0 0.0
  %324 = vmatpush1.msra.mxu0 %v305
  %325 = vmatprep.subr.mxu0 0.0
  %326 = vmatpush1.msra.mxu0 %v306
  %327 = vmatprep.subr.mxu0 0.0
  %328 = vmatpush1.msra.mxu0 %v307
  %329 = vmatprep.subr.mxu0 0.0
  %330 = vmatpush1.msra.mxu0 %v308
  %331 = vmatprep.subr.mxu0 0.0
  %332 = vmatpush1.msra.mxu0 %v309
  %333 = vmatprep.subr.mxu0 0.0
  %334 = vmatpush1.msra.mxu0 %v310
  %335 = vmatprep.subr.mxu0 0.0
  %336 = vmatpush1.msra.mxu0 %v311
  %337 = vmatprep.subr.mxu0 0.0
  %338 = vmatpush1.msra.mxu0 %v312
  %339 = vmatprep.subr.mxu0 0.0
  %340 = vmatpush1.msra.mxu0 %v313
  %341 = vmatprep.subr.mxu0 0.0
  %342 = vmatpush1.msra.mxu0 %v314
  %343 = vmatprep.subr.mxu0 0.0
  %344 = vmatpush1.msra.mxu0 %v315
  %345 = vmatprep.subr.mxu0 0.0
  %346 = vmatpush1.msra.mxu0 %v316
  %347 = vmatprep.subr.mxu0 0.0
  %348 = vmatpush1.msra.mxu0 %v317
  %349 = vmatprep.subr.mxu0 0.0
  %350 = vmatpush1.msra.mxu0 %v318
  %351 = vmatprep.subr.mxu0 0.0
  %352 = vmatpush1.msra.mxu0 0.0
  %353 = vmatprep.subr.mxu0 0.0
  %354 = vmatpush1.msra.mxu0 0.0
  %355 = vmatprep.subr.mxu0 0.0
  %356 = vmatpush1.msra.mxu0 0.0
  %357 = vmatprep.subr.mxu0 0.0
  %358 = vmatpush1.msra.mxu0 0.0
  %359 = vmatprep.subr.mxu0 0.0
  %360 = vmatpush1.msra.mxu0 0.0
  %361 = vmatprep.subr.mxu0 0.0
  %362 = vmatpush1.msra.mxu0 0.0
  %363 = vmatprep.subr.mxu0 0.0
  %364 = vmatpush1.msra.mxu0 0.0
  %365 = vmatprep.subr.mxu0 0.0
  %366 = vmatpush1.msra.mxu0 0.0
  %367 = vmatprep.subr.mxu0 0.0
  %368 = vmatpush1.msra.mxu0 0.0
  %369 = vmatprep.subr.mxu0 0.0
  %370 = vmatpush1.msra.mxu0 0.0
  %371 = vmatprep.subr.mxu0 0.0
  %372 = vmatpush1.msra.mxu0 0.0
  %373 = vmatprep.subr.mxu0 0.0
  %374 = vmatpush1.msra.mxu0 0.0
  %375 = vmatprep.subr.mxu0 0.0
  %376 = vmatpush1.msra.mxu0 0.0
  %377 = vmatprep.subr.mxu0 0.0
  %378 = vmatpush1.msra.mxu0 0.0
  %379 = vmatprep.subr.mxu0 0.0
  %380 = vmatpush1.msra.mxu0 0.0
  %381 = vmatprep.subr.mxu0 0.0
  %382 = vmatpush1.msra.mxu0 0.0
  %383 = vmatprep.mubr.f32.mxu0 0.0
  %384 = vmatmul.mubr.f32.gmra.mrb[0].mxu0 %v169
  %v385 = vpop.f32.mrb[0].mxu0
  %v386 = vadd.f32 0.0, %v385
  %v387 = vpop.f32.mrb[0].mxu0
  %388 = vmatprep.mubr.f32.mxu0 0.0
  %389 = vmatmul.mubr.f32.gmra.mrb[0].mxu0 %v172
  %v390 = vpop.f32.mrb[0].mxu0
  %v391 = vadd.f32 0.0, %v390
  %v392 = vpop.f32.mrb[0].mxu0
  %393 = vmatprep.mubr.f32.mxu0 0.0
  %394 = vmatmul.mubr.f32.gmra.mrb[0].mxu0 %v177
  %v395 = vpop.f32.mrb[0].mxu0
  %v396 = vadd.f32 0.0, %v395
  %v397 = vpop.f32.mrb[0].mxu0
  %398 = vmatprep.mubr.f32.mxu0 0.0
  %399 = vmatmul.mubr.f32.gmra.mrb[0].mxu0 %v180
  %v400 = vpop.f32.mrb[0].mxu0
  %v401 = vadd.f32 0.0, %v400
  %v402 = vpop.f32.mrb[0].mxu0
  %403 = vmatprep.mubr.f32.mxu0 0.0
  %404 = vmatmul.mubr.f32.gmra.mrb[0].mxu0 %v185
  %v405 = vpop.f32.mrb[0].mxu0
  %v406 = vadd.f32 0.0, %v405
  %v407 = vpop.f32.mrb[0].mxu0
  %408 = vmatprep.mubr.f32.mxu0 0.0
  %409 = vmatmul.mubr.f32.gmra.mrb[0].mxu0 %v188
  %v410 = vpop.f32.mrb[0].mxu0
  %v411 = vadd.f32 0.0, %v410
  %v412 = vpop.f32.mrb[0].mxu0
  %413 = vmatprep.mubr.f32.mxu0 0.0
  %414 = vmatmul.mubr.f32.gmra.mrb[0].mxu0 %v193
  %v415 = vpop.f32.mrb[0].mxu0
  %v416 = vadd.f32 0.0, %v415
  %v417 = vpop.f32.mrb[0].mxu0
  %418 = vmatprep.mubr.f32.mxu0 0.0
  %419 = vmatmul.mubr.f32.gmra.mrb[0].mxu0 %v196
  %v420 = vpop.f32.mrb[0].mxu0
  %v421 = vadd.f32 0.0, %v420
  %v422 = vpop.f32.mrb[0].mxu0
  %423 = vmatprep.mubr.f32.mxu0 0.0
  %424 = vmatmul.mubr.f32.gmra.mrb[0].mxu0 %v201
  %v425 = vpop.f32.mrb[0].mxu0
  %v426 = vadd.f32 0.0, %v425
  %v427 = vpop.f32.mrb[0].mxu0
  %428 = vmatprep.mubr.f32.mxu0 0.0
  %429 = vmatmul.mubr.f32.gmra.mrb[0].mxu0 %v204
  %v430 = vpop.f32.mrb[0].mxu0
  %v431 = vadd.f32 0.0, %v430
  %v432 = vpop.f32.mrb[0].mxu0
  %433 = vmatprep.mubr.f32.mxu0 0.0
  %434 = vmatmul.mubr.f32.gmra.mrb[0].mxu0 %v209
  %v435 = vpop.f32.mrb[0].mxu0
  %v436 = vadd.f32 0.0, %v435
  %v437 = vpop.f32.mrb[0].mxu0
  %438 = vmatprep.mubr.f32.mxu0 0.0
  %439 = vmatmul.mubr.f32.gmra.mrb[0].mxu0 %v212
  %v440 = vpop.f32.mrb[0].mxu0
  %v441 = vadd.f32 0.0, %v440
  %v442 = vpop.f32.mrb[0].mxu0
  %443 = vmatprep.mubr.f32.mxu0 0.0
  %444 = vmatmul.mubr.f32.gmra.mrb[0].mxu0 %v217
  %v445 = vpop.f32.mrb[0].mxu0
  %v446 = vadd.f32 0.0, %v445
  %v447 = vpop.f32.mrb[0].mxu0
  %448 = vmatprep.mubr.f32.mxu0 0.0
  %449 = vmatmul.mubr.f32.gmra.mrb[0].mxu0 %v220
  %v450 = vpop.f32.mrb[0].mxu0
  %v451 = vadd.f32 0.0, %v450
  %v452 = vpop.f32.mrb[0].mxu0
  %453 = vmatprep.mubr.f32.mxu0 0.0
  %454 = vmatmul.mubr.f32.gmra.mrb[0].mxu0 %v225
  %v455 = vpop.f32.mrb[0].mxu0
  %v456 = vadd.f32 0.0, %v455
  %v457 = vpop.f32.mrb[0].mxu0
  %458 = vmatprep.mubr.f32.mxu0 0.0
  %459 = vmatmul.mubr.f32.gmra.mrb[0].mxu0 %v228
  %v460 = vpop.f32.mrb[0].mxu0
  %v461 = vadd.f32 0.0, %v460
  %v462 = vpop.f32.mrb[0].mxu0
  %463 = vdwg.mxu0
  %vm464 = vcmask 31744
  %465 = vst.msk [vmem:[%s6] sm:$0xff] %vm464, %v386
  %466 = vst.msk [vmem:[%s6 + $0x8] sm:$0xff] %vm464, %v391
  %467 = vst.msk [vmem:[%s6 + $0x10] sm:$0xff] %vm464, %v396
  %468 = vst.msk [vmem:[%s6 + $0x18] sm:$0xff] %vm464, %v401
  %469 = vst.msk [vmem:[%s6 + $0x20] sm:$0xff] %vm464, %v406
  %470 = vst.msk [vmem:[%s6 + $0x28] sm:$0xff] %vm464, %v411
  %471 = vst.msk [vmem:[%s6 + $0x30] sm:$0xff] %vm464, %v416
  %472 = vst.msk [vmem:[%s6 + $0x38] sm:$0xff] %vm464, %v421
  %473 = vst.msk [vmem:[%s6 + $0x40] sm:$0xff] %vm464, %v426
  %474 = vst.msk [vmem:[%s6 + $0x48] sm:$0xff] %vm464, %v431
  %475 = vst.msk [vmem:[%s6 + $0x50] sm:$0xff] %vm464, %v436
  %476 = vst.msk [vmem:[%s6 + $0x58] sm:$0xff] %vm464, %v441
  %477 = vst.msk [vmem:[%s6 + $0x60] sm:$0xff] %vm464, %v446
  %478 = vst.msk [vmem:[%s6 + $0x68] sm:$0xff] %vm464, %v451
  %479 = vst.msk [vmem:[%s6 + $0x70] sm:$0xff] %vm464, %v456
  %480 = vst.msk [vmem:[%s6 + $0x78] sm:$0xff] %vm464, %v461
  %v481 = vpack.c.bf16 %v172, %v169
  %v482 = vpack.c.bf16 %v180, %v177
  %v483 = vpack.c.bf16 %v188, %v185
  %v484 = vpack.c.bf16 %v196, %v193
  %v485 = vpack.c.bf16 %v204, %v201
  %v486 = vpack.c.bf16 %v212, %v209
  %v487 = vpack.c.bf16 %v220, %v217
  %v488 = vpack.c.bf16 %v228, %v225
  %v497 = vunpack.c.l.b16 %v481
  %v498 = vunpack.c.h.b16 %v481
  %v499 = vunpack.c.l.b16 %v482
  %v500 = vunpack.c.h.b16 %v482
  %v501 = vunpack.c.l.b16 %v483
  %v502 = vunpack.c.h.b16 %v483
  %v503 = vunpack.c.l.b16 %v484
  %v504 = vunpack.c.h.b16 %v484
  %v505 = vunpack.c.l.b16 %v485
  %v506 = vunpack.c.h.b16 %v485
  %v507 = vunpack.c.l.b16 %v486
  %v508 = vunpack.c.h.b16 %v486
  %v509 = vunpack.c.l.b16 %v487
  %v510 = vunpack.c.h.b16 %v487
  %v511 = vunpack.c.l.b16 %v488
  %v512 = vunpack.c.h.b16 %v488
  %v513 = vpack.c.b16 %v497, %v497
  %v514 = vpack.c.b16 %v498, %v498
  %v515 = vpack.c.b16 %v499, %v499
  %v516 = vpack.c.b16 %v500, %v500
  %v517 = vpack.c.b16 %v501, %v501
  %v518 = vpack.c.b16 %v502, %v502
  %v519 = vpack.c.b16 %v503, %v503
  %v520 = vpack.c.b16 %v504, %v504
  %v521 = vpack.c.b16 %v505, %v505
  %v522 = vpack.c.b16 %v506, %v506
  %v523 = vpack.c.b16 %v507, %v507
  %v524 = vpack.c.b16 %v508, %v508
  %v525 = vpack.c.b16 %v509, %v509
  %v526 = vpack.c.b16 %v510, %v510
  %v527 = vpack.c.b16 %v511, %v511
  %v528 = vpack.c.b16 %v512, %v512
  %545 = vst [vmem:[%s4] sm:$0xf] %v513
  %546 = vst [vmem:[%s4 + $0x4] sm:$0xf] %v514
  %547 = vst [vmem:[%s4 + $0x8] sm:$0xf] %v515
  %548 = vst [vmem:[%s4 + $0xc] sm:$0xf] %v516
  %549 = vst [vmem:[%s4 + $0x10] sm:$0xf] %v517
  %550 = vst [vmem:[%s4 + $0x14] sm:$0xf] %v518
  %551 = vst [vmem:[%s4 + $0x18] sm:$0xf] %v519
  %552 = vst [vmem:[%s4 + $0x1c] sm:$0xf] %v520
  %553 = vst [vmem:[%s4 + $0x20] sm:$0xf] %v521
  %554 = vst [vmem:[%s4 + $0x24] sm:$0xf] %v522
  %555 = vst [vmem:[%s4 + $0x28] sm:$0xf] %v523
  %556 = vst [vmem:[%s4 + $0x2c] sm:$0xf] %v524
  %557 = vst [vmem:[%s4 + $0x30] sm:$0xf] %v525
  %558 = vst [vmem:[%s4 + $0x34] sm:$0xf] %v526
  %559 = vst [vmem:[%s4 + $0x38] sm:$0xf] %v527
  %560 = vst [vmem:[%s4 + $0x3c] sm:$0xf] %v528
  // Predicated region
  $region18: #{_gat_conv_impl.2} parent=0 // pred_check
    _
  $region19: #{_gat_conv_impl.2} parent=0 // pred_check_branch
    %562 = sbr.rel (0) target = $region21
  $region20: #{_gat_conv_impl.2} parent=0 // pred_region
    _
  $region21: #{_gat_conv_impl.2} parent=0 // pred_fallthru
    _
  // Predicated region
  $region22: #{_gat_conv_impl.2} parent=0 // pred_check
    _
  $region23: #{_gat_conv_impl.2} parent=0 // pred_check_branch
    %564 = sbr.rel (0) target = $region25
  $region24: #{_gat_conv_impl.2} parent=0 // pred_region
    _
  $region25: #{_gat_conv_impl.2} parent=0 // pred_fallthru
    _
  // Predicated region
  $region26: #{_gat_conv_impl.2} parent=0 // pred_check
    _
  $region27: #{_gat_conv_impl.2} parent=0 // pred_check_branch
    %566 = sbr.rel (0) target = $region29
  $region28: #{_gat_conv_impl.2} parent=0 // pred_region
    _
  $region29: #{_gat_conv_impl.2} parent=0 // pred_fallthru
    _
  // Predicated region
  $region30: #{_gat_conv_impl.2} parent=0 // pred_check
    _
  $region31: #{_gat_conv_impl.2} parent=0 // pred_check_branch
    %568 = sbr.rel (0) target = $region33
  $region32: #{_gat_conv_impl.2} parent=0 // pred_region
    _
  $region33: #{_gat_conv_impl.2} parent=0 // pred_fallthru
    _
  // Predicated region
  $region34: #{_gat_conv_impl.2} parent=0 // pred_check
    _
  $region35: #{_gat_conv_impl.2} parent=0 // pred_check_branch
    %570 = sbr.rel (0) target = $region37
  $region36: #{_gat_conv_impl.2} parent=0 // pred_region
    _
  $region37: #{_gat_conv_impl.2} parent=0 // pred_fallthru
    _
  // Predicated region
  $region38: #{_gat_conv_impl.2} parent=0 // pred_check
    _
  $region39: #{_gat_conv_impl.2} parent=0 // pred_check_branch
    %572 = sbr.rel (0) target = $region41
  $region40: #{_gat_conv_impl.2} parent=0 // pred_region
    _
  $region41: #{_gat_conv_impl.2} parent=0 // pred_fallthru
    _

// kernel: _gat_conv_impl.3
$region0: #{_gat_conv_impl.3}
  #allocation0 [shape = 'u32[]', space=smem, size = 0x4, offset = 0x4, fixed_abs, tag = 'smem constant byte address 0x4 - core index']
  #allocation1 [shape = 'u32[144,128]{1,0:T(1,128)}', space=vmem, size = 0x12000, scoped, tag = 'internal scratch']
  %s0 = inlined_call_operand.vmem [shape: bf16[128,128], index: 0, kind: input, shape index: {}]
  %s1 = inlined_call_operand.vmem [shape: f32[4,128], index: 1, kind: input, shape index: {}]
  %s2 = inlined_call_operand.vmem [shape: f32[128,4], index: 2, kind: input, shape index: {}]
  %s3 = inlined_call_operand.vmem [shape: bf16[128,128], index: 3, kind: input, shape index: {}]
  %s4 = inlined_call_operand.vmem [shape: f32[128,128], index: 4, kind: output, shape index: {0}]
  %s5 = inlined_call_operand.hbm [shape: bf16[4,128,128], index: 5, kind: output, shape index: {1}]
  %6 = xla_tuple %s4, %s5
  %s7 = sld [smem:[#allocation0]]
  $region34: #{_gat_conv_impl.3} parent=0
    _
  %s9 = ssub.s32 1, %s7
  %s10 = scalar_select 0, %s9, %s7
  $region1: #{_gat_conv_impl.3} parent=0
    #allocation2 [shape = 'u8[131072]{0}', space=vmem, size = 0x20000, scoped, tag = 'output window, operand 1, single buffered']
    #allocation3 [shape = 's32[1]{0}', space=sflag, size = 0x4, scoped, tag = 'scoped memory for _gat_conv_impl.3']
    %11 = vsyncpa [#allocation3], 0
    // Predicated region
    $region2: #{_gat_conv_impl.3} parent=1 // pred_check
      _
    $region3: #{_gat_conv_impl.3} parent=1 // pred_check_branch
      %13 = sbr.rel (0) target = $region5
    $region4: #{_gat_conv_impl.3} parent=1 // pred_region
      _
    $region5: #{_gat_conv_impl.3} parent=1 // pred_fallthru
      _
    // Predicated region
    $region6: #{_gat_conv_impl.3} parent=1 // pred_check
      _
    $region7: #{_gat_conv_impl.3} parent=1 // pred_check_branch
      %15 = sbr.rel (0) target = $region9
    $region8: #{_gat_conv_impl.3} parent=1 // pred_region
      _
    $region9: #{_gat_conv_impl.3} parent=1 // pred_fallthru
      _
    // Predicated region
    $region10: #{_gat_conv_impl.3} parent=1 // pred_check
      _
    $region11: #{_gat_conv_impl.3} parent=1 // pred_check_branch
      %17 = sbr.rel (0) target = $region13
    $region12: #{_gat_conv_impl.3} parent=1 // pred_region
      _
    $region13: #{_gat_conv_impl.3} parent=1 // pred_fallthru
      _
    // Predicated region
    $region14: #{_gat_conv_impl.3} parent=1 // pred_check
      _
    $region15: #{_gat_conv_impl.3} parent=1 // pred_check_branch
      %19 = sbr.rel (0) target = $region17
    $region16: #{_gat_conv_impl.3} parent=1 // pred_region
      _
    $region17: #{_gat_conv_impl.3} parent=1 // pred_fallthru
      _
    %v23 = vld [vmem:[%s3] sm:$0xf]
    %v24 = vld [vmem:[%s3 + $0x4] sm:$0xf]
    %v25 = vld [vmem:[%s3 + $0x8] sm:$0xf]
    %v26 = vld [vmem:[%s3 + $0xc] sm:$0xf]
    %v27 = vld [vmem:[%s3 + $0x10] sm:$0xf]
    %v28 = vld [vmem:[%s3 + $0x14] sm:$0xf]
    %v29 = vld [vmem:[%s3 + $0x18] sm:$0xf]
    %v30 = vld [vmem:[%s3 + $0x1c] sm:$0xf]
    %v31 = vld [vmem:[%s3 + $0x20] sm:$0xf]
    %v32 = vld [vmem:[%s3 + $0x24] sm:$0xf]
    %v33 = vld [vmem:[%s3 + $0x28] sm:$0xf]
    %v34 = vld [vmem:[%s3 + $0x2c] sm:$0xf]
    %v35 = vld [vmem:[%s3 + $0x30] sm:$0xf]
    %v36 = vld [vmem:[%s3 + $0x34] sm:$0xf]
    %v37 = vld [vmem:[%s3 + $0x38] sm:$0xf]
    %v38 = vld [vmem:[%s3 + $0x3c] sm:$0xf]
    %vm39 = vcmp.gt.bf16.partialorder %v23, 0
    %vm40 = vcmp.gt.bf16.partialorder %v24, 0
    %vm41 = vcmp.gt.bf16.partialorder %v25, 0
    %vm42 = vcmp.gt.bf16.partialorder %v26, 0
    %vm43 = vcmp.gt.bf16.partialorder %v27, 0
    %vm44 = vcmp.gt.bf16.partialorder %v28, 0
    %vm45 = vcmp.gt.bf16.partialorder %v29, 0
    %vm46 = vcmp.gt.bf16.partialorder %v30, 0
    %vm47 = vcmp.gt.bf16.partialorder %v31, 0
    %vm48 = vcmp.gt.bf16.partialorder %v32, 0
    %vm49 = vcmp.gt.bf16.partialorder %v33, 0
    %vm50 = vcmp.gt.bf16.partialorder %v34, 0
    %vm51 = vcmp.gt.bf16.partialorder %v35, 0
    %vm52 = vcmp.gt.bf16.partialorder %v36, 0
    %vm53 = vcmp.gt.bf16.partialorder %v37, 0
    %vm54 = vcmp.gt.bf16.partialorder %v38, 0
    %v55 = vld [vmem:[%s1] sm:$0xf]
    %v56 = vld [vmem:[%s2] sm:$0xff]
    %v57 = vld [vmem:[%s2 + $0x8] sm:$0xff]
    %v58 = vld [vmem:[%s2 + $0x10] sm:$0xff]
    %v59 = vld [vmem:[%s2 + $0x18] sm:$0xff]
    %v60 = vld [vmem:[%s2 + $0x20] sm:$0xff]
    %v61 = vld [vmem:[%s2 + $0x28] sm:$0xff]
    %v62 = vld [vmem:[%s2 + $0x30] sm:$0xff]
    %v63 = vld [vmem:[%s2 + $0x38] sm:$0xff]
    %v64 = vld [vmem:[%s2 + $0x40] sm:$0xff]
    %v65 = vld [vmem:[%s2 + $0x48] sm:$0xff]
    %v66 = vld [vmem:[%s2 + $0x50] sm:$0xff]
    %v67 = vld [vmem:[%s2 + $0x58] sm:$0xff]
    %v68 = vld [vmem:[%s2 + $0x60] sm:$0xff]
    %v69 = vld [vmem:[%s2 + $0x68] sm:$0xff]
    %v70 = vld [vmem:[%s2 + $0x70] sm:$0xff]
    %v71 = vld [vmem:[%s2 + $0x78] sm:$0xff]
    %73 = vset.pattern.permute.xlu0 0
    %74 = vperm.xlu0 %73, %v56
    %v75 = vpop.permute.xlu0 %74
    %78 = vset.pattern.permute.xlu0 0
    %79 = vperm.xlu0 %78, %v57
    %v80 = vpop.permute.xlu0 %79
    %83 = vset.pattern.permute.xlu0 0
    %84 = vperm.xlu0 %83, %v58
    %v85 = vpop.permute.xlu0 %84
    %88 = vset.pattern.permute.xlu0 0
    %89 = vperm.xlu0 %88, %v59
    %v90 = vpop.permute.xlu0 %89
    %93 = vset.pattern.permute.xlu0 0
    %94 = vperm.xlu0 %93, %v60
    %v95 = vpop.permute.xlu0 %94
    %98 = vset.pattern.permute.xlu0 0
    %99 = vperm.xlu0 %98, %v61
    %v100 = vpop.permute.xlu0 %99
    %103 = vset.pattern.permute.xlu0 0
    %104 = vperm.xlu0 %103, %v62
    %v105 = vpop.permute.xlu0 %104
    %108 = vset.pattern.permute.xlu0 0
    %109 = vperm.xlu0 %108, %v63
    %v110 = vpop.permute.xlu0 %109
    %113 = vset.pattern.permute.xlu0 0
    %114 = vperm.xlu0 %113, %v64
    %v115 = vpop.permute.xlu0 %114
    %118 = vset.pattern.permute.xlu0 0
    %119 = vperm.xlu0 %118, %v65
    %v120 = vpop.permute.xlu0 %119
    %123 = vset.pattern.permute.xlu0 0
    %124 = vperm.xlu0 %123, %v66
    %v125 = vpop.permute.xlu0 %124
    %128 = vset.pattern.permute.xlu0 0
    %129 = vperm.xlu0 %128, %v67
    %v130 = vpop.permute.xlu0 %129
    %133 = vset.pattern.permute.xlu0 0
    %134 = vperm.xlu0 %133, %v68
    %v135 = vpop.permute.xlu0 %134
    %138 = vset.pattern.permute.xlu0 0
    %139 = vperm.xlu0 %138, %v69
    %v140 = vpop.permute.xlu0 %139
    %143 = vset.pattern.permute.xlu0 0
    %144 = vperm.xlu0 %143, %v70
    %v145 = vpop.permute.xlu0 %144
    %148 = vset.pattern.permute.xlu0 0
    %149 = vperm.xlu0 %148, %v71
    %v150 = vpop.permute.xlu0 %149
    %v152 = vlaneseq
    %v153 = vshrl.u32 %v152, 7
    %v154 = vsub.s32 0, %v153
    %v155 = vrot.slane %v55, %v154
    %v156 = vadd.f32 %v75, %v155
    %v157 = vadd.f32 %v80, %v155
    %v158 = vadd.f32 %v85, %v155
    %v159 = vadd.f32 %v90, %v155
    %v160 = vadd.f32 %v95, %v155
    %v161 = vadd.f32 %v100, %v155
    %v162 = vadd.f32 %v105, %v155
    %v163 = vadd.f32 %v110, %v155
    %v164 = vadd.f32 %v115, %v155
    %v165 = vadd.f32 %v120, %v155
    %v166 = vadd.f32 %v125, %v155
    %v167 = vadd.f32 %v130, %v155
    %v168 = vadd.f32 %v135, %v155
    %v169 = vadd.f32 %v140, %v155
    %v170 = vadd.f32 %v145, %v155
    %v171 = vadd.f32 %v150, %v155
    %v172 = vmul.f32 %v156, 0.2
    %v173 = vmul.f32 %v157, 0.2
    %v174 = vmul.f32 %v158, 0.2
    %v175 = vmul.f32 %v159, 0.2
    %v176 = vmul.f32 %v160, 0.2
    %v177 = vmul.f32 %v161, 0.2
    %v178 = vmul.f32 %v162, 0.2
    %v179 = vmul.f32 %v163, 0.2
    %v180 = vmul.f32 %v164, 0.2
    %v181 = vmul.f32 %v165, 0.2
    %v182 = vmul.f32 %v166, 0.2
    %v183 = vmul.f32 %v167, 0.2
    %v184 = vmul.f32 %v168, 0.2
    %v185 = vmul.f32 %v169, 0.2
    %v186 = vmul.f32 %v170, 0.2
    %v187 = vmul.f32 %v171, 0.2
    %v188 = vmax.f32 %v156, %v172
    %v189 = vmax.f32 %v157, %v173
    %v190 = vmax.f32 %v158, %v174
    %v191 = vmax.f32 %v159, %v175
    %v192 = vmax.f32 %v160, %v176
    %v193 = vmax.f32 %v161, %v177
    %v194 = vmax.f32 %v162, %v178
    %v195 = vmax.f32 %v163, %v179
    %v196 = vmax.f32 %v164, %v180
    %v197 = vmax.f32 %v165, %v181
    %v198 = vmax.f32 %v166, %v182
    %v199 = vmax.f32 %v167, %v183
    %v200 = vmax.f32 %v168, %v184
    %v201 = vmax.f32 %v169, %v185
    %v202 = vmax.f32 %v170, %v186
    %v203 = vmax.f32 %v171, %v187
    %v204 = vsel %vm39, 65537, 0
    %v205 = vsel %vm40, 65537, 0
    %v206 = vsel %vm41, 65537, 0
    %v207 = vsel %vm42, 65537, 0
    %v208 = vsel %vm43, 65537, 0
    %v209 = vsel %vm44, 65537, 0
    %v210 = vsel %vm45, 65537, 0
    %v211 = vsel %vm46, 65537, 0
    %v212 = vsel %vm47, 65537, 0
    %v213 = vsel %vm48, 65537, 0
    %v214 = vsel %vm49, 65537, 0
    %v215 = vsel %vm50, 65537, 0
    %v216 = vsel %vm51, 65537, 0
    %v217 = vsel %vm52, 65537, 0
    %v218 = vsel %vm53, 65537, 0
    %v219 = vsel %vm54, 65537, 0
    %v220 = vunpack.c.l.b16 %v204
    %v221 = vunpack.c.l.b16 %v205
    %v222 = vunpack.c.l.b16 %v206
    %v223 = vunpack.c.l.b16 %v207
    %v224 = vunpack.c.l.b16 %v208
    %v225 = vunpack.c.l.b16 %v209
    %v226 = vunpack.c.l.b16 %v210
    %v227 = vunpack.c.l.b16 %v211
    %v228 = vunpack.c.l.b16 %v212
    %v229 = vunpack.c.l.b16 %v213
    %v230 = vunpack.c.l.b16 %v214
    %v231 = vunpack.c.l.b16 %v215
    %v232 = vunpack.c.l.b16 %v216
    %v233 = vunpack.c.l.b16 %v217
    %v234 = vunpack.c.l.b16 %v218
    %v235 = vunpack.c.l.b16 %v219
    %vm236 = vcmp.ne.s32.totalorder %v220, 0
    %vm237 = vcmp.ne.s32.totalorder %v221, 0
    %vm238 = vcmp.ne.s32.totalorder %v222, 0
    %vm239 = vcmp.ne.s32.totalorder %v223, 0
    %vm240 = vcmp.ne.s32.totalorder %v224, 0
    %vm241 = vcmp.ne.s32.totalorder %v225, 0
    %vm242 = vcmp.ne.s32.totalorder %v226, 0
    %vm243 = vcmp.ne.s32.totalorder %v227, 0
    %vm244 = vcmp.ne.s32.totalorder %v228, 0
    %vm245 = vcmp.ne.s32.totalorder %v229, 0
    %vm246 = vcmp.ne.s32.totalorder %v230, 0
    %vm247 = vcmp.ne.s32.totalorder %v231, 0
    %vm248 = vcmp.ne.s32.totalorder %v232, 0
    %vm249 = vcmp.ne.s32.totalorder %v233, 0
    %vm250 = vcmp.ne.s32.totalorder %v234, 0
    %vm251 = vcmp.ne.s32.totalorder %v235, 0
    %v252 = vsel %vm236, %v188, -1e+30
    %v253 = vsel %vm237, %v189, -1e+30
    %v254 = vsel %vm238, %v190, -1e+30
    %v255 = vsel %vm239, %v191, -1e+30
    %v256 = vsel %vm240, %v192, -1e+30
    %v257 = vsel %vm241, %v193, -1e+30
    %v258 = vsel %vm242, %v194, -1e+30
    %v259 = vsel %vm243, %v195, -1e+30
    %v260 = vsel %vm244, %v196, -1e+30
    %v261 = vsel %vm245, %v197, -1e+30
    %v262 = vsel %vm246, %v198, -1e+30
    %v263 = vsel %vm247, %v199, -1e+30
    %v264 = vsel %vm248, %v200, -1e+30
    %v265 = vsel %vm249, %v201, -1e+30
    %v266 = vsel %vm250, %v202, -1e+30
    %v267 = vsel %vm251, %v203, -1e+30
    %268 = vmax.xlane.f32.xlu0 %v252
    %v269 = vpop.xlane.xlu0 %268
    %270 = vmax.xlane.f32.xlu0 %v253
    %v271 = vpop.xlane.xlu0 %270
    %272 = vmax.xlane.f32.xlu0 %v254
    %v273 = vpop.xlane.xlu0 %272
    %274 = vmax.xlane.f32.xlu0 %v255
    %v275 = vpop.xlane.xlu0 %274
    %276 = vmax.xlane.f32.xlu0 %v256
    %v277 = vpop.xlane.xlu0 %276
    %278 = vmax.xlane.f32.xlu0 %v257
    %v279 = vpop.xlane.xlu0 %278
    %280 = vmax.xlane.f32.xlu0 %v258
    %v281 = vpop.xlane.xlu0 %280
    %282 = vmax.xlane.f32.xlu0 %v259
    %v283 = vpop.xlane.xlu0 %282
    %284 = vmax.xlane.f32.xlu0 %v260
    %v285 = vpop.xlane.xlu0 %284
    %286 = vmax.xlane.f32.xlu0 %v261
    %v287 = vpop.xlane.xlu0 %286
    %288 = vmax.xlane.f32.xlu0 %v262
    %v289 = vpop.xlane.xlu0 %288
    %290 = vmax.xlane.f32.xlu0 %v263
    %v291 = vpop.xlane.xlu0 %290
    %292 = vmax.xlane.f32.xlu0 %v264
    %v293 = vpop.xlane.xlu0 %292
    %294 = vmax.xlane.f32.xlu0 %v265
    %v295 = vpop.xlane.xlu0 %294
    %296 = vmax.xlane.f32.xlu0 %v266
    %v297 = vpop.xlane.xlu0 %296
    %298 = vmax.xlane.f32.xlu0 %v267
    %v299 = vpop.xlane.xlu0 %298
    %v300 = vsub.f32 %v252, %v269
    %v301 = vsub.f32 %v253, %v271
    %v302 = vsub.f32 %v254, %v273
    %v303 = vsub.f32 %v255, %v275
    %v304 = vsub.f32 %v256, %v277
    %v305 = vsub.f32 %v257, %v279
    %v306 = vsub.f32 %v258, %v281
    %v307 = vsub.f32 %v259, %v283
    %v308 = vsub.f32 %v260, %v285
    %v309 = vsub.f32 %v261, %v287
    %v310 = vsub.f32 %v262, %v289
    %v311 = vsub.f32 %v263, %v291
    %v312 = vsub.f32 %v264, %v293
    %v313 = vsub.f32 %v265, %v295
    %v314 = vsub.f32 %v266, %v297
    %v315 = vsub.f32 %v267, %v299
    %v316 = vmul.f32 %v300, 1.442695
    %v317 = vpow.pop %v316
    %v318 = vmul.f32 %v301, 1.442695
    %v319 = vpow.pop %v318
    %v320 = vmul.f32 %v302, 1.442695
    %v321 = vpow.pop %v320
    %v322 = vmul.f32 %v303, 1.442695
    %v323 = vpow.pop %v322
    %v324 = vmul.f32 %v304, 1.442695
    %v325 = vpow.pop %v324
    %v326 = vmul.f32 %v305, 1.442695
    %v327 = vpow.pop %v326
    %v328 = vmul.f32 %v306, 1.442695
    %v329 = vpow.pop %v328
    %v330 = vmul.f32 %v307, 1.442695
    %v331 = vpow.pop %v330
    %v332 = vmul.f32 %v308, 1.442695
    %v333 = vpow.pop %v332
    %v334 = vmul.f32 %v309, 1.442695
    %v335 = vpow.pop %v334
    %v336 = vmul.f32 %v310, 1.442695
    %v337 = vpow.pop %v336
    %v338 = vmul.f32 %v311, 1.442695
    %v339 = vpow.pop %v338
    %v340 = vmul.f32 %v312, 1.442695
    %v341 = vpow.pop %v340
    %v342 = vmul.f32 %v313, 1.442695
    %v343 = vpow.pop %v342
    %v344 = vmul.f32 %v314, 1.442695
    %v345 = vpow.pop %v344
    %v346 = vmul.f32 %v315, 1.442695
    %v347 = vpow.pop %v346
    %v348 = vsel %vm236, %v317, 0.0
    %v349 = vsel %vm237, %v319, 0.0
    %v350 = vsel %vm238, %v321, 0.0
    %v351 = vsel %vm239, %v323, 0.0
    %v352 = vsel %vm240, %v325, 0.0
    %v353 = vsel %vm241, %v327, 0.0
    %v354 = vsel %vm242, %v329, 0.0
    %v355 = vsel %vm243, %v331, 0.0
    %v356 = vsel %vm244, %v333, 0.0
    %v357 = vsel %vm245, %v335, 0.0
    %v358 = vsel %vm246, %v337, 0.0
    %v359 = vsel %vm247, %v339, 0.0
    %v360 = vsel %vm248, %v341, 0.0
    %v361 = vsel %vm249, %v343, 0.0
    %v362 = vsel %vm250, %v345, 0.0
    %v363 = vsel %vm251, %v347, 0.0
    %364 = vadd.xlane.f32.xlu0 %v348
    %v365 = vpop.xlane.xlu0 %364
    %366 = vadd.xlane.f32.xlu0 %v349
    %v367 = vpop.xlane.xlu0 %366
    %368 = vadd.xlane.f32.xlu0 %v350
    %v369 = vpop.xlane.xlu0 %368
    %370 = vadd.xlane.f32.xlu0 %v351
    %v371 = vpop.xlane.xlu0 %370
    %372 = vadd.xlane.f32.xlu0 %v352
    %v373 = vpop.xlane.xlu0 %372
    %374 = vadd.xlane.f32.xlu0 %v353
    %v375 = vpop.xlane.xlu0 %374
    %376 = vadd.xlane.f32.xlu0 %v354
    %v377 = vpop.xlane.xlu0 %376
    %378 = vadd.xlane.f32.xlu0 %v355
    %v379 = vpop.xlane.xlu0 %378
    %380 = vadd.xlane.f32.xlu0 %v356
    %v381 = vpop.xlane.xlu0 %380
    %382 = vadd.xlane.f32.xlu0 %v357
    %v383 = vpop.xlane.xlu0 %382
    %384 = vadd.xlane.f32.xlu0 %v358
    %v385 = vpop.xlane.xlu0 %384
    %386 = vadd.xlane.f32.xlu0 %v359
    %v387 = vpop.xlane.xlu0 %386
    %388 = vadd.xlane.f32.xlu0 %v360
    %v389 = vpop.xlane.xlu0 %388
    %390 = vadd.xlane.f32.xlu0 %v361
    %v391 = vpop.xlane.xlu0 %390
    %392 = vadd.xlane.f32.xlu0 %v362
    %v393 = vpop.xlane.xlu0 %392
    %394 = vadd.xlane.f32.xlu0 %v363
    %v395 = vpop.xlane.xlu0 %394
    %v396 = vmax.f32 %v365, 1e-30
    %v397 = vmax.f32 %v367, 1e-30
    %v398 = vmax.f32 %v369, 1e-30
    %v399 = vmax.f32 %v371, 1e-30
    %v400 = vmax.f32 %v373, 1e-30
    %v401 = vmax.f32 %v375, 1e-30
    %v402 = vmax.f32 %v377, 1e-30
    %v403 = vmax.f32 %v379, 1e-30
    %v404 = vmax.f32 %v381, 1e-30
    %v405 = vmax.f32 %v383, 1e-30
    %v406 = vmax.f32 %v385, 1e-30
    %v407 = vmax.f32 %v387, 1e-30
    %v408 = vmax.f32 %v389, 1e-30
    %v409 = vmax.f32 %v391, 1e-30
    %v410 = vmax.f32 %v393, 1e-30
    %v411 = vmax.f32 %v395, 1e-30
    %v412 = vrcp.pop %v396
    %v413 = vrcp.pop %v397
    %v414 = vrcp.pop %v398
    %v415 = vrcp.pop %v399
    %v416 = vrcp.pop %v400
    %v417 = vrcp.pop %v401
    %v418 = vrcp.pop %v402
    %v419 = vrcp.pop %v403
    %v420 = vrcp.pop %v404
    %v421 = vrcp.pop %v405
    %v422 = vrcp.pop %v406
    %v423 = vrcp.pop %v407
    %v424 = vrcp.pop %v408
    %v425 = vrcp.pop %v409
    %v426 = vrcp.pop %v410
    %v427 = vrcp.pop %v411
    %v428 = vmul.f32 %v348, %v412
    %v429 = vmul.f32 %v349, %v413
    %v430 = vmul.f32 %v350, %v414
    %v431 = vmul.f32 %v351, %v415
    %v432 = vmul.f32 %v352, %v416
    %v433 = vmul.f32 %v353, %v417
    %v434 = vmul.f32 %v354, %v418
    %v435 = vmul.f32 %v355, %v419
    %v436 = vmul.f32 %v356, %v420
    %v437 = vmul.f32 %v357, %v421
    %v438 = vmul.f32 %v358, %v422
    %v439 = vmul.f32 %v359, %v423
    %v440 = vmul.f32 %v360, %v424
    %v441 = vmul.f32 %v361, %v425
    %v442 = vmul.f32 %v362, %v426
    %v443 = vmul.f32 %v363, %v427
    %v444 = vpack.c.bf16 %v429, %v428
    %v445 = vpack.c.bf16 %v431, %v430
    %v446 = vpack.c.bf16 %v433, %v432
    %v447 = vpack.c.bf16 %v435, %v434
    %v448 = vpack.c.bf16 %v437, %v436
    %v449 = vpack.c.bf16 %v439, %v438
    %v450 = vpack.c.bf16 %v441, %v440
    %v451 = vpack.c.bf16 %v443, %v442
    %v460 = vunpack.c.l.b16 %v444
    %v461 = vunpack.c.h.b16 %v444
    %v462 = vunpack.c.l.b16 %v445
    %v463 = vunpack.c.h.b16 %v445
    %v464 = vunpack.c.l.b16 %v446
    %v465 = vunpack.c.h.b16 %v446
    %v466 = vunpack.c.l.b16 %v447
    %v467 = vunpack.c.h.b16 %v447
    %v468 = vunpack.c.l.b16 %v448
    %v469 = vunpack.c.h.b16 %v448
    %v470 = vunpack.c.l.b16 %v449
    %v471 = vunpack.c.h.b16 %v449
    %v472 = vunpack.c.l.b16 %v450
    %v473 = vunpack.c.h.b16 %v450
    %v474 = vunpack.c.l.b16 %v451
    %v475 = vunpack.c.h.b16 %v451
    %v476 = vpack.c.b16 %v460, %v460
    %v477 = vpack.c.b16 %v461, %v461
    %v478 = vpack.c.b16 %v462, %v462
    %v479 = vpack.c.b16 %v463, %v463
    %v480 = vpack.c.b16 %v464, %v464
    %v481 = vpack.c.b16 %v465, %v465
    %v482 = vpack.c.b16 %v466, %v466
    %v483 = vpack.c.b16 %v467, %v467
    %v484 = vpack.c.b16 %v468, %v468
    %v485 = vpack.c.b16 %v469, %v469
    %v486 = vpack.c.b16 %v470, %v470
    %v487 = vpack.c.b16 %v471, %v471
    %v488 = vpack.c.b16 %v472, %v472
    %v489 = vpack.c.b16 %v473, %v473
    %v490 = vpack.c.b16 %v474, %v474
    %v491 = vpack.c.b16 %v475, %v475
    %508 = vst [vmem:[#allocation2] sm:$0xf] %v476
    %509 = vst [vmem:[#allocation2 + $0x4] sm:$0xf] %v477
    %510 = vst [vmem:[#allocation2 + $0x8] sm:$0xf] %v478
    %511 = vst [vmem:[#allocation2 + $0xc] sm:$0xf] %v479
    %512 = vst [vmem:[#allocation2 + $0x10] sm:$0xf] %v480
    %513 = vst [vmem:[#allocation2 + $0x14] sm:$0xf] %v481
    %514 = vst [vmem:[#allocation2 + $0x18] sm:$0xf] %v482
    %515 = vst [vmem:[#allocation2 + $0x1c] sm:$0xf] %v483
    %516 = vst [vmem:[#allocation2 + $0x20] sm:$0xf] %v484
    %517 = vst [vmem:[#allocation2 + $0x24] sm:$0xf] %v485
    %518 = vst [vmem:[#allocation2 + $0x28] sm:$0xf] %v486
    %519 = vst [vmem:[#allocation2 + $0x2c] sm:$0xf] %v487
    %520 = vst [vmem:[#allocation2 + $0x30] sm:$0xf] %v488
    %521 = vst [vmem:[#allocation2 + $0x34] sm:$0xf] %v489
    %522 = vst [vmem:[#allocation2 + $0x38] sm:$0xf] %v490
    %523 = vst [vmem:[#allocation2 + $0x3c] sm:$0xf] %v491
    %v524 = vld [vmem:[%s0] sm:$0xf]
    %v525 = vld [vmem:[%s0 + $0x4] sm:$0xf]
    %v526 = vld [vmem:[%s0 + $0x8] sm:$0xf]
    %v527 = vld [vmem:[%s0 + $0xc] sm:$0xf]
    %v528 = vld [vmem:[%s0 + $0x10] sm:$0xf]
    %v529 = vld [vmem:[%s0 + $0x14] sm:$0xf]
    %v530 = vld [vmem:[%s0 + $0x18] sm:$0xf]
    %v531 = vld [vmem:[%s0 + $0x1c] sm:$0xf]
    %v532 = vld [vmem:[%s0 + $0x20] sm:$0xf]
    %v533 = vld [vmem:[%s0 + $0x24] sm:$0xf]
    %v534 = vld [vmem:[%s0 + $0x28] sm:$0xf]
    %v535 = vld [vmem:[%s0 + $0x2c] sm:$0xf]
    %v536 = vld [vmem:[%s0 + $0x30] sm:$0xf]
    %v537 = vld [vmem:[%s0 + $0x34] sm:$0xf]
    %v538 = vld [vmem:[%s0 + $0x38] sm:$0xf]
    %v539 = vld [vmem:[%s0 + $0x3c] sm:$0xf]
    %v556 = vunpack.c.l.b16 %v524
    %v557 = vunpack.c.l.b16 %v525
    %v558 = vunpack.c.l.b16 %v526
    %v559 = vunpack.c.l.b16 %v527
    %v560 = vunpack.c.l.b16 %v528
    %v561 = vunpack.c.l.b16 %v529
    %v562 = vunpack.c.l.b16 %v530
    %v563 = vunpack.c.l.b16 %v531
    %v564 = vunpack.c.l.b16 %v532
    %v565 = vunpack.c.l.b16 %v533
    %v566 = vunpack.c.l.b16 %v534
    %v567 = vunpack.c.l.b16 %v535
    %v568 = vunpack.c.l.b16 %v536
    %v569 = vunpack.c.l.b16 %v537
    %v570 = vunpack.c.l.b16 %v538
    %v571 = vunpack.c.l.b16 %v539
    %v572 = vpack.c.b16 %v557, %v556
    %v573 = vpack.c.b16 %v559, %v558
    %v574 = vpack.c.b16 %v561, %v560
    %v575 = vpack.c.b16 %v563, %v562
    %v576 = vpack.c.b16 %v565, %v564
    %v577 = vpack.c.b16 %v567, %v566
    %v578 = vpack.c.b16 %v569, %v568
    %v579 = vpack.c.b16 %v571, %v570
    %588 = vmatprep.subr.bf16.mxu0 0
    %589 = vmatpush1.bf16.msra.mxu0 %v572
    %590 = vmatprep.subr.bf16.mxu0 0
    %591 = vmatpush1.bf16.msra.mxu0 %v573
    %592 = vmatprep.subr.bf16.mxu0 0
    %593 = vmatpush1.bf16.msra.mxu0 %v574
    %594 = vmatprep.subr.bf16.mxu0 0
    %595 = vmatpush1.bf16.msra.mxu0 %v575
    %596 = vmatprep.subr.bf16.mxu0 0
    %597 = vmatpush1.bf16.msra.mxu0 %v576
    %598 = vmatprep.subr.bf16.mxu0 0
    %599 = vmatpush1.bf16.msra.mxu0 %v577
    %600 = vmatprep.subr.bf16.mxu0 0
    %601 = vmatpush1.bf16.msra.mxu0 %v578
    %602 = vmatprep.subr.bf16.mxu0 0
    %603 = vmatpush1.bf16.msra.mxu0 %v579
    %604 = vmatprep.subr.bf16.mxu0 0
    %605 = vmatpush1.bf16.msra.mxu0 0
    %606 = vmatprep.subr.bf16.mxu0 0
    %607 = vmatpush1.bf16.msra.mxu0 0
    %608 = vmatprep.subr.bf16.mxu0 0
    %609 = vmatpush1.bf16.msra.mxu0 0
    %610 = vmatprep.subr.bf16.mxu0 0
    %611 = vmatpush1.bf16.msra.mxu0 0
    %612 = vmatprep.subr.bf16.mxu0 0
    %613 = vmatpush1.bf16.msra.mxu0 0
    %614 = vmatprep.subr.bf16.mxu0 0
    %615 = vmatpush1.bf16.msra.mxu0 0
    %616 = vmatprep.subr.bf16.mxu0 0
    %617 = vmatpush1.bf16.msra.mxu0 0
    %618 = vmatprep.subr.bf16.mxu0 0
    %619 = vmatpush1.bf16.msra.mxu0 0
    %620 = vmatprep.mubr.bf16.mxu0 0
    %621 = vmatmul.mubr.bf16.gmra.mrb[0].mxu0 %v444
    %v622 = vpop.f32.mrb[0].mxu0
    %v623 = vadd.f32 0.0, %v622
    %v624 = vpop.f32.mrb[0].mxu0
    %v625 = vpop.f32.mrb[0].mxu0
    %v626 = vadd.f32 0.0, %v625
    %v627 = vpop.f32.mrb[0].mxu0
    %628 = vmatprep.mubr.bf16.mxu0 0
    %629 = vmatmul.mubr.bf16.gmra.mrb[0].mxu0 %v445
    %v630 = vpop.f32.mrb[0].mxu0
    %v631 = vadd.f32 0.0, %v630
    %v632 = vpop.f32.mrb[0].mxu0
    %v633 = vpop.f32.mrb[0].mxu0
    %v634 = vadd.f32 0.0, %v633
    %v635 = vpop.f32.mrb[0].mxu0
    %636 = vmatprep.mubr.bf16.mxu0 0
    %637 = vmatmul.mubr.bf16.gmra.mrb[0].mxu0 %v446
    %v638 = vpop.f32.mrb[0].mxu0
    %v639 = vadd.f32 0.0, %v638
    %v640 = vpop.f32.mrb[0].mxu0
    %v641 = vpop.f32.mrb[0].mxu0
    %v642 = vadd.f32 0.0, %v641
    %v643 = vpop.f32.mrb[0].mxu0
    %644 = vmatprep.mubr.bf16.mxu0 0
    %645 = vmatmul.mubr.bf16.gmra.mrb[0].mxu0 %v447
    %v646 = vpop.f32.mrb[0].mxu0
    %v647 = vadd.f32 0.0, %v646
    %v648 = vpop.f32.mrb[0].mxu0
    %v649 = vpop.f32.mrb[0].mxu0
    %v650 = vadd.f32 0.0, %v649
    %v651 = vpop.f32.mrb[0].mxu0
    %652 = vmatprep.mubr.bf16.mxu0 0
    %653 = vmatmul.mubr.bf16.gmra.mrb[0].mxu0 %v448
    %v654 = vpop.f32.mrb[0].mxu0
    %v655 = vadd.f32 0.0, %v654
    %v656 = vpop.f32.mrb[0].mxu0
    %v657 = vpop.f32.mrb[0].mxu0
    %v658 = vadd.f32 0.0, %v657
    %v659 = vpop.f32.mrb[0].mxu0
    %660 = vmatprep.mubr.bf16.mxu0 0
    %661 = vmatmul.mubr.bf16.gmra.mrb[0].mxu0 %v449
    %v662 = vpop.f32.mrb[0].mxu0
    %v663 = vadd.f32 0.0, %v662
    %v664 = vpop.f32.mrb[0].mxu0
    %v665 = vpop.f32.mrb[0].mxu0
    %v666 = vadd.f32 0.0, %v665
    %v667 = vpop.f32.mrb[0].mxu0
    %668 = vmatprep.mubr.bf16.mxu0 0
    %669 = vmatmul.mubr.bf16.gmra.mrb[0].mxu0 %v450
    %v670 = vpop.f32.mrb[0].mxu0
    %v671 = vadd.f32 0.0, %v670
    %v672 = vpop.f32.mrb[0].mxu0
    %v673 = vpop.f32.mrb[0].mxu0
    %v674 = vadd.f32 0.0, %v673
    %v675 = vpop.f32.mrb[0].mxu0
    %676 = vmatprep.mubr.bf16.mxu0 0
    %677 = vmatmul.mubr.bf16.gmra.mrb[0].mxu0 %v451
    %v678 = vpop.f32.mrb[0].mxu0
    %v679 = vadd.f32 0.0, %v678
    %v680 = vpop.f32.mrb[0].mxu0
    %v681 = vpop.f32.mrb[0].mxu0
    %v682 = vadd.f32 0.0, %v681
    %v683 = vpop.f32.mrb[0].mxu0
    %684 = vdwg.mxu0
    %v685 = vld [vmem:[%s2] sm:$0xff]
    %v686 = vld [vmem:[%s2 + $0x8] sm:$0xff]
    %v687 = vld [vmem:[%s2 + $0x10] sm:$0xff]
    %v688 = vld [vmem:[%s2 + $0x18] sm:$0xff]
    %v689 = vld [vmem:[%s2 + $0x20] sm:$0xff]
    %v690 = vld [vmem:[%s2 + $0x28] sm:$0xff]
    %v691 = vld [vmem:[%s2 + $0x30] sm:$0xff]
    %v692 = vld [vmem:[%s2 + $0x38] sm:$0xff]
    %v693 = vld [vmem:[%s2 + $0x40] sm:$0xff]
    %v694 = vld [vmem:[%s2 + $0x48] sm:$0xff]
    %v695 = vld [vmem:[%s2 + $0x50] sm:$0xff]
    %v696 = vld [vmem:[%s2 + $0x58] sm:$0xff]
    %v697 = vld [vmem:[%s2 + $0x60] sm:$0xff]
    %v698 = vld [vmem:[%s2 + $0x68] sm:$0xff]
    %v699 = vld [vmem:[%s2 + $0x70] sm:$0xff]
    %v700 = vld [vmem:[%s2 + $0x78] sm:$0xff]
    %702 = vset.pattern.permute.xlu0 1
    %703 = vperm.xlu0 %702, %v685
    %v704 = vpop.permute.xlu0 %703
    %707 = vset.pattern.permute.xlu0 1
    %708 = vperm.xlu0 %707, %v686
    %v709 = vpop.permute.xlu0 %708
    %712 = vset.pattern.permute.xlu0 1
    %713 = vperm.xlu0 %712, %v687
    %v714 = vpop.permute.xlu0 %713
    %717 = vset.pattern.permute.xlu0 1
    %718 = vperm.xlu0 %717, %v688
    %v719 = vpop.permute.xlu0 %718
    %722 = vset.pattern.permute.xlu0 1
    %723 = vperm.xlu0 %722, %v689
    %v724 = vpop.permute.xlu0 %723
    %727 = vset.pattern.permute.xlu0 1
    %728 = vperm.xlu0 %727, %v690
    %v729 = vpop.permute.xlu0 %728
    %732 = vset.pattern.permute.xlu0 1
    %733 = vperm.xlu0 %732, %v691
    %v734 = vpop.permute.xlu0 %733
    %737 = vset.pattern.permute.xlu0 1
    %738 = vperm.xlu0 %737, %v692
    %v739 = vpop.permute.xlu0 %738
    %742 = vset.pattern.permute.xlu0 1
    %743 = vperm.xlu0 %742, %v693
    %v744 = vpop.permute.xlu0 %743
    %747 = vset.pattern.permute.xlu0 1
    %748 = vperm.xlu0 %747, %v694
    %v749 = vpop.permute.xlu0 %748
    %752 = vset.pattern.permute.xlu0 1
    %753 = vperm.xlu0 %752, %v695
    %v754 = vpop.permute.xlu0 %753
    %757 = vset.pattern.permute.xlu0 1
    %758 = vperm.xlu0 %757, %v696
    %v759 = vpop.permute.xlu0 %758
    %762 = vset.pattern.permute.xlu0 1
    %763 = vperm.xlu0 %762, %v697
    %v764 = vpop.permute.xlu0 %763
    %767 = vset.pattern.permute.xlu0 1
    %768 = vperm.xlu0 %767, %v698
    %v769 = vpop.permute.xlu0 %768
    %772 = vset.pattern.permute.xlu0 1
    %773 = vperm.xlu0 %772, %v699
    %v774 = vpop.permute.xlu0 %773
    %777 = vset.pattern.permute.xlu0 1
    %778 = vperm.xlu0 %777, %v700
    %v779 = vpop.permute.xlu0 %778
    %v781 = vlaneseq
    %v782 = vshrl.u32 %v781, 7
    %v783 = vsub.s32 1, %v782
    %v784 = vrot.slane %v55, %v783
    %v785 = vadd.f32 %v704, %v784
    %v786 = vadd.f32 %v709, %v784
    %v787 = vadd.f32 %v714, %v784
    %v788 = vadd.f32 %v719, %v784
    %v789 = vadd.f32 %v724, %v784
    %v790 = vadd.f32 %v729, %v784
    %v791 = vadd.f32 %v734, %v784
    %v792 = vadd.f32 %v739, %v784
    %v793 = vadd.f32 %v744, %v784
    %v794 = vadd.f32 %v749, %v784
    %v795 = vadd.f32 %v754, %v784
    %v796 = vadd.f32 %v759, %v784
    %v797 = vadd.f32 %v764, %v784
    %v798 = vadd.f32 %v769, %v784
    %v799 = vadd.f32 %v774, %v784
    %v800 = vadd.f32 %v779, %v784
    %v801 = vmul.f32 %v785, 0.2
    %v802 = vmul.f32 %v786, 0.2
    %v803 = vmul.f32 %v787, 0.2
    %v804 = vmul.f32 %v788, 0.2
    %v805 = vmul.f32 %v789, 0.2
    %v806 = vmul.f32 %v790, 0.2
    %v807 = vmul.f32 %v791, 0.2
    %v808 = vmul.f32 %v792, 0.2
    %v809 = vmul.f32 %v793, 0.2
    %v810 = vmul.f32 %v794, 0.2
    %v811 = vmul.f32 %v795, 0.2
    %v812 = vmul.f32 %v796, 0.2
    %v813 = vmul.f32 %v797, 0.2
    %v814 = vmul.f32 %v798, 0.2
    %v815 = vmul.f32 %v799, 0.2
    %v816 = vmul.f32 %v800, 0.2
    %v817 = vmax.f32 %v785, %v801
    %v818 = vmax.f32 %v786, %v802
    %v819 = vmax.f32 %v787, %v803
    %v820 = vmax.f32 %v788, %v804
    %v821 = vmax.f32 %v789, %v805
    %v822 = vmax.f32 %v790, %v806
    %v823 = vmax.f32 %v791, %v807
    %v824 = vmax.f32 %v792, %v808
    %v825 = vmax.f32 %v793, %v809
    %v826 = vmax.f32 %v794, %v810
    %v827 = vmax.f32 %v795, %v811
    %v828 = vmax.f32 %v796, %v812
    %v829 = vmax.f32 %v797, %v813
    %v830 = vmax.f32 %v798, %v814
    %v831 = vmax.f32 %v799, %v815
    %v832 = vmax.f32 %v800, %v816
    %v833 = vsel %vm236, %v817, -1e+30
    %v834 = vsel %vm237, %v818, -1e+30
    %v835 = vsel %vm238, %v819, -1e+30
    %v836 = vsel %vm239, %v820, -1e+30
    %v837 = vsel %vm240, %v821, -1e+30
    %v838 = vsel %vm241, %v822, -1e+30
    %v839 = vsel %vm242, %v823, -1e+30
    %v840 = vsel %vm243, %v824, -1e+30
    %v841 = vsel %vm244, %v825, -1e+30
    %v842 = vsel %vm245, %v826, -1e+30
    %v843 = vsel %vm246, %v827, -1e+30
    %v844 = vsel %vm247, %v828, -1e+30
    %v845 = vsel %vm248, %v829, -1e+30
    %v846 = vsel %vm249, %v830, -1e+30
    %v847 = vsel %vm250, %v831, -1e+30
    %v848 = vsel %vm251, %v832, -1e+30
    %849 = vmax.xlane.f32.xlu0 %v833
    %v850 = vpop.xlane.xlu0 %849
    %851 = vmax.xlane.f32.xlu0 %v834
    %v852 = vpop.xlane.xlu0 %851
    %853 = vmax.xlane.f32.xlu0 %v835
    %v854 = vpop.xlane.xlu0 %853
    %855 = vmax.xlane.f32.xlu0 %v836
    %v856 = vpop.xlane.xlu0 %855
    %857 = vmax.xlane.f32.xlu0 %v837
    %v858 = vpop.xlane.xlu0 %857
    %859 = vmax.xlane.f32.xlu0 %v838
    %v860 = vpop.xlane.xlu0 %859
    %861 = vmax.xlane.f32.xlu0 %v839
    %v862 = vpop.xlane.xlu0 %861
    %863 = vmax.xlane.f32.xlu0 %v840
    %v864 = vpop.xlane.xlu0 %863
    %865 = vmax.xlane.f32.xlu0 %v841
    %v866 = vpop.xlane.xlu0 %865
    %867 = vmax.xlane.f32.xlu0 %v842
    %v868 = vpop.xlane.xlu0 %867
    %869 = vmax.xlane.f32.xlu0 %v843
    %v870 = vpop.xlane.xlu0 %869
    %871 = vmax.xlane.f32.xlu0 %v844
    %v872 = vpop.xlane.xlu0 %871
    %873 = vmax.xlane.f32.xlu0 %v845
    %v874 = vpop.xlane.xlu0 %873
    %875 = vmax.xlane.f32.xlu0 %v846
    %v876 = vpop.xlane.xlu0 %875
    %877 = vmax.xlane.f32.xlu0 %v847
    %v878 = vpop.xlane.xlu0 %877
    %879 = vmax.xlane.f32.xlu0 %v848
    %v880 = vpop.xlane.xlu0 %879
    %v881 = vsub.f32 %v833, %v850
    %v882 = vsub.f32 %v834, %v852
    %v883 = vsub.f32 %v835, %v854
    %v884 = vsub.f32 %v836, %v856
    %v885 = vsub.f32 %v837, %v858
    %v886 = vsub.f32 %v838, %v860
    %v887 = vsub.f32 %v839, %v862
    %v888 = vsub.f32 %v840, %v864
    %v889 = vsub.f32 %v841, %v866
    %v890 = vsub.f32 %v842, %v868
    %v891 = vsub.f32 %v843, %v870
    %v892 = vsub.f32 %v844, %v872
    %v893 = vsub.f32 %v845, %v874
    %v894 = vsub.f32 %v846, %v876
    %v895 = vsub.f32 %v847, %v878
    %v896 = vsub.f32 %v848, %v880
    %v897 = vmul.f32 %v881, 1.442695
    %v898 = vpow.pop %v897
    %v899 = vmul.f32 %v882, 1.442695
    %v900 = vpow.pop %v899
    %v901 = vmul.f32 %v883, 1.442695
    %v902 = vpow.pop %v901
    %v903 = vmul.f32 %v884, 1.442695
    %v904 = vpow.pop %v903
    %v905 = vmul.f32 %v885, 1.442695
    %v906 = vpow.pop %v905
    %v907 = vmul.f32 %v886, 1.442695
    %v908 = vpow.pop %v907
    %v909 = vmul.f32 %v887, 1.442695
    %v910 = vpow.pop %v909
    %v911 = vmul.f32 %v888, 1.442695
    %v912 = vpow.pop %v911
    %v913 = vmul.f32 %v889, 1.442695
    %v914 = vpow.pop %v913
    %v915 = vmul.f32 %v890, 1.442695
    %v916 = vpow.pop %v915
    %v917 = vmul.f32 %v891, 1.442695
    %v918 = vpow.pop %v917
    %v919 = vmul.f32 %v892, 1.442695
    %v920 = vpow.pop %v919
    %v921 = vmul.f32 %v893, 1.442695
    %v922 = vpow.pop %v921
    %v923 = vmul.f32 %v894, 1.442695
    %v924 = vpow.pop %v923
    %v925 = vmul.f32 %v895, 1.442695
    %v926 = vpow.pop %v925
    %v927 = vmul.f32 %v896, 1.442695
    %v928 = vpow.pop %v927
    %v929 = vsel %vm236, %v898, 0.0
    %v930 = vsel %vm237, %v900, 0.0
    %v931 = vsel %vm238, %v902, 0.0
    %v932 = vsel %vm239, %v904, 0.0
    %v933 = vsel %vm240, %v906, 0.0
    %v934 = vsel %vm241, %v908, 0.0
    %v935 = vsel %vm242, %v910, 0.0
    %v936 = vsel %vm243, %v912, 0.0
    %v937 = vsel %vm244, %v914, 0.0
    %v938 = vsel %vm245, %v916, 0.0
    %v939 = vsel %vm246, %v918, 0.0
    %v940 = vsel %vm247, %v920, 0.0
    %v941 = vsel %vm248, %v922, 0.0
    %v942 = vsel %vm249, %v924, 0.0
    %v943 = vsel %vm250, %v926, 0.0
    %v944 = vsel %vm251, %v928, 0.0
    %945 = vadd.xlane.f32.xlu0 %v929
    %v946 = vpop.xlane.xlu0 %945
    %947 = vadd.xlane.f32.xlu0 %v930
    %v948 = vpop.xlane.xlu0 %947
    %949 = vadd.xlane.f32.xlu0 %v931
    %v950 = vpop.xlane.xlu0 %949
    %951 = vadd.xlane.f32.xlu0 %v932
    %v952 = vpop.xlane.xlu0 %951
    %953 = vadd.xlane.f32.xlu0 %v933
    %v954 = vpop.xlane.xlu0 %953
    %955 = vadd.xlane.f32.xlu0 %v934
    %v956 = vpop.xlane.xlu0 %955
    %957 = vadd.xlane.f32.xlu0 %v935
    %v958 = vpop.xlane.xlu0 %957
    %959 = vadd.xlane.f32.xlu0 %v936
    %v960 = vpop.xlane.xlu0 %959
    %961 = vadd.xlane.f32.xlu0 %v937
    %v962 = vpop.xlane.xlu0 %961
    %963 = vadd.xlane.f32.xlu0 %v938
    %v964 = vpop.xlane.xlu0 %963
    %965 = vadd.xlane.f32.xlu0 %v939
    %v966 = vpop.xlane.xlu0 %965
    %967 = vadd.xlane.f32.xlu0 %v940
    %v968 = vpop.xlane.xlu0 %967
    %969 = vadd.xlane.f32.xlu0 %v941
    %v970 = vpop.xlane.xlu0 %969
    %971 = vadd.xlane.f32.xlu0 %v942
    %v972 = vpop.xlane.xlu0 %971
    %973 = vadd.xlane.f32.xlu0 %v943
    %v974 = vpop.xlane.xlu0 %973
    %975 = vadd.xlane.f32.xlu0 %v944
    %v976 = vpop.xlane.xlu0 %975
    %v977 = vmax.f32 %v946, 1e-30
    %v978 = vmax.f32 %v948, 1e-30
    %v979 = vmax.f32 %v950, 1e-30
    %v980 = vmax.f32 %v952, 1e-30
    %v981 = vmax.f32 %v954, 1e-30
    %v982 = vmax.f32 %v956, 1e-30
    %v983 = vmax.f32 %v958, 1e-30
    %v984 = vmax.f32 %v960, 1e-30
    %v985 = vmax.f32 %v962, 1e-30
    %v986 = vmax.f32 %v964, 1e-30
    %v987 = vmax.f32 %v966, 1e-30
    %v988 = vmax.f32 %v968, 1e-30
    %v989 = vmax.f32 %v970, 1e-30
    %v990 = vmax.f32 %v972, 1e-30
    %v991 = vmax.f32 %v974, 1e-30
    %v992 = vmax.f32 %v976, 1e-30
    %v993 = vrcp.pop %v977
    %v994 = vrcp.pop %v978
    %v995 = vrcp.pop %v979
    %v996 = vrcp.pop %v980
    %v997 = vrcp.pop %v981
    %v998 = vrcp.pop %v982
    %v999 = vrcp.pop %v983
    %v1000 = vrcp.pop %v984
    %v1001 = vrcp.pop %v985
    %v1002 = vrcp.pop %v986
    %v1003 = vrcp.pop %v987
    %v1004 = vrcp.pop %v988
    %v1005 = vrcp.pop %v989
    %v1006 = vrcp.pop %v990
    %v1007 = vrcp.pop %v991
    %v1008 = vrcp.pop %v992
    %v1009 = vmul.f32 %v929, %v993
    %v1010 = vmul.f32 %v930, %v994
    %v1011 = vmul.f32 %v931, %v995
    %v1012 = vmul.f32 %v932, %v996
    %v1013 = vmul.f32 %v933, %v997
    %v1014 = vmul.f32 %v934, %v998
    %v1015 = vmul.f32 %v935, %v999
    %v1016 = vmul.f32 %v936, %v1000
    %v1017 = vmul.f32 %v937, %v1001
    %v1018 = vmul.f32 %v938, %v1002
    %v1019 = vmul.f32 %v939, %v1003
    %v1020 = vmul.f32 %v940, %v1004
    %v1021 = vmul.f32 %v941, %v1005
    %v1022 = vmul.f32 %v942, %v1006
    %v1023 = vmul.f32 %v943, %v1007
    %v1024 = vmul.f32 %v944, %v1008
    %v1025 = vpack.c.bf16 %v1010, %v1009
    %v1026 = vpack.c.bf16 %v1012, %v1011
    %v1027 = vpack.c.bf16 %v1014, %v1013
    %v1028 = vpack.c.bf16 %v1016, %v1015
    %v1029 = vpack.c.bf16 %v1018, %v1017
    %v1030 = vpack.c.bf16 %v1020, %v1019
    %v1031 = vpack.c.bf16 %v1022, %v1021
    %v1032 = vpack.c.bf16 %v1024, %v1023
    %v1041 = vunpack.c.l.b16 %v1025
    %v1042 = vunpack.c.h.b16 %v1025
    %v1043 = vunpack.c.l.b16 %v1026
    %v1044 = vunpack.c.h.b16 %v1026
    %v1045 = vunpack.c.l.b16 %v1027
    %v1046 = vunpack.c.h.b16 %v1027
    %v1047 = vunpack.c.l.b16 %v1028
    %v1048 = vunpack.c.h.b16 %v1028
    %v1049 = vunpack.c.l.b16 %v1029
    %v1050 = vunpack.c.h.b16 %v1029
    %v1051 = vunpack.c.l.b16 %v1030
    %v1052 = vunpack.c.h.b16 %v1030
    %v1053 = vunpack.c.l.b16 %v1031
    %v1054 = vunpack.c.h.b16 %v1031
    %v1055 = vunpack.c.l.b16 %v1032
    %v1056 = vunpack.c.h.b16 %v1032
    %v1057 = vpack.c.b16 %v1041, %v1041
    %v1058 = vpack.c.b16 %v1042, %v1042
    %v1059 = vpack.c.b16 %v1043, %v1043
    %v1060 = vpack.c.b16 %v1044, %v1044
    %v1061 = vpack.c.b16 %v1045, %v1045
    %v1062 = vpack.c.b16 %v1046, %v1046
    %v1063 = vpack.c.b16 %v1047, %v1047
    %v1064 = vpack.c.b16 %v1048, %v1048
    %v1065 = vpack.c.b16 %v1049, %v1049
    %v1066 = vpack.c.b16 %v1050, %v1050
    %v1067 = vpack.c.b16 %v1051, %v1051
    %v1068 = vpack.c.b16 %v1052, %v1052
    %v1069 = vpack.c.b16 %v1053, %v1053
    %v1070 = vpack.c.b16 %v1054, %v1054
    %v1071 = vpack.c.b16 %v1055, %v1055
    %v1072 = vpack.c.b16 %v1056, %v1056
    %s1089 = scalar_lea.vmem [#allocation2], 64
    %1090 = vst [vmem:[%s1089] sm:$0xf] %v1057
    %1091 = vst [vmem:[%s1089 + $0x4] sm:$0xf] %v1058
    %1092 = vst [vmem:[%s1089 + $0x8] sm:$0xf] %v1059
    %1093 = vst [vmem:[%s1089 + $0xc] sm:$0xf] %v1060
    %1094 = vst [vmem:[%s1089 + $0x10] sm:$0xf] %v1061
    %1095 = vst [vmem:[%s1089 + $0x14] sm:$0xf] %v1062
    %1096 = vst [vmem:[%s1089 + $0x18] sm:$0xf] %v1063
    %1097 = vst [vmem:[%s1089 + $0x1c] sm:$0xf] %v1064
    %1098 = vst [vmem:[%s1089 + $0x20] sm:$0xf] %v1065
    %1099 = vst [vmem:[%s1089 + $0x24] sm:$0xf] %v1066
    %1100 = vst [vmem:[%s1089 + $0x28] sm:$0xf] %v1067
    %1101 = vst [vmem:[%s1089 + $0x2c] sm:$0xf] %v1068
    %1102 = vst [vmem:[%s1089 + $0x30] sm:$0xf] %v1069
    %1103 = vst [vmem:[%s1089 + $0x34] sm:$0xf] %v1070
    %1104 = vst [vmem:[%s1089 + $0x38] sm:$0xf] %v1071
    %1105 = vst [vmem:[%s1089 + $0x3c] sm:$0xf] %v1072
    %v1106 = vld [vmem:[%s0] sm:$0xf]
    %v1107 = vld [vmem:[%s0 + $0x4] sm:$0xf]
    %v1108 = vld [vmem:[%s0 + $0x8] sm:$0xf]
    %v1109 = vld [vmem:[%s0 + $0xc] sm:$0xf]
    %v1110 = vld [vmem:[%s0 + $0x10] sm:$0xf]
    %v1111 = vld [vmem:[%s0 + $0x14] sm:$0xf]
    %v1112 = vld [vmem:[%s0 + $0x18] sm:$0xf]
    %v1113 = vld [vmem:[%s0 + $0x1c] sm:$0xf]
    %v1114 = vld [vmem:[%s0 + $0x20] sm:$0xf]
    %v1115 = vld [vmem:[%s0 + $0x24] sm:$0xf]
    %v1116 = vld [vmem:[%s0 + $0x28] sm:$0xf]
    %v1117 = vld [vmem:[%s0 + $0x2c] sm:$0xf]
    %v1118 = vld [vmem:[%s0 + $0x30] sm:$0xf]
    %v1119 = vld [vmem:[%s0 + $0x34] sm:$0xf]
    %v1120 = vld [vmem:[%s0 + $0x38] sm:$0xf]
    %v1121 = vld [vmem:[%s0 + $0x3c] sm:$0xf]
    %v1138 = vunpack.c.l.b16 %v1106
    %v1139 = vunpack.c.l.b16 %v1107
    %v1140 = vunpack.c.l.b16 %v1108
    %v1141 = vunpack.c.l.b16 %v1109
    %v1142 = vunpack.c.l.b16 %v1110
    %v1143 = vunpack.c.l.b16 %v1111
    %v1144 = vunpack.c.l.b16 %v1112
    %v1145 = vunpack.c.l.b16 %v1113
    %v1146 = vunpack.c.l.b16 %v1114
    %v1147 = vunpack.c.l.b16 %v1115
    %v1148 = vunpack.c.l.b16 %v1116
    %v1149 = vunpack.c.l.b16 %v1117
    %v1150 = vunpack.c.l.b16 %v1118
    %v1151 = vunpack.c.l.b16 %v1119
    %v1152 = vunpack.c.l.b16 %v1120
    %v1153 = vunpack.c.l.b16 %v1121
    %v1154 = vpack.c.b16 %v1139, %v1138
    %v1155 = vpack.c.b16 %v1141, %v1140
    %v1156 = vpack.c.b16 %v1143, %v1142
    %v1157 = vpack.c.b16 %v1145, %v1144
    %v1158 = vpack.c.b16 %v1147, %v1146
    %v1159 = vpack.c.b16 %v1149, %v1148
    %v1160 = vpack.c.b16 %v1151, %v1150
    %v1161 = vpack.c.b16 %v1153, %v1152
    %1162 = vrot.lane.b32.xlu0 %v1154, 96
    %v1163 = vpop.permute.xlu0 %1162
    %1164 = vrot.lane.b32.xlu0 %v1155, 96
    %v1165 = vpop.permute.xlu0 %1164
    %1166 = vrot.lane.b32.xlu0 %v1156, 96
    %v1167 = vpop.permute.xlu0 %1166
    %1168 = vrot.lane.b32.xlu0 %v1157, 96
    %v1169 = vpop.permute.xlu0 %1168
    %1170 = vrot.lane.b32.xlu0 %v1158, 96
    %v1171 = vpop.permute.xlu0 %1170
    %1172 = vrot.lane.b32.xlu0 %v1159, 96
    %v1173 = vpop.permute.xlu0 %1172
    %1174 = vrot.lane.b32.xlu0 %v1160, 96
    %v1175 = vpop.permute.xlu0 %1174
    %1176 = vrot.lane.b32.xlu0 %v1161, 96
    %v1177 = vpop.permute.xlu0 %1176
    %1186 = vmatprep.subr.bf16.mxu0 0
    %1187 = vmatpush1.bf16.msra.mxu0 %v1163
    %1188 = vmatprep.subr.bf16.mxu0 0
    %1189 = vmatpush1.bf16.msra.mxu0 %v1165
    %1190 = vmatprep.subr.bf16.mxu0 0
    %1191 = vmatpush1.bf16.msra.mxu0 %v1167
    %1192 = vmatprep.subr.bf16.mxu0 0
    %1193 = vmatpush1.bf16.msra.mxu0 %v1169
    %1194 = vmatprep.subr.bf16.mxu0 0
    %1195 = vmatpush1.bf16.msra.mxu0 %v1171
    %1196 = vmatprep.subr.bf16.mxu0 0
    %1197 = vmatpush1.bf16.msra.mxu0 %v1173
    %1198 = vmatprep.subr.bf16.mxu0 0
    %1199 = vmatpush1.bf16.msra.mxu0 %v1175
    %1200 = vmatprep.subr.bf16.mxu0 0
    %1201 = vmatpush1.bf16.msra.mxu0 %v1177
    %1202 = vmatprep.subr.bf16.mxu0 0
    %1203 = vmatpush1.bf16.msra.mxu0 0
    %1204 = vmatprep.subr.bf16.mxu0 0
    %1205 = vmatpush1.bf16.msra.mxu0 0
    %1206 = vmatprep.subr.bf16.mxu0 0
    %1207 = vmatpush1.bf16.msra.mxu0 0
    %1208 = vmatprep.subr.bf16.mxu0 0
    %1209 = vmatpush1.bf16.msra.mxu0 0
    %1210 = vmatprep.subr.bf16.mxu0 0
    %1211 = vmatpush1.bf16.msra.mxu0 0
    %1212 = vmatprep.subr.bf16.mxu0 0
    %1213 = vmatpush1.bf16.msra.mxu0 0
    %1214 = vmatprep.subr.bf16.mxu0 0
    %1215 = vmatpush1.bf16.msra.mxu0 0
    %1216 = vmatprep.subr.bf16.mxu0 0
    %1217 = vmatpush1.bf16.msra.mxu0 0
    %1218 = vmatprep.mubr.bf16.mxu0 0
    %1219 = vmatmul.mubr.bf16.gmra.mrb[0].mxu0 %v1025
    %v1220 = vpop.f32.mrb[0].mxu0
    %v1221 = vadd.f32 0.0, %v1220
    %v1222 = vpop.f32.mrb[0].mxu0
    %v1223 = vpop.f32.mrb[0].mxu0
    %v1224 = vadd.f32 0.0, %v1223
    %v1225 = vpop.f32.mrb[0].mxu0
    %1226 = vmatprep.mubr.bf16.mxu0 0
    %1227 = vmatmul.mubr.bf16.gmra.mrb[0].mxu0 %v1026
    %v1228 = vpop.f32.mrb[0].mxu0
    %v1229 = vadd.f32 0.0, %v1228
    %v1230 = vpop.f32.mrb[0].mxu0
    %v1231 = vpop.f32.mrb[0].mxu0
    %v1232 = vadd.f32 0.0, %v1231
    %v1233 = vpop.f32.mrb[0].mxu0
    %1234 = vmatprep.mubr.bf16.mxu0 0
    %1235 = vmatmul.mubr.bf16.gmra.mrb[0].mxu0 %v1027
    %v1236 = vpop.f32.mrb[0].mxu0
    %v1237 = vadd.f32 0.0, %v1236
    %v1238 = vpop.f32.mrb[0].mxu0
    %v1239 = vpop.f32.mrb[0].mxu0
    %v1240 = vadd.f32 0.0, %v1239
    %v1241 = vpop.f32.mrb[0].mxu0
    %1242 = vmatprep.mubr.bf16.mxu0 0
    %1243 = vmatmul.mubr.bf16.gmra.mrb[0].mxu0 %v1028
    %v1244 = vpop.f32.mrb[0].mxu0
    %v1245 = vadd.f32 0.0, %v1244
    %v1246 = vpop.f32.mrb[0].mxu0
    %v1247 = vpop.f32.mrb[0].mxu0
    %v1248 = vadd.f32 0.0, %v1247
    %v1249 = vpop.f32.mrb[0].mxu0
    %1250 = vmatprep.mubr.bf16.mxu0 0
    %1251 = vmatmul.mubr.bf16.gmra.mrb[0].mxu0 %v1029
    %v1252 = vpop.f32.mrb[0].mxu0
    %v1253 = vadd.f32 0.0, %v1252
    %v1254 = vpop.f32.mrb[0].mxu0
    %v1255 = vpop.f32.mrb[0].mxu0
    %v1256 = vadd.f32 0.0, %v1255
    %v1257 = vpop.f32.mrb[0].mxu0
    %1258 = vmatprep.mubr.bf16.mxu0 0
    %1259 = vmatmul.mubr.bf16.gmra.mrb[0].mxu0 %v1030
    %v1260 = vpop.f32.mrb[0].mxu0
    %v1261 = vadd.f32 0.0, %v1260
    %v1262 = vpop.f32.mrb[0].mxu0
    %v1263 = vpop.f32.mrb[0].mxu0
    %v1264 = vadd.f32 0.0, %v1263
    %v1265 = vpop.f32.mrb[0].mxu0
    %1266 = vmatprep.mubr.bf16.mxu0 0
    %1267 = vmatmul.mubr.bf16.gmra.mrb[0].mxu0 %v1031
    %v1268 = vpop.f32.mrb[0].mxu0
    %v1269 = vadd.f32 0.0, %v1268
    %v1270 = vpop.f32.mrb[0].mxu0
    %v1271 = vpop.f32.mrb[0].mxu0
    %v1272 = vadd.f32 0.0, %v1271
    %v1273 = vpop.f32.mrb[0].mxu0
    %1274 = vmatprep.mubr.bf16.mxu0 0
    %1275 = vmatmul.mubr.bf16.gmra.mrb[0].mxu0 %v1032
    %v1276 = vpop.f32.mrb[0].mxu0
    %v1277 = vadd.f32 0.0, %v1276
    %v1278 = vpop.f32.mrb[0].mxu0
    %v1279 = vpop.f32.mrb[0].mxu0
    %v1280 = vadd.f32 0.0, %v1279
    %v1281 = vpop.f32.mrb[0].mxu0
    %1282 = vdwg.mxu0
    %v1283 = vld [vmem:[%s2] sm:$0xff]
    %v1284 = vld [vmem:[%s2 + $0x8] sm:$0xff]
    %v1285 = vld [vmem:[%s2 + $0x10] sm:$0xff]
    %v1286 = vld [vmem:[%s2 + $0x18] sm:$0xff]
    %v1287 = vld [vmem:[%s2 + $0x20] sm:$0xff]
    %v1288 = vld [vmem:[%s2 + $0x28] sm:$0xff]
    %v1289 = vld [vmem:[%s2 + $0x30] sm:$0xff]
    %v1290 = vld [vmem:[%s2 + $0x38] sm:$0xff]
    %v1291 = vld [vmem:[%s2 + $0x40] sm:$0xff]
    %v1292 = vld [vmem:[%s2 + $0x48] sm:$0xff]
    %v1293 = vld [vmem:[%s2 + $0x50] sm:$0xff]
    %v1294 = vld [vmem:[%s2 + $0x58] sm:$0xff]
    %v1295 = vld [vmem:[%s2 + $0x60] sm:$0xff]
    %v1296 = vld [vmem:[%s2 + $0x68] sm:$0xff]
    %v1297 = vld [vmem:[%s2 + $0x70] sm:$0xff]
    %v1298 = vld [vmem:[%s2 + $0x78] sm:$0xff]
    %1300 = vset.pattern.permute.xlu0 2
    %1301 = vperm.xlu0 %1300, %v1283
    %v1302 = vpop.permute.xlu0 %1301
    %1305 = vset.pattern.permute.xlu0 2
    %1306 = vperm.xlu0 %1305, %v1284
    %v1307 = vpop.permute.xlu0 %1306
    %1310 = vset.pattern.permute.xlu0 2
    %1311 = vperm.xlu0 %1310, %v1285
    %v1312 = vpop.permute.xlu0 %1311
    %1315 = vset.pattern.permute.xlu0 2
    %1316 = vperm.xlu0 %1315, %v1286
    %v1317 = vpop.permute.xlu0 %1316
    %1320 = vset.pattern.permute.xlu0 2
    %1321 = vperm.xlu0 %1320, %v1287
    %v1322 = vpop.permute.xlu0 %1321
    %1325 = vset.pattern.permute.xlu0 2
    %1326 = vperm.xlu0 %1325, %v1288
    %v1327 = vpop.permute.xlu0 %1326
    %1330 = vset.pattern.permute.xlu0 2
    %1331 = vperm.xlu0 %1330, %v1289
    %v1332 = vpop.permute.xlu0 %1331
    %1335 = vset.pattern.permute.xlu0 2
    %1336 = vperm.xlu0 %1335, %v1290
    %v1337 = vpop.permute.xlu0 %1336
    %1340 = vset.pattern.permute.xlu0 2
    %1341 = vperm.xlu0 %1340, %v1291
    %v1342 = vpop.permute.xlu0 %1341
    %1345 = vset.pattern.permute.xlu0 2
    %1346 = vperm.xlu0 %1345, %v1292
    %v1347 = vpop.permute.xlu0 %1346
    %1350 = vset.pattern.permute.xlu0 2
    %1351 = vperm.xlu0 %1350, %v1293
    %v1352 = vpop.permute.xlu0 %1351
    %1355 = vset.pattern.permute.xlu0 2
    %1356 = vperm.xlu0 %1355, %v1294
    %v1357 = vpop.permute.xlu0 %1356
    %1360 = vset.pattern.permute.xlu0 2
    %1361 = vperm.xlu0 %1360, %v1295
    %v1362 = vpop.permute.xlu0 %1361
    %1365 = vset.pattern.permute.xlu0 2
    %1366 = vperm.xlu0 %1365, %v1296
    %v1367 = vpop.permute.xlu0 %1366
    %1370 = vset.pattern.permute.xlu0 2
    %1371 = vperm.xlu0 %1370, %v1297
    %v1372 = vpop.permute.xlu0 %1371
    %1375 = vset.pattern.permute.xlu0 2
    %1376 = vperm.xlu0 %1375, %v1298
    %v1377 = vpop.permute.xlu0 %1376
    %v1379 = vlaneseq
    %v1380 = vshrl.u32 %v1379, 7
    %v1381 = vsub.s32 2, %v1380
    %v1382 = vrot.slane %v55, %v1381
    %v1383 = vadd.f32 %v1302, %v1382
    %v1384 = vadd.f32 %v1307, %v1382
    %v1385 = vadd.f32 %v1312, %v1382
    %v1386 = vadd.f32 %v1317, %v1382
    %v1387 = vadd.f32 %v1322, %v1382
    %v1388 = vadd.f32 %v1327, %v1382
    %v1389 = vadd.f32 %v1332, %v1382
    %v1390 = vadd.f32 %v1337, %v1382
    %v1391 = vadd.f32 %v1342, %v1382
    %v1392 = vadd.f32 %v1347, %v1382
    %v1393 = vadd.f32 %v1352, %v1382
    %v1394 = vadd.f32 %v1357, %v1382
    %v1395 = vadd.f32 %v1362, %v1382
    %v1396 = vadd.f32 %v1367, %v1382
    %v1397 = vadd.f32 %v1372, %v1382
    %v1398 = vadd.f32 %v1377, %v1382
    %v1399 = vmul.f32 %v1383, 0.2
    %v1400 = vmul.f32 %v1384, 0.2
    %v1401 = vmul.f32 %v1385, 0.2
    %v1402 = vmul.f32 %v1386, 0.2
    %v1403 = vmul.f32 %v1387, 0.2
    %v1404 = vmul.f32 %v1388, 0.2
    %v1405 = vmul.f32 %v1389, 0.2
    %v1406 = vmul.f32 %v1390, 0.2
    %v1407 = vmul.f32 %v1391, 0.2
    %v1408 = vmul.f32 %v1392, 0.2
    %v1409 = vmul.f32 %v1393, 0.2
    %v1410 = vmul.f32 %v1394, 0.2
    %v1411 = vmul.f32 %v1395, 0.2
    %v1412 = vmul.f32 %v1396, 0.2
    %v1413 = vmul.f32 %v1397, 0.2
    %v1414 = vmul.f32 %v1398, 0.2
    %v1415 = vmax.f32 %v1383, %v1399
    %v1416 = vmax.f32 %v1384, %v1400
    %v1417 = vmax.f32 %v1385, %v1401
    %v1418 = vmax.f32 %v1386, %v1402
    %v1419 = vmax.f32 %v1387, %v1403
    %v1420 = vmax.f32 %v1388, %v1404
    %v1421 = vmax.f32 %v1389, %v1405
    %v1422 = vmax.f32 %v1390, %v1406
    %v1423 = vmax.f32 %v1391, %v1407
    %v1424 = vmax.f32 %v1392, %v1408
    %v1425 = vmax.f32 %v1393, %v1409
    %v1426 = vmax.f32 %v1394, %v1410
    %v1427 = vmax.f32 %v1395, %v1411
    %v1428 = vmax.f32 %v1396, %v1412
    %v1429 = vmax.f32 %v1397, %v1413
    %v1430 = vmax.f32 %v1398, %v1414
    %v1431 = vsel %vm236, %v1415, -1e+30
    %v1432 = vsel %vm237, %v1416, -1e+30
    %v1433 = vsel %vm238, %v1417, -1e+30
    %v1434 = vsel %vm239, %v1418, -1e+30
    %v1435 = vsel %vm240, %v1419, -1e+30
    %v1436 = vsel %vm241, %v1420, -1e+30
    %v1437 = vsel %vm242, %v1421, -1e+30
    %v1438 = vsel %vm243, %v1422, -1e+30
    %v1439 = vsel %vm244, %v1423, -1e+30
    %v1440 = vsel %vm245, %v1424, -1e+30
    %v1441 = vsel %vm246, %v1425, -1e+30
    %v1442 = vsel %vm247, %v1426, -1e+30
    %v1443 = vsel %vm248, %v1427, -1e+30
    %v1444 = vsel %vm249, %v1428, -1e+30
    %v1445 = vsel %vm250, %v1429, -1e+30
    %v1446 = vsel %vm251, %v1430, -1e+30
    %1447 = vmax.xlane.f32.xlu0 %v1431
    %v1448 = vpop.xlane.xlu0 %1447
    %1449 = vmax.xlane.f32.xlu0 %v1432
    %v1450 = vpop.xlane.xlu0 %1449
    %1451 = vmax.xlane.f32.xlu0 %v1433
    %v1452 = vpop.xlane.xlu0 %1451
    %1453 = vmax.xlane.f32.xlu0 %v1434
    %v1454 = vpop.xlane.xlu0 %1453
    %1455 = vmax.xlane.f32.xlu0 %v1435
    %v1456 = vpop.xlane.xlu0 %1455
    %1457 = vmax.xlane.f32.xlu0 %v1436
    %v1458 = vpop.xlane.xlu0 %1457
    %1459 = vmax.xlane.f32.xlu0 %v1437
    %v1460 = vpop.xlane.xlu0 %1459
    %1461 = vmax.xlane.f32.xlu0 %v1438
    %v1462 = vpop.xlane.xlu0 %1461
    %1463 = vmax.xlane.f32.xlu0 %v1439
    %v1464 = vpop.xlane.xlu0 %1463
    %1465 = vmax.xlane.f32.xlu0 %v1440
    %v1466 = vpop.xlane.xlu0 %1465
    %1467 = vmax.xlane.f32.xlu0 %v1441
    %v1468 = vpop.xlane.xlu0 %1467
    %1469 = vmax.xlane.f32.xlu0 %v1442
    %v1470 = vpop.xlane.xlu0 %1469
    %1471 = vmax.xlane.f32.xlu0 %v1443
    %v1472 = vpop.xlane.xlu0 %1471
    %1473 = vmax.xlane.f32.xlu0 %v1444
    %v1474 = vpop.xlane.xlu0 %1473
    %1475 = vmax.xlane.f32.xlu0 %v1445
    %v1476 = vpop.xlane.xlu0 %1475
    %1477 = vmax.xlane.f32.xlu0 %v1446
    %v1478 = vpop.xlane.xlu0 %1477
    %v1479 = vsub.f32 %v1431, %v1448
    %v1480 = vsub.f32 %v1432, %v1450
    %v1481 = vsub.f32 %v1433, %v1452
    %v1482 = vsub.f32 %v1434, %v1454
    %v1483 = vsub.f32 %v1435, %v1456
    %v1484 = vsub.f32 %v1436, %v1458
    %v1485 = vsub.f32 %v1437, %v1460
    %v1486 = vsub.f32 %v1438, %v1462
    %v1487 = vsub.f32 %v1439, %v1464
    %v1488 = vsub.f32 %v1440, %v1466
    %v1489 = vsub.f32 %v1441, %v1468
    %v1490 = vsub.f32 %v1442, %v1470
    %v1491 = vsub.f32 %v1443, %v1472
    %v1492 = vsub.f32 %v1444, %v1474
    %v1493 = vsub.f32 %v1445, %v1476
    %v1494 = vsub.f32 %v1446, %v1478
    %v1495 = vmul.f32 %v1479, 1.442695
    %v1496 = vpow.pop %v1495
    %v1497 = vmul.f32 %v1480, 1.442695
    %v1498 = vpow.pop %v1497
    %v1499 = vmul.f32 %v1481, 1.442695
    %v1500 = vpow.pop %v1499
    %v1501 = vmul.f32 %v1482, 1.442695
    %v1502 = vpow.pop %v1501
    %v1503 = vmul.f32 %v1483, 1.442695
    %v1504 = vpow.pop %v1503
    %v1505 = vmul.f32 %v1484, 1.442695
    %v1506 = vpow.pop %v1505
    %v1507 = vmul.f32 %v1485, 1.442695
    %v1508 = vpow.pop %v1507
    %v1509 = vmul.f32 %v1486, 1.442695
    %v1510 = vpow.pop %v1509
    %v1511 = vmul.f32 %v1487, 1.442695
    %v1512 = vpow.pop %v1511
    %v1513 = vmul.f32 %v1488, 1.442695
    %v1514 = vpow.pop %v1513
    %v1515 = vmul.f32 %v1489, 1.442695
    %v1516 = vpow.pop %v1515
    %v1517 = vmul.f32 %v1490, 1.442695
    %v1518 = vpow.pop %v1517
    %v1519 = vmul.f32 %v1491, 1.442695
    %v1520 = vpow.pop %v1519
    %v1521 = vmul.f32 %v1492, 1.442695
    %v1522 = vpow.pop %v1521
    %v1523 = vmul.f32 %v1493, 1.442695
    %v1524 = vpow.pop %v1523
    %v1525 = vmul.f32 %v1494, 1.442695
    %v1526 = vpow.pop %v1525
    %v1527 = vsel %vm236, %v1496, 0.0
    %v1528 = vsel %vm237, %v1498, 0.0
    %v1529 = vsel %vm238, %v1500, 0.0
    %v1530 = vsel %vm239, %v1502, 0.0
    %v1531 = vsel %vm240, %v1504, 0.0
    %v1532 = vsel %vm241, %v1506, 0.0
    %v1533 = vsel %vm242, %v1508, 0.0
    %v1534 = vsel %vm243, %v1510, 0.0
    %v1535 = vsel %vm244, %v1512, 0.0
    %v1536 = vsel %vm245, %v1514, 0.0
    %v1537 = vsel %vm246, %v1516, 0.0
    %v1538 = vsel %vm247, %v1518, 0.0
    %v1539 = vsel %vm248, %v1520, 0.0
    %v1540 = vsel %vm249, %v1522, 0.0
    %v1541 = vsel %vm250, %v1524, 0.0
    %v1542 = vsel %vm251, %v1526, 0.0
    %1543 = vadd.xlane.f32.xlu0 %v1527
    %v1544 = vpop.xlane.xlu0 %1543
    %1545 = vadd.xlane.f32.xlu0 %v1528
    %v1546 = vpop.xlane.xlu0 %1545
    %1547 = vadd.xlane.f32.xlu0 %v1529
    %v1548 = vpop.xlane.xlu0 %1547
    %1549 = vadd.xlane.f32.xlu0 %v1530
    %v1550 = vpop.xlane.xlu0 %1549
    %1551 = vadd.xlane.f32.xlu0 %v1531
    %v1552 = vpop.xlane.xlu0 %1551
    %1553 = vadd.xlane.f32.xlu0 %v1532
    %v1554 = vpop.xlane.xlu0 %1553
    %1555 = vadd.xlane.f32.xlu0 %v1533
    %v1556 = vpop.xlane.xlu0 %1555
    %1557 = vadd.xlane.f32.xlu0 %v1534
    %v1558 = vpop.xlane.xlu0 %1557
    %1559 = vadd.xlane.f32.xlu0 %v1535
    %v1560 = vpop.xlane.xlu0 %1559
    %1561 = vadd.xlane.f32.xlu0 %v1536
    %v1562 = vpop.xlane.xlu0 %1561
    %1563 = vadd.xlane.f32.xlu0 %v1537
    %v1564 = vpop.xlane.xlu0 %1563
    %1565 = vadd.xlane.f32.xlu0 %v1538
    %v1566 = vpop.xlane.xlu0 %1565
    %1567 = vadd.xlane.f32.xlu0 %v1539
    %v1568 = vpop.xlane.xlu0 %1567
    %1569 = vadd.xlane.f32.xlu0 %v1540
    %v1570 = vpop.xlane.xlu0 %1569
    %1571 = vadd.xlane.f32.xlu0 %v1541
    %v1572 = vpop.xlane.xlu0 %1571
    %1573 = vadd.xlane.f32.xlu0 %v1542
    %v1574 = vpop.xlane.xlu0 %1573
    %v1575 = vmax.f32 %v1544, 1e-30
    %v1576 = vmax.f32 %v1546, 1e-30
    %v1577 = vmax.f32 %v1548, 1e-30
    %v1578 = vmax.f32 %v1550, 1e-30
    %v1579 = vmax.f32 %v1552, 1e-30
    %v1580 = vmax.f32 %v1554, 1e-30
    %v1581 = vmax.f32 %v1556, 1e-30
    %v1582 = vmax.f32 %v1558, 1e-30
    %v1583 = vmax.f32 %v1560, 1e-30
    %v1584 = vmax.f32 %v1562, 1e-30
    %v1585 = vmax.f32 %v1564, 1e-30
    %v1586 = vmax.f32 %v1566, 1e-30
    %v1587 = vmax.f32 %v1568, 1e-30
    %v1588 = vmax.f32 %v1570, 1e-30
    %v1589 = vmax.f32 %v1572, 1e-30
    %v1590 = vmax.f32 %v1574, 1e-30
    %v1591 = vrcp.pop %v1575
    %v1592 = vrcp.pop %v1576
    %v1593 = vrcp.pop %v1577
    %v1594 = vrcp.pop %v1578
    %v1595 = vrcp.pop %v1579
    %v1596 = vrcp.pop %v1580
    %v1597 = vrcp.pop %v1581
    %v1598 = vrcp.pop %v1582
    %v1599 = vrcp.pop %v1583
    %v1600 = vrcp.pop %v1584
    %v1601 = vrcp.pop %v1585
    %v1602 = vrcp.pop %v1586
    %v1603 = vrcp.pop %v1587
    %v1604 = vrcp.pop %v1588
    %v1605 = vrcp.pop %v1589
    %v1606 = vrcp.pop %v1590
    %v1607 = vmul.f32 %v1527, %v1591
    %v1608 = vmul.f32 %v1528, %v1592
    %v1609 = vmul.f32 %v1529, %v1593
    %v1610 = vmul.f32 %v1530, %v1594
    %v1611 = vmul.f32 %v1531, %v1595
    %v1612 = vmul.f32 %v1532, %v1596
    %v1613 = vmul.f32 %v1533, %v1597
    %v1614 = vmul.f32 %v1534, %v1598
    %v1615 = vmul.f32 %v1535, %v1599
    %v1616 = vmul.f32 %v1536, %v1600
    %v1617 = vmul.f32 %v1537, %v1601
    %v1618 = vmul.f32 %v1538, %v1602
    %v1619 = vmul.f32 %v1539, %v1603
    %v1620 = vmul.f32 %v1540, %v1604
    %v1621 = vmul.f32 %v1541, %v1605
    %v1622 = vmul.f32 %v1542, %v1606
    %v1623 = vpack.c.bf16 %v1608, %v1607
    %v1624 = vpack.c.bf16 %v1610, %v1609
    %v1625 = vpack.c.bf16 %v1612, %v1611
    %v1626 = vpack.c.bf16 %v1614, %v1613
    %v1627 = vpack.c.bf16 %v1616, %v1615
    %v1628 = vpack.c.bf16 %v1618, %v1617
    %v1629 = vpack.c.bf16 %v1620, %v1619
    %v1630 = vpack.c.bf16 %v1622, %v1621
    %v1639 = vunpack.c.l.b16 %v1623
    %v1640 = vunpack.c.h.b16 %v1623
    %v1641 = vunpack.c.l.b16 %v1624
    %v1642 = vunpack.c.h.b16 %v1624
    %v1643 = vunpack.c.l.b16 %v1625
    %v1644 = vunpack.c.h.b16 %v1625
    %v1645 = vunpack.c.l.b16 %v1626
    %v1646 = vunpack.c.h.b16 %v1626
    %v1647 = vunpack.c.l.b16 %v1627
    %v1648 = vunpack.c.h.b16 %v1627
    %v1649 = vunpack.c.l.b16 %v1628
    %v1650 = vunpack.c.h.b16 %v1628
    %v1651 = vunpack.c.l.b16 %v1629
    %v1652 = vunpack.c.h.b16 %v1629
    %v1653 = vunpack.c.l.b16 %v1630
    %v1654 = vunpack.c.h.b16 %v1630
    %v1655 = vpack.c.b16 %v1639, %v1639
    %v1656 = vpack.c.b16 %v1640, %v1640
    %v1657 = vpack.c.b16 %v1641, %v1641
    %v1658 = vpack.c.b16 %v1642, %v1642
    %v1659 = vpack.c.b16 %v1643, %v1643
    %v1660 = vpack.c.b16 %v1644, %v1644
    %v1661 = vpack.c.b16 %v1645, %v1645
    %v1662 = vpack.c.b16 %v1646, %v1646
    %v1663 = vpack.c.b16 %v1647, %v1647
    %v1664 = vpack.c.b16 %v1648, %v1648
    %v1665 = vpack.c.b16 %v1649, %v1649
    %v1666 = vpack.c.b16 %v1650, %v1650
    %v1667 = vpack.c.b16 %v1651, %v1651
    %v1668 = vpack.c.b16 %v1652, %v1652
    %v1669 = vpack.c.b16 %v1653, %v1653
    %v1670 = vpack.c.b16 %v1654, %v1654
    %s1687 = scalar_lea.vmem [#allocation2], 128
    %1688 = vst [vmem:[%s1687] sm:$0xf] %v1655
    %1689 = vst [vmem:[%s1687 + $0x4] sm:$0xf] %v1656
    %1690 = vst [vmem:[%s1687 + $0x8] sm:$0xf] %v1657
    %1691 = vst [vmem:[%s1687 + $0xc] sm:$0xf] %v1658
    %1692 = vst [vmem:[%s1687 + $0x10] sm:$0xf] %v1659
    %1693 = vst [vmem:[%s1687 + $0x14] sm:$0xf] %v1660
    %1694 = vst [vmem:[%s1687 + $0x18] sm:$0xf] %v1661
    %1695 = vst [vmem:[%s1687 + $0x1c] sm:$0xf] %v1662
    %1696 = vst [vmem:[%s1687 + $0x20] sm:$0xf] %v1663
    %1697 = vst [vmem:[%s1687 + $0x24] sm:$0xf] %v1664
    %1698 = vst [vmem:[%s1687 + $0x28] sm:$0xf] %v1665
    %1699 = vst [vmem:[%s1687 + $0x2c] sm:$0xf] %v1666
    %1700 = vst [vmem:[%s1687 + $0x30] sm:$0xf] %v1667
    %1701 = vst [vmem:[%s1687 + $0x34] sm:$0xf] %v1668
    %1702 = vst [vmem:[%s1687 + $0x38] sm:$0xf] %v1669
    %1703 = vst [vmem:[%s1687 + $0x3c] sm:$0xf] %v1670
    %v1704 = vld [vmem:[%s0] sm:$0xf]
    %v1705 = vld [vmem:[%s0 + $0x4] sm:$0xf]
    %v1706 = vld [vmem:[%s0 + $0x8] sm:$0xf]
    %v1707 = vld [vmem:[%s0 + $0xc] sm:$0xf]
    %v1708 = vld [vmem:[%s0 + $0x10] sm:$0xf]
    %v1709 = vld [vmem:[%s0 + $0x14] sm:$0xf]
    %v1710 = vld [vmem:[%s0 + $0x18] sm:$0xf]
    %v1711 = vld [vmem:[%s0 + $0x1c] sm:$0xf]
    %v1712 = vld [vmem:[%s0 + $0x20] sm:$0xf]
    %v1713 = vld [vmem:[%s0 + $0x24] sm:$0xf]
    %v1714 = vld [vmem:[%s0 + $0x28] sm:$0xf]
    %v1715 = vld [vmem:[%s0 + $0x2c] sm:$0xf]
    %v1716 = vld [vmem:[%s0 + $0x30] sm:$0xf]
    %v1717 = vld [vmem:[%s0 + $0x34] sm:$0xf]
    %v1718 = vld [vmem:[%s0 + $0x38] sm:$0xf]
    %v1719 = vld [vmem:[%s0 + $0x3c] sm:$0xf]
    %v1736 = vunpack.c.l.b16 %v1704
    %v1737 = vunpack.c.l.b16 %v1705
    %v1738 = vunpack.c.l.b16 %v1706
    %v1739 = vunpack.c.l.b16 %v1707
    %v1740 = vunpack.c.l.b16 %v1708
    %v1741 = vunpack.c.l.b16 %v1709
    %v1742 = vunpack.c.l.b16 %v1710
    %v1743 = vunpack.c.l.b16 %v1711
    %v1744 = vunpack.c.l.b16 %v1712
    %v1745 = vunpack.c.l.b16 %v1713
    %v1746 = vunpack.c.l.b16 %v1714
    %v1747 = vunpack.c.l.b16 %v1715
    %v1748 = vunpack.c.l.b16 %v1716
    %v1749 = vunpack.c.l.b16 %v1717
    %v1750 = vunpack.c.l.b16 %v1718
    %v1751 = vunpack.c.l.b16 %v1719
    %v1752 = vpack.c.b16 %v1737, %v1736
    %v1753 = vpack.c.b16 %v1739, %v1738
    %v1754 = vpack.c.b16 %v1741, %v1740
    %v1755 = vpack.c.b16 %v1743, %v1742
    %v1756 = vpack.c.b16 %v1745, %v1744
    %v1757 = vpack.c.b16 %v1747, %v1746
    %v1758 = vpack.c.b16 %v1749, %v1748
    %v1759 = vpack.c.b16 %v1751, %v1750
    %1760 = vrot.lane.b32.xlu0 %v1752, 64
    %v1761 = vpop.permute.xlu0 %1760
    %1762 = vrot.lane.b32.xlu0 %v1753, 64
    %v1763 = vpop.permute.xlu0 %1762
    %1764 = vrot.lane.b32.xlu0 %v1754, 64
    %v1765 = vpop.permute.xlu0 %1764
    %1766 = vrot.lane.b32.xlu0 %v1755, 64
    %v1767 = vpop.permute.xlu0 %1766
    %1768 = vrot.lane.b32.xlu0 %v1756, 64
    %v1769 = vpop.permute.xlu0 %1768
    %1770 = vrot.lane.b32.xlu0 %v1757, 64
    %v1771 = vpop.permute.xlu0 %1770
    %1772 = vrot.lane.b32.xlu0 %v1758, 64
    %v1773 = vpop.permute.xlu0 %1772
    %1774 = vrot.lane.b32.xlu0 %v1759, 64
    %v1775 = vpop.permute.xlu0 %1774
    %1784 = vmatprep.subr.bf16.mxu0 0
    %1785 = vmatpush1.bf16.msra.mxu0 %v1761
    %1786 = vmatprep.subr.bf16.mxu0 0
    %1787 = vmatpush1.bf16.msra.mxu0 %v1763
    %1788 = vmatprep.subr.bf16.mxu0 0
    %1789 = vmatpush1.bf16.msra.mxu0 %v1765
    %1790 = vmatprep.subr.bf16.mxu0 0
    %1791 = vmatpush1.bf16.msra.mxu0 %v1767
    %1792 = vmatprep.subr.bf16.mxu0 0
    %1793 = vmatpush1.bf16.msra.mxu0 %v1769
    %1794 = vmatprep.subr.bf16.mxu0 0
    %1795 = vmatpush1.bf16.msra.mxu0 %v1771
    %1796 = vmatprep.subr.bf16.mxu0 0
    %1797 = vmatpush1.bf16.msra.mxu0 %v1773
    %1798 = vmatprep.subr.bf16.mxu0 0
    %1799 = vmatpush1.bf16.msra.mxu0 %v1775
    %1800 = vmatprep.subr.bf16.mxu0 0
    %1801 = vmatpush1.bf16.msra.mxu0 0
    %1802 = vmatprep.subr.bf16.mxu0 0
    %1803 = vmatpush1.bf16.msra.mxu0 0
    %1804 = vmatprep.subr.bf16.mxu0 0
    %1805 = vmatpush1.bf16.msra.mxu0 0
    %1806 = vmatprep.subr.bf16.mxu0 0
    %1807 = vmatpush1.bf16.msra.mxu0 0
    %1808 = vmatprep.subr.bf16.mxu0 0
    %1809 = vmatpush1.bf16.msra.mxu0 0
    %1810 = vmatprep.subr.bf16.mxu0 0
    %1811 = vmatpush1.bf16.msra.mxu0 0
    %1812 = vmatprep.subr.bf16.mxu0 0
    %1813 = vmatpush1.bf16.msra.mxu0 0
    %1814 = vmatprep.subr.bf16.mxu0 0
    %1815 = vmatpush1.bf16.msra.mxu0 0
    %1816 = vmatprep.mubr.bf16.mxu0 0
    %1817 = vmatmul.mubr.bf16.gmra.mrb[0].mxu0 %v1623
    %v1818 = vpop.f32.mrb[0].mxu0
    %v1819 = vadd.f32 0.0, %v1818
    %v1820 = vpop.f32.mrb[0].mxu0
    %v1821 = vpop.f32.mrb[0].mxu0
    %v1822 = vadd.f32 0.0, %v1821
    %v1823 = vpop.f32.mrb[0].mxu0
    %1824 = vmatprep.mubr.bf16.mxu0 0
    %1825 = vmatmul.mubr.bf16.gmra.mrb[0].mxu0 %v1624
    %v1826 = vpop.f32.mrb[0].mxu0
    %v1827 = vadd.f32 0.0, %v1826
    %v1828 = vpop.f32.mrb[0].mxu0
    %v1829 = vpop.f32.mrb[0].mxu0
    %v1830 = vadd.f32 0.0, %v1829
    %v1831 = vpop.f32.mrb[0].mxu0
    %1832 = vmatprep.mubr.bf16.mxu0 0
    %1833 = vmatmul.mubr.bf16.gmra.mrb[0].mxu0 %v1625
    %v1834 = vpop.f32.mrb[0].mxu0
    %v1835 = vadd.f32 0.0, %v1834
    %v1836 = vpop.f32.mrb[0].mxu0
    %v1837 = vpop.f32.mrb[0].mxu0
    %v1838 = vadd.f32 0.0, %v1837
    %v1839 = vpop.f32.mrb[0].mxu0
    %1840 = vmatprep.mubr.bf16.mxu0 0
    %1841 = vmatmul.mubr.bf16.gmra.mrb[0].mxu0 %v1626
    %v1842 = vpop.f32.mrb[0].mxu0
    %v1843 = vadd.f32 0.0, %v1842
    %v1844 = vpop.f32.mrb[0].mxu0
    %v1845 = vpop.f32.mrb[0].mxu0
    %v1846 = vadd.f32 0.0, %v1845
    %v1847 = vpop.f32.mrb[0].mxu0
    %1848 = vmatprep.mubr.bf16.mxu0 0
    %1849 = vmatmul.mubr.bf16.gmra.mrb[0].mxu0 %v1627
    %v1850 = vpop.f32.mrb[0].mxu0
    %v1851 = vadd.f32 0.0, %v1850
    %v1852 = vpop.f32.mrb[0].mxu0
    %v1853 = vpop.f32.mrb[0].mxu0
    %v1854 = vadd.f32 0.0, %v1853
    %v1855 = vpop.f32.mrb[0].mxu0
    %1856 = vmatprep.mubr.bf16.mxu0 0
    %1857 = vmatmul.mubr.bf16.gmra.mrb[0].mxu0 %v1628
    %v1858 = vpop.f32.mrb[0].mxu0
    %v1859 = vadd.f32 0.0, %v1858
    %v1860 = vpop.f32.mrb[0].mxu0
    %v1861 = vpop.f32.mrb[0].mxu0
    %v1862 = vadd.f32 0.0, %v1861
    %v1863 = vpop.f32.mrb[0].mxu0
    %1864 = vmatprep.mubr.bf16.mxu0 0
    %1865 = vmatmul.mubr.bf16.gmra.mrb[0].mxu0 %v1629
    %v1866 = vpop.f32.mrb[0].mxu0
    %v1867 = vadd.f32 0.0, %v1866
    %v1868 = vpop.f32.mrb[0].mxu0
    %v1869 = vpop.f32.mrb[0].mxu0
    %v1870 = vadd.f32 0.0, %v1869
    %v1871 = vpop.f32.mrb[0].mxu0
    %1872 = vmatprep.mubr.bf16.mxu0 0
    %1873 = vmatmul.mubr.bf16.gmra.mrb[0].mxu0 %v1630
    %v1874 = vpop.f32.mrb[0].mxu0
    %v1875 = vadd.f32 0.0, %v1874
    %v1876 = vpop.f32.mrb[0].mxu0
    %v1877 = vpop.f32.mrb[0].mxu0
    %v1878 = vadd.f32 0.0, %v1877
    %v1879 = vpop.f32.mrb[0].mxu0
    %1880 = vdwg.mxu0
    %v1881 = vld [vmem:[%s2] sm:$0xff]
    %v1882 = vld [vmem:[%s2 + $0x8] sm:$0xff]
    %v1883 = vld [vmem:[%s2 + $0x10] sm:$0xff]
    %v1884 = vld [vmem:[%s2 + $0x18] sm:$0xff]
    %v1885 = vld [vmem:[%s2 + $0x20] sm:$0xff]
    %v1886 = vld [vmem:[%s2 + $0x28] sm:$0xff]
    %v1887 = vld [vmem:[%s2 + $0x30] sm:$0xff]
    %v1888 = vld [vmem:[%s2 + $0x38] sm:$0xff]
    %v1889 = vld [vmem:[%s2 + $0x40] sm:$0xff]
    %v1890 = vld [vmem:[%s2 + $0x48] sm:$0xff]
    %v1891 = vld [vmem:[%s2 + $0x50] sm:$0xff]
    %v1892 = vld [vmem:[%s2 + $0x58] sm:$0xff]
    %v1893 = vld [vmem:[%s2 + $0x60] sm:$0xff]
    %v1894 = vld [vmem:[%s2 + $0x68] sm:$0xff]
    %v1895 = vld [vmem:[%s2 + $0x70] sm:$0xff]
    %v1896 = vld [vmem:[%s2 + $0x78] sm:$0xff]
    %1898 = vset.pattern.permute.xlu0 3
    %1899 = vperm.xlu0 %1898, %v1881
    %v1900 = vpop.permute.xlu0 %1899
    %1903 = vset.pattern.permute.xlu0 3
    %1904 = vperm.xlu0 %1903, %v1882
    %v1905 = vpop.permute.xlu0 %1904
    %1908 = vset.pattern.permute.xlu0 3
    %1909 = vperm.xlu0 %1908, %v1883
    %v1910 = vpop.permute.xlu0 %1909
    %1913 = vset.pattern.permute.xlu0 3
    %1914 = vperm.xlu0 %1913, %v1884
    %v1915 = vpop.permute.xlu0 %1914
    %1918 = vset.pattern.permute.xlu0 3
    %1919 = vperm.xlu0 %1918, %v1885
    %v1920 = vpop.permute.xlu0 %1919
    %1923 = vset.pattern.permute.xlu0 3
    %1924 = vperm.xlu0 %1923, %v1886
    %v1925 = vpop.permute.xlu0 %1924
    %1928 = vset.pattern.permute.xlu0 3
    %1929 = vperm.xlu0 %1928, %v1887
    %v1930 = vpop.permute.xlu0 %1929
    %1933 = vset.pattern.permute.xlu0 3
    %1934 = vperm.xlu0 %1933, %v1888
    %v1935 = vpop.permute.xlu0 %1934
    %1938 = vset.pattern.permute.xlu0 3
    %1939 = vperm.xlu0 %1938, %v1889
    %v1940 = vpop.permute.xlu0 %1939
    %1943 = vset.pattern.permute.xlu0 3
    %1944 = vperm.xlu0 %1943, %v1890
    %v1945 = vpop.permute.xlu0 %1944
    %1948 = vset.pattern.permute.xlu0 3
    %1949 = vperm.xlu0 %1948, %v1891
    %v1950 = vpop.permute.xlu0 %1949
    %1953 = vset.pattern.permute.xlu0 3
    %1954 = vperm.xlu0 %1953, %v1892
    %v1955 = vpop.permute.xlu0 %1954
    %1958 = vset.pattern.permute.xlu0 3
    %1959 = vperm.xlu0 %1958, %v1893
    %v1960 = vpop.permute.xlu0 %1959
    %1963 = vset.pattern.permute.xlu0 3
    %1964 = vperm.xlu0 %1963, %v1894
    %v1965 = vpop.permute.xlu0 %1964
    %1968 = vset.pattern.permute.xlu0 3
    %1969 = vperm.xlu0 %1968, %v1895
    %v1970 = vpop.permute.xlu0 %1969
    %1973 = vset.pattern.permute.xlu0 3
    %1974 = vperm.xlu0 %1973, %v1896
    %v1975 = vpop.permute.xlu0 %1974
    %v1977 = vlaneseq
    %v1978 = vshrl.u32 %v1977, 7
    %v1979 = vsub.s32 3, %v1978
    %v1980 = vrot.slane %v55, %v1979
    %v1981 = vadd.f32 %v1900, %v1980
    %v1982 = vadd.f32 %v1905, %v1980
    %v1983 = vadd.f32 %v1910, %v1980
    %v1984 = vadd.f32 %v1915, %v1980
    %v1985 = vadd.f32 %v1920, %v1980
    %v1986 = vadd.f32 %v1925, %v1980
    %v1987 = vadd.f32 %v1930, %v1980
    %v1988 = vadd.f32 %v1935, %v1980
    %v1989 = vadd.f32 %v1940, %v1980
    %v1990 = vadd.f32 %v1945, %v1980
    %v1991 = vadd.f32 %v1950, %v1980
    %v1992 = vadd.f32 %v1955, %v1980
    %v1993 = vadd.f32 %v1960, %v1980
    %v1994 = vadd.f32 %v1965, %v1980
    %v1995 = vadd.f32 %v1970, %v1980
    %v1996 = vadd.f32 %v1975, %v1980
    %v1997 = vmul.f32 %v1981, 0.2
    %v1998 = vmul.f32 %v1982, 0.2
    %v1999 = vmul.f32 %v1983, 0.2
    %v2000 = vmul.f32 %v1984, 0.2
    %v2001 = vmul.f32 %v1985, 0.2
    %v2002 = vmul.f32 %v1986, 0.2
    %v2003 = vmul.f32 %v1987, 0.2
    %v2004 = vmul.f32 %v1988, 0.2
    %v2005 = vmul.f32 %v1989, 0.2
    %v2006 = vmul.f32 %v1990, 0.2
    %v2007 = vmul.f32 %v1991, 0.2
    %v2008 = vmul.f32 %v1992, 0.2
    %v2009 = vmul.f32 %v1993, 0.2
    %v2010 = vmul.f32 %v1994, 0.2
    %v2011 = vmul.f32 %v1995, 0.2
    %v2012 = vmul.f32 %v1996, 0.2
    %v2013 = vmax.f32 %v1981, %v1997
    %v2014 = vmax.f32 %v1982, %v1998
    %v2015 = vmax.f32 %v1983, %v1999
    %v2016 = vmax.f32 %v1984, %v2000
    %v2017 = vmax.f32 %v1985, %v2001
    %v2018 = vmax.f32 %v1986, %v2002
    %v2019 = vmax.f32 %v1987, %v2003
    %v2020 = vmax.f32 %v1988, %v2004
    %v2021 = vmax.f32 %v1989, %v2005
    %v2022 = vmax.f32 %v1990, %v2006
    %v2023 = vmax.f32 %v1991, %v2007
    %v2024 = vmax.f32 %v1992, %v2008
    %v2025 = vmax.f32 %v1993, %v2009
    %v2026 = vmax.f32 %v1994, %v2010
    %v2027 = vmax.f32 %v1995, %v2011
    %v2028 = vmax.f32 %v1996, %v2012
    %v2029 = vsel %vm236, %v2013, -1e+30
    %v2030 = vsel %vm237, %v2014, -1e+30
    %v2031 = vsel %vm238, %v2015, -1e+30
    %v2032 = vsel %vm239, %v2016, -1e+30
    %v2033 = vsel %vm240, %v2017, -1e+30
    %v2034 = vsel %vm241, %v2018, -1e+30
    %v2035 = vsel %vm242, %v2019, -1e+30
    %v2036 = vsel %vm243, %v2020, -1e+30
    %v2037 = vsel %vm244, %v2021, -1e+30
    %v2038 = vsel %vm245, %v2022, -1e+30
    %v2039 = vsel %vm246, %v2023, -1e+30
    %v2040 = vsel %vm247, %v2024, -1e+30
    %v2041 = vsel %vm248, %v2025, -1e+30
    %v2042 = vsel %vm249, %v2026, -1e+30
    %v2043 = vsel %vm250, %v2027, -1e+30
    %v2044 = vsel %vm251, %v2028, -1e+30
    %2045 = vmax.xlane.f32.xlu0 %v2029
    %v2046 = vpop.xlane.xlu0 %2045
    %2047 = vmax.xlane.f32.xlu0 %v2030
    %v2048 = vpop.xlane.xlu0 %2047
    %2049 = vmax.xlane.f32.xlu0 %v2031
    %v2050 = vpop.xlane.xlu0 %2049
    %2051 = vmax.xlane.f32.xlu0 %v2032
    %v2052 = vpop.xlane.xlu0 %2051
    %2053 = vmax.xlane.f32.xlu0 %v2033
    %v2054 = vpop.xlane.xlu0 %2053
    %2055 = vmax.xlane.f32.xlu0 %v2034
    %v2056 = vpop.xlane.xlu0 %2055
    %2057 = vmax.xlane.f32.xlu0 %v2035
    %v2058 = vpop.xlane.xlu0 %2057
    %2059 = vmax.xlane.f32.xlu0 %v2036
    %v2060 = vpop.xlane.xlu0 %2059
    %2061 = vmax.xlane.f32.xlu0 %v2037
    %v2062 = vpop.xlane.xlu0 %2061
    %2063 = vmax.xlane.f32.xlu0 %v2038
    %v2064 = vpop.xlane.xlu0 %2063
    %2065 = vmax.xlane.f32.xlu0 %v2039
    %v2066 = vpop.xlane.xlu0 %2065
    %2067 = vmax.xlane.f32.xlu0 %v2040
    %v2068 = vpop.xlane.xlu0 %2067
    %2069 = vmax.xlane.f32.xlu0 %v2041
    %v2070 = vpop.xlane.xlu0 %2069
    %2071 = vmax.xlane.f32.xlu0 %v2042
    %v2072 = vpop.xlane.xlu0 %2071
    %2073 = vmax.xlane.f32.xlu0 %v2043
    %v2074 = vpop.xlane.xlu0 %2073
    %2075 = vmax.xlane.f32.xlu0 %v2044
    %v2076 = vpop.xlane.xlu0 %2075
    %v2077 = vsub.f32 %v2029, %v2046
    %v2078 = vsub.f32 %v2030, %v2048
    %v2079 = vsub.f32 %v2031, %v2050
    %v2080 = vsub.f32 %v2032, %v2052
    %v2081 = vsub.f32 %v2033, %v2054
    %v2082 = vsub.f32 %v2034, %v2056
    %v2083 = vsub.f32 %v2035, %v2058
    %v2084 = vsub.f32 %v2036, %v2060
    %v2085 = vsub.f32 %v2037, %v2062
    %v2086 = vsub.f32 %v2038, %v2064
    %v2087 = vsub.f32 %v2039, %v2066
    %v2088 = vsub.f32 %v2040, %v2068
    %v2089 = vsub.f32 %v2041, %v2070
    %v2090 = vsub.f32 %v2042, %v2072
    %v2091 = vsub.f32 %v2043, %v2074
    %v2092 = vsub.f32 %v2044, %v2076
    %v2093 = vmul.f32 %v2077, 1.442695
    %v2094 = vpow.pop %v2093
    %v2095 = vmul.f32 %v2078, 1.442695
    %v2096 = vpow.pop %v2095
    %v2097 = vmul.f32 %v2079, 1.442695
    %v2098 = vpow.pop %v2097
    %v2099 = vmul.f32 %v2080, 1.442695
    %v2100 = vpow.pop %v2099
    %v2101 = vmul.f32 %v2081, 1.442695
    %v2102 = vpow.pop %v2101
    %v2103 = vmul.f32 %v2082, 1.442695
    %v2104 = vpow.pop %v2103
    %v2105 = vmul.f32 %v2083, 1.442695
    %v2106 = vpow.pop %v2105
    %v2107 = vmul.f32 %v2084, 1.442695
    %v2108 = vpow.pop %v2107
    %v2109 = vmul.f32 %v2085, 1.442695
    %v2110 = vpow.pop %v2109
    %v2111 = vmul.f32 %v2086, 1.442695
    %v2112 = vpow.pop %v2111
    %v2113 = vmul.f32 %v2087, 1.442695
    %v2114 = vpow.pop %v2113
    %v2115 = vmul.f32 %v2088, 1.442695
    %v2116 = vpow.pop %v2115
    %v2117 = vmul.f32 %v2089, 1.442695
    %v2118 = vpow.pop %v2117
    %v2119 = vmul.f32 %v2090, 1.442695
    %v2120 = vpow.pop %v2119
    %v2121 = vmul.f32 %v2091, 1.442695
    %v2122 = vpow.pop %v2121
    %v2123 = vmul.f32 %v2092, 1.442695
    %v2124 = vpow.pop %v2123
    %v2125 = vsel %vm236, %v2094, 0.0
    %v2126 = vsel %vm237, %v2096, 0.0
    %v2127 = vsel %vm238, %v2098, 0.0
    %v2128 = vsel %vm239, %v2100, 0.0
    %v2129 = vsel %vm240, %v2102, 0.0
    %v2130 = vsel %vm241, %v2104, 0.0
    %v2131 = vsel %vm242, %v2106, 0.0
    %v2132 = vsel %vm243, %v2108, 0.0
    %v2133 = vsel %vm244, %v2110, 0.0
    %v2134 = vsel %vm245, %v2112, 0.0
    %v2135 = vsel %vm246, %v2114, 0.0
    %v2136 = vsel %vm247, %v2116, 0.0
    %v2137 = vsel %vm248, %v2118, 0.0
    %v2138 = vsel %vm249, %v2120, 0.0
    %v2139 = vsel %vm250, %v2122, 0.0
    %v2140 = vsel %vm251, %v2124, 0.0
    %2141 = vadd.xlane.f32.xlu0 %v2125
    %v2142 = vpop.xlane.xlu0 %2141
    %2143 = vadd.xlane.f32.xlu0 %v2126
    %v2144 = vpop.xlane.xlu0 %2143
    %2145 = vadd.xlane.f32.xlu0 %v2127
    %v2146 = vpop.xlane.xlu0 %2145
    %2147 = vadd.xlane.f32.xlu0 %v2128
    %v2148 = vpop.xlane.xlu0 %2147
    %2149 = vadd.xlane.f32.xlu0 %v2129
    %v2150 = vpop.xlane.xlu0 %2149
    %2151 = vadd.xlane.f32.xlu0 %v2130
    %v2152 = vpop.xlane.xlu0 %2151
    %2153 = vadd.xlane.f32.xlu0 %v2131
    %v2154 = vpop.xlane.xlu0 %2153
    %2155 = vadd.xlane.f32.xlu0 %v2132
    %v2156 = vpop.xlane.xlu0 %2155
    %2157 = vadd.xlane.f32.xlu0 %v2133
    %v2158 = vpop.xlane.xlu0 %2157
    %2159 = vadd.xlane.f32.xlu0 %v2134
    %v2160 = vpop.xlane.xlu0 %2159
    %2161 = vadd.xlane.f32.xlu0 %v2135
    %v2162 = vpop.xlane.xlu0 %2161
    %2163 = vadd.xlane.f32.xlu0 %v2136
    %v2164 = vpop.xlane.xlu0 %2163
    %2165 = vadd.xlane.f32.xlu0 %v2137
    %v2166 = vpop.xlane.xlu0 %2165
    %2167 = vadd.xlane.f32.xlu0 %v2138
    %v2168 = vpop.xlane.xlu0 %2167
    %2169 = vadd.xlane.f32.xlu0 %v2139
    %v2170 = vpop.xlane.xlu0 %2169
    %2171 = vadd.xlane.f32.xlu0 %v2140
    %v2172 = vpop.xlane.xlu0 %2171
    %v2173 = vmax.f32 %v2142, 1e-30
    %v2174 = vmax.f32 %v2144, 1e-30
    %v2175 = vmax.f32 %v2146, 1e-30
    %v2176 = vmax.f32 %v2148, 1e-30
    %v2177 = vmax.f32 %v2150, 1e-30
    %v2178 = vmax.f32 %v2152, 1e-30
    %v2179 = vmax.f32 %v2154, 1e-30
    %v2180 = vmax.f32 %v2156, 1e-30
    %v2181 = vmax.f32 %v2158, 1e-30
    %v2182 = vmax.f32 %v2160, 1e-30
    %v2183 = vmax.f32 %v2162, 1e-30
    %v2184 = vmax.f32 %v2164, 1e-30
    %v2185 = vmax.f32 %v2166, 1e-30
    %v2186 = vmax.f32 %v2168, 1e-30
    %v2187 = vmax.f32 %v2170, 1e-30
    %v2188 = vmax.f32 %v2172, 1e-30
    %v2189 = vrcp.pop %v2173
    %v2190 = vrcp.pop %v2174
    %v2191 = vrcp.pop %v2175
    %v2192 = vrcp.pop %v2176
    %v2193 = vrcp.pop %v2177
    %v2194 = vrcp.pop %v2178
    %v2195 = vrcp.pop %v2179
    %v2196 = vrcp.pop %v2180
    %v2197 = vrcp.pop %v2181
    %v2198 = vrcp.pop %v2182
    %v2199 = vrcp.pop %v2183
    %v2200 = vrcp.pop %v2184
    %v2201 = vrcp.pop %v2185
    %v2202 = vrcp.pop %v2186
    %v2203 = vrcp.pop %v2187
    %v2204 = vrcp.pop %v2188
    %v2205 = vmul.f32 %v2125, %v2189
    %v2206 = vmul.f32 %v2126, %v2190
    %v2207 = vmul.f32 %v2127, %v2191
    %v2208 = vmul.f32 %v2128, %v2192
    %v2209 = vmul.f32 %v2129, %v2193
    %v2210 = vmul.f32 %v2130, %v2194
    %v2211 = vmul.f32 %v2131, %v2195
    %v2212 = vmul.f32 %v2132, %v2196
    %v2213 = vmul.f32 %v2133, %v2197
    %v2214 = vmul.f32 %v2134, %v2198
    %v2215 = vmul.f32 %v2135, %v2199
    %v2216 = vmul.f32 %v2136, %v2200
    %v2217 = vmul.f32 %v2137, %v2201
    %v2218 = vmul.f32 %v2138, %v2202
    %v2219 = vmul.f32 %v2139, %v2203
    %v2220 = vmul.f32 %v2140, %v2204
    %v2221 = vpack.c.bf16 %v2206, %v2205
    %v2222 = vpack.c.bf16 %v2208, %v2207
    %v2223 = vpack.c.bf16 %v2210, %v2209
    %v2224 = vpack.c.bf16 %v2212, %v2211
    %v2225 = vpack.c.bf16 %v2214, %v2213
    %v2226 = vpack.c.bf16 %v2216, %v2215
    %v2227 = vpack.c.bf16 %v2218, %v2217
    %v2228 = vpack.c.bf16 %v2220, %v2219
    %v2237 = vunpack.c.l.b16 %v2221
    %v2238 = vunpack.c.h.b16 %v2221
    %v2239 = vunpack.c.l.b16 %v2222
    %v2240 = vunpack.c.h.b16 %v2222
    %v2241 = vunpack.c.l.b16 %v2223
    %v2242 = vunpack.c.h.b16 %v2223
    %v2243 = vunpack.c.l.b16 %v2224
    %v2244 = vunpack.c.h.b16 %v2224
    %v2245 = vunpack.c.l.b16 %v2225
    %v2246 = vunpack.c.h.b16 %v2225
    %v2247 = vunpack.c.l.b16 %v2226
    %v2248 = vunpack.c.h.b16 %v2226
    %v2249 = vunpack.c.l.b16 %v2227
    %v2250 = vunpack.c.h.b16 %v2227
    %v2251 = vunpack.c.l.b16 %v2228
    %v2252 = vunpack.c.h.b16 %v2228
    %v2253 = vpack.c.b16 %v2237, %v2237
    %v2254 = vpack.c.b16 %v2238, %v2238
    %v2255 = vpack.c.b16 %v2239, %v2239
    %v2256 = vpack.c.b16 %v2240, %v2240
    %v2257 = vpack.c.b16 %v2241, %v2241
    %v2258 = vpack.c.b16 %v2242, %v2242
    %v2259 = vpack.c.b16 %v2243, %v2243
    %v2260 = vpack.c.b16 %v2244, %v2244
    %v2261 = vpack.c.b16 %v2245, %v2245
    %v2262 = vpack.c.b16 %v2246, %v2246
    %v2263 = vpack.c.b16 %v2247, %v2247
    %v2264 = vpack.c.b16 %v2248, %v2248
    %v2265 = vpack.c.b16 %v2249, %v2249
    %v2266 = vpack.c.b16 %v2250, %v2250
    %v2267 = vpack.c.b16 %v2251, %v2251
    %v2268 = vpack.c.b16 %v2252, %v2252
    %s2285 = scalar_lea.vmem [#allocation2], 192
    %2286 = vst [vmem:[%s2285] sm:$0xf] %v2253
    %2287 = vst [vmem:[%s2285 + $0x4] sm:$0xf] %v2254
    %2288 = vst [vmem:[%s2285 + $0x8] sm:$0xf] %v2255
    %2289 = vst [vmem:[%s2285 + $0xc] sm:$0xf] %v2256
    %2290 = vst [vmem:[%s2285 + $0x10] sm:$0xf] %v2257
    %2291 = vst [vmem:[%s2285 + $0x14] sm:$0xf] %v2258
    %2292 = vst [vmem:[%s2285 + $0x18] sm:$0xf] %v2259
    %2293 = vst [vmem:[%s2285 + $0x1c] sm:$0xf] %v2260
    %2294 = vst [vmem:[%s2285 + $0x20] sm:$0xf] %v2261
    %2295 = vst [vmem:[%s2285 + $0x24] sm:$0xf] %v2262
    %2296 = vst [vmem:[%s2285 + $0x28] sm:$0xf] %v2263
    %2297 = vst [vmem:[%s2285 + $0x2c] sm:$0xf] %v2264
    %2298 = vst [vmem:[%s2285 + $0x30] sm:$0xf] %v2265
    %2299 = vst [vmem:[%s2285 + $0x34] sm:$0xf] %v2266
    %2300 = vst [vmem:[%s2285 + $0x38] sm:$0xf] %v2267
    %2301 = vst [vmem:[%s2285 + $0x3c] sm:$0xf] %v2268
    %v2302 = vld [vmem:[%s0] sm:$0xf]
    %v2303 = vld [vmem:[%s0 + $0x4] sm:$0xf]
    %v2304 = vld [vmem:[%s0 + $0x8] sm:$0xf]
    %v2305 = vld [vmem:[%s0 + $0xc] sm:$0xf]
    %v2306 = vld [vmem:[%s0 + $0x10] sm:$0xf]
    %v2307 = vld [vmem:[%s0 + $0x14] sm:$0xf]
    %v2308 = vld [vmem:[%s0 + $0x18] sm:$0xf]
    %v2309 = vld [vmem:[%s0 + $0x1c] sm:$0xf]
    %v2310 = vld [vmem:[%s0 + $0x20] sm:$0xf]
    %v2311 = vld [vmem:[%s0 + $0x24] sm:$0xf]
    %v2312 = vld [vmem:[%s0 + $0x28] sm:$0xf]
    %v2313 = vld [vmem:[%s0 + $0x2c] sm:$0xf]
    %v2314 = vld [vmem:[%s0 + $0x30] sm:$0xf]
    %v2315 = vld [vmem:[%s0 + $0x34] sm:$0xf]
    %v2316 = vld [vmem:[%s0 + $0x38] sm:$0xf]
    %v2317 = vld [vmem:[%s0 + $0x3c] sm:$0xf]
    %v2334 = vunpack.c.l.b16 %v2302
    %v2335 = vunpack.c.l.b16 %v2303
    %v2336 = vunpack.c.l.b16 %v2304
    %v2337 = vunpack.c.l.b16 %v2305
    %v2338 = vunpack.c.l.b16 %v2306
    %v2339 = vunpack.c.l.b16 %v2307
    %v2340 = vunpack.c.l.b16 %v2308
    %v2341 = vunpack.c.l.b16 %v2309
    %v2342 = vunpack.c.l.b16 %v2310
    %v2343 = vunpack.c.l.b16 %v2311
    %v2344 = vunpack.c.l.b16 %v2312
    %v2345 = vunpack.c.l.b16 %v2313
    %v2346 = vunpack.c.l.b16 %v2314
    %v2347 = vunpack.c.l.b16 %v2315
    %v2348 = vunpack.c.l.b16 %v2316
    %v2349 = vunpack.c.l.b16 %v2317
    %v2350 = vpack.c.b16 %v2335, %v2334
    %v2351 = vpack.c.b16 %v2337, %v2336
    %v2352 = vpack.c.b16 %v2339, %v2338
    %v2353 = vpack.c.b16 %v2341, %v2340
    %v2354 = vpack.c.b16 %v2343, %v2342
    %v2355 = vpack.c.b16 %v2345, %v2344
    %v2356 = vpack.c.b16 %v2347, %v2346
    %v2357 = vpack.c.b16 %v2349, %v2348
    %2358 = vrot.lane.b32.xlu0 %v2350, 32
    %v2359 = vpop.permute.xlu0 %2358
    %2360 = vrot.lane.b32.xlu0 %v2351, 32
    %v2361 = vpop.permute.xlu0 %2360
    %2362 = vrot.lane.b32.xlu0 %v2352, 32
    %v2363 = vpop.permute.xlu0 %2362
    %2364 = vrot.lane.b32.xlu0 %v2353, 32
    %v2365 = vpop.permute.xlu0 %2364
    %2366 = vrot.lane.b32.xlu0 %v2354, 32
    %v2367 = vpop.permute.xlu0 %2366
    %2368 = vrot.lane.b32.xlu0 %v2355, 32
    %v2369 = vpop.permute.xlu0 %2368
    %2370 = vrot.lane.b32.xlu0 %v2356, 32
    %v2371 = vpop.permute.xlu0 %2370
    %2372 = vrot.lane.b32.xlu0 %v2357, 32
    %v2373 = vpop.permute.xlu0 %2372
    %2382 = vmatprep.subr.bf16.mxu0 0
    %2383 = vmatpush1.bf16.msra.mxu0 %v2359
    %2384 = vmatprep.subr.bf16.mxu0 0
    %2385 = vmatpush1.bf16.msra.mxu0 %v2361
    %2386 = vmatprep.subr.bf16.mxu0 0
    %2387 = vmatpush1.bf16.msra.mxu0 %v2363
    %2388 = vmatprep.subr.bf16.mxu0 0
    %2389 = vmatpush1.bf16.msra.mxu0 %v2365
    %2390 = vmatprep.subr.bf16.mxu0 0
    %2391 = vmatpush1.bf16.msra.mxu0 %v2367
    %2392 = vmatprep.subr.bf16.mxu0 0
    %2393 = vmatpush1.bf16.msra.mxu0 %v2369
    %2394 = vmatprep.subr.bf16.mxu0 0
    %2395 = vmatpush1.bf16.msra.mxu0 %v2371
    %2396 = vmatprep.subr.bf16.mxu0 0
    %2397 = vmatpush1.bf16.msra.mxu0 %v2373
    %2398 = vmatprep.subr.bf16.mxu0 0
    %2399 = vmatpush1.bf16.msra.mxu0 0
    %2400 = vmatprep.subr.bf16.mxu0 0
    %2401 = vmatpush1.bf16.msra.mxu0 0
    %2402 = vmatprep.subr.bf16.mxu0 0
    %2403 = vmatpush1.bf16.msra.mxu0 0
    %2404 = vmatprep.subr.bf16.mxu0 0
    %2405 = vmatpush1.bf16.msra.mxu0 0
    %2406 = vmatprep.subr.bf16.mxu0 0
    %2407 = vmatpush1.bf16.msra.mxu0 0
    %2408 = vmatprep.subr.bf16.mxu0 0
    %2409 = vmatpush1.bf16.msra.mxu0 0
    %2410 = vmatprep.subr.bf16.mxu0 0
    %2411 = vmatpush1.bf16.msra.mxu0 0
    %2412 = vmatprep.subr.bf16.mxu0 0
    %2413 = vmatpush1.bf16.msra.mxu0 0
    %2414 = vmatprep.mubr.bf16.mxu0 0
    %2415 = vmatmul.mubr.bf16.gmra.mrb[0].mxu0 %v2221
    %v2416 = vpop.f32.mrb[0].mxu0
    %v2417 = vadd.f32 0.0, %v2416
    %v2418 = vpop.f32.mrb[0].mxu0
    %v2419 = vpop.f32.mrb[0].mxu0
    %v2420 = vadd.f32 0.0, %v2419
    %v2421 = vpop.f32.mrb[0].mxu0
    %2422 = vmatprep.mubr.bf16.mxu0 0
    %2423 = vmatmul.mubr.bf16.gmra.mrb[0].mxu0 %v2222
    %v2424 = vpop.f32.mrb[0].mxu0
    %v2425 = vadd.f32 0.0, %v2424
    %v2426 = vpop.f32.mrb[0].mxu0
    %v2427 = vpop.f32.mrb[0].mxu0
    %v2428 = vadd.f32 0.0, %v2427
    %v2429 = vpop.f32.mrb[0].mxu0
    %2430 = vmatprep.mubr.bf16.mxu0 0
    %2431 = vmatmul.mubr.bf16.gmra.mrb[0].mxu0 %v2223
    %v2432 = vpop.f32.mrb[0].mxu0
    %v2433 = vadd.f32 0.0, %v2432
    %v2434 = vpop.f32.mrb[0].mxu0
    %v2435 = vpop.f32.mrb[0].mxu0
    %v2436 = vadd.f32 0.0, %v2435
    %v2437 = vpop.f32.mrb[0].mxu0
    %2438 = vmatprep.mubr.bf16.mxu0 0
    %2439 = vmatmul.mubr.bf16.gmra.mrb[0].mxu0 %v2224
    %v2440 = vpop.f32.mrb[0].mxu0
    %v2441 = vadd.f32 0.0, %v2440
    %v2442 = vpop.f32.mrb[0].mxu0
    %v2443 = vpop.f32.mrb[0].mxu0
    %v2444 = vadd.f32 0.0, %v2443
    %v2445 = vpop.f32.mrb[0].mxu0
    %2446 = vmatprep.mubr.bf16.mxu0 0
    %2447 = vmatmul.mubr.bf16.gmra.mrb[0].mxu0 %v2225
    %v2448 = vpop.f32.mrb[0].mxu0
    %v2449 = vadd.f32 0.0, %v2448
    %v2450 = vpop.f32.mrb[0].mxu0
    %v2451 = vpop.f32.mrb[0].mxu0
    %v2452 = vadd.f32 0.0, %v2451
    %v2453 = vpop.f32.mrb[0].mxu0
    %2454 = vmatprep.mubr.bf16.mxu0 0
    %2455 = vmatmul.mubr.bf16.gmra.mrb[0].mxu0 %v2226
    %v2456 = vpop.f32.mrb[0].mxu0
    %v2457 = vadd.f32 0.0, %v2456
    %v2458 = vpop.f32.mrb[0].mxu0
    %v2459 = vpop.f32.mrb[0].mxu0
    %v2460 = vadd.f32 0.0, %v2459
    %v2461 = vpop.f32.mrb[0].mxu0
    %2462 = vmatprep.mubr.bf16.mxu0 0
    %2463 = vmatmul.mubr.bf16.gmra.mrb[0].mxu0 %v2227
    %v2464 = vpop.f32.mrb[0].mxu0
    %v2465 = vadd.f32 0.0, %v2464
    %v2466 = vpop.f32.mrb[0].mxu0
    %v2467 = vpop.f32.mrb[0].mxu0
    %v2468 = vadd.f32 0.0, %v2467
    %v2469 = vpop.f32.mrb[0].mxu0
    %2470 = vmatprep.mubr.bf16.mxu0 0
    %2471 = vmatmul.mubr.bf16.gmra.mrb[0].mxu0 %v2228
    %v2472 = vpop.f32.mrb[0].mxu0
    %v2473 = vadd.f32 0.0, %v2472
    %v2474 = vpop.f32.mrb[0].mxu0
    %v2475 = vpop.f32.mrb[0].mxu0
    %v2476 = vadd.f32 0.0, %v2475
    %v2477 = vpop.f32.mrb[0].mxu0
    %2478 = vdwg.mxu0
    %2495 = vrot.lane.b32.xlu0 %v1221, 32
    %v2496 = vpop.permute.xlu0 %2495
    %2497 = vrot.lane.b32.xlu0 %v1224, 32
    %v2498 = vpop.permute.xlu0 %2497
    %2499 = vrot.lane.b32.xlu0 %v1229, 32
    %v2500 = vpop.permute.xlu0 %2499
    %2501 = vrot.lane.b32.xlu0 %v1232, 32
    %v2502 = vpop.permute.xlu0 %2501
    %2503 = vrot.lane.b32.xlu0 %v1237, 32
    %v2504 = vpop.permute.xlu0 %2503
    %2505 = vrot.lane.b32.xlu0 %v1240, 32
    %v2506 = vpop.permute.xlu0 %2505
    %2507 = vrot.lane.b32.xlu0 %v1245, 32
    %v2508 = vpop.permute.xlu0 %2507
    %2509 = vrot.lane.b32.xlu0 %v1248, 32
    %v2510 = vpop.permute.xlu0 %2509
    %2511 = vrot.lane.b32.xlu0 %v1253, 32
    %v2512 = vpop.permute.xlu0 %2511
    %2513 = vrot.lane.b32.xlu0 %v1256, 32
    %v2514 = vpop.permute.xlu0 %2513
    %2515 = vrot.lane.b32.xlu0 %v1261, 32
    %v2516 = vpop.permute.xlu0 %2515
    %2517 = vrot.lane.b32.xlu0 %v1264, 32
    %v2518 = vpop.permute.xlu0 %2517
    %2519 = vrot.lane.b32.xlu0 %v1269, 32
    %v2520 = vpop.permute.xlu0 %2519
    %2521 = vrot.lane.b32.xlu0 %v1272, 32
    %v2522 = vpop.permute.xlu0 %2521
    %2523 = vrot.lane.b32.xlu0 %v1277, 32
    %v2524 = vpop.permute.xlu0 %2523
    %2525 = vrot.lane.b32.xlu0 %v1280, 32
    %v2526 = vpop.permute.xlu0 %2525
    %2559 = vrot.lane.b32.xlu0 %v1819, 64
    %v2560 = vpop.permute.xlu0 %2559
    %2561 = vrot.lane.b32.xlu0 %v1822, 64
    %v2562 = vpop.permute.xlu0 %2561
    %2563 = vrot.lane.b32.xlu0 %v1827, 64
    %v2564 = vpop.permute.xlu0 %2563
    %2565 = vrot.lane.b32.xlu0 %v1830, 64
    %v2566 = vpop.permute.xlu0 %2565
    %2567 = vrot.lane.b32.xlu0 %v1835, 64
    %v2568 = vpop.permute.xlu0 %2567
    %2569 = vrot.lane.b32.xlu0 %v1838, 64
    %v2570 = vpop.permute.xlu0 %2569
    %2571 = vrot.lane.b32.xlu0 %v1843, 64
    %v2572 = vpop.permute.xlu0 %2571
    %2573 = vrot.lane.b32.xlu0 %v1846, 64
    %v2574 = vpop.permute.xlu0 %2573
    %2575 = vrot.lane.b32.xlu0 %v1851, 64
    %v2576 = vpop.permute.xlu0 %2575
    %2577 = vrot.lane.b32.xlu0 %v1854, 64
    %v2578 = vpop.permute.xlu0 %2577
    %2579 = vrot.lane.b32.xlu0 %v1859, 64
    %v2580 = vpop.permute.xlu0 %2579
    %2581 = vrot.lane.b32.xlu0 %v1862, 64
    %v2582 = vpop.permute.xlu0 %2581
    %2583 = vrot.lane.b32.xlu0 %v1867, 64
    %v2584 = vpop.permute.xlu0 %2583
    %2585 = vrot.lane.b32.xlu0 %v1870, 64
    %v2586 = vpop.permute.xlu0 %2585
    %2587 = vrot.lane.b32.xlu0 %v1875, 64
    %v2588 = vpop.permute.xlu0 %2587
    %2589 = vrot.lane.b32.xlu0 %v1878, 64
    %v2590 = vpop.permute.xlu0 %2589
    %2623 = vrot.lane.b32.xlu0 %v2417, 96
    %v2624 = vpop.permute.xlu0 %2623
    %2625 = vrot.lane.b32.xlu0 %v2420, 96
    %v2626 = vpop.permute.xlu0 %2625
    %2627 = vrot.lane.b32.xlu0 %v2425, 96
    %v2628 = vpop.permute.xlu0 %2627
    %2629 = vrot.lane.b32.xlu0 %v2428, 96
    %v2630 = vpop.permute.xlu0 %2629
    %2631 = vrot.lane.b32.xlu0 %v2433, 96
    %v2632 = vpop.permute.xlu0 %2631
    %2633 = vrot.lane.b32.xlu0 %v2436, 96
    %v2634 = vpop.permute.xlu0 %2633
    %2635 = vrot.lane.b32.xlu0 %v2441, 96
    %v2636 = vpop.permute.xlu0 %2635
    %2637 = vrot.lane.b32.xlu0 %v2444, 96
    %v2638 = vpop.permute.xlu0 %2637
    %2639 = vrot.lane.b32.xlu0 %v2449, 96
    %v2640 = vpop.permute.xlu0 %2639
    %2641 = vrot.lane.b32.xlu0 %v2452, 96
    %v2642 = vpop.permute.xlu0 %2641
    %2643 = vrot.lane.b32.xlu0 %v2457, 96
    %v2644 = vpop.permute.xlu0 %2643
    %2645 = vrot.lane.b32.xlu0 %v2460, 96
    %v2646 = vpop.permute.xlu0 %2645
    %2647 = vrot.lane.b32.xlu0 %v2465, 96
    %v2648 = vpop.permute.xlu0 %2647
    %2649 = vrot.lane.b32.xlu0 %v2468, 96
    %v2650 = vpop.permute.xlu0 %2649
    %2651 = vrot.lane.b32.xlu0 %v2473, 96
    %v2652 = vpop.permute.xlu0 %2651
    %2653 = vrot.lane.b32.xlu0 %v2476, 96
    %v2654 = vpop.permute.xlu0 %2653
    %vm2671 = vcmask 261120
    %v2672 = vsel %vm2671, %v623, %v2496
    %v2673 = vsel %vm2671, %v626, %v2498
    %v2674 = vsel %vm2671, %v631, %v2500
    %v2675 = vsel %vm2671, %v634, %v2502
    %v2676 = vsel %vm2671, %v639, %v2504
    %v2677 = vsel %vm2671, %v642, %v2506
    %v2678 = vsel %vm2671, %v647, %v2508
    %v2679 = vsel %vm2671, %v650, %v2510
    %v2680 = vsel %vm2671, %v655, %v2512
    %v2681 = vsel %vm2671, %v658, %v2514
    %v2682 = vsel %vm2671, %v663, %v2516
    %v2683 = vsel %vm2671, %v666, %v2518
    %v2684 = vsel %vm2671, %v671, %v2520
    %v2685 = vsel %vm2671, %v674, %v2522
    %v2686 = vsel %vm2671, %v679, %v2524
    %v2687 = vsel %vm2671, %v682, %v2526
    %vm2688 = vcmask 523264
    %v2689 = vsel %vm2688, %v2672, %v2560
    %v2690 = vsel %vm2688, %v2673, %v2562
    %v2691 = vsel %vm2688, %v2674, %v2564
    %v2692 = vsel %vm2688, %v2675, %v2566
    %v2693 = vsel %vm2688, %v2676, %v2568
    %v2694 = vsel %vm2688, %v2677, %v2570
    %v2695 = vsel %vm2688, %v2678, %v2572
    %v2696 = vsel %vm2688, %v2679, %v2574
    %v2697 = vsel %vm2688, %v2680, %v2576
    %v2698 = vsel %vm2688, %v2681, %v2578
    %v2699 = vsel %vm2688, %v2682, %v2580
    %v2700 = vsel %vm2688, %v2683, %v2582
    %v2701 = vsel %vm2688, %v2684, %v2584
    %v2702 = vsel %vm2688, %v2685, %v2586
    %v2703 = vsel %vm2688, %v2686, %v2588
    %v2704 = vsel %vm2688, %v2687, %v2590
    %vm2705 = vcmask 785408
    %v2706 = vsel %vm2705, %v2689, %v2624
    %v2707 = vsel %vm2705, %v2690, %v2626
    %v2708 = vsel %vm2705, %v2691, %v2628
    %v2709 = vsel %vm2705, %v2692, %v2630
    %v2710 = vsel %vm2705, %v2693, %v2632
    %v2711 = vsel %vm2705, %v2694, %v2634
    %v2712 = vsel %vm2705, %v2695, %v2636
    %v2713 = vsel %vm2705, %v2696, %v2638
    %v2714 = vsel %vm2705, %v2697, %v2640
    %v2715 = vsel %vm2705, %v2698, %v2642
    %v2716 = vsel %vm2705, %v2699, %v2644
    %v2717 = vsel %vm2705, %v2700, %v2646
    %v2718 = vsel %vm2705, %v2701, %v2648
    %v2719 = vsel %vm2705, %v2702, %v2650
    %v2720 = vsel %vm2705, %v2703, %v2652
    %v2721 = vsel %vm2705, %v2704, %v2654
    %2722 = vst [vmem:[%s4] sm:$0xff] %v2706
    %2723 = vst [vmem:[%s4 + $0x8] sm:$0xff] %v2707
    %2724 = vst [vmem:[%s4 + $0x10] sm:$0xff] %v2708
    %2725 = vst [vmem:[%s4 + $0x18] sm:$0xff] %v2709
    %2726 = vst [vmem:[%s4 + $0x20] sm:$0xff] %v2710
    %2727 = vst [vmem:[%s4 + $0x28] sm:$0xff] %v2711
    %2728 = vst [vmem:[%s4 + $0x30] sm:$0xff] %v2712
    %2729 = vst [vmem:[%s4 + $0x38] sm:$0xff] %v2713
    %2730 = vst [vmem:[%s4 + $0x40] sm:$0xff] %v2714
    %2731 = vst [vmem:[%s4 + $0x48] sm:$0xff] %v2715
    %2732 = vst [vmem:[%s4 + $0x50] sm:$0xff] %v2716
    %2733 = vst [vmem:[%s4 + $0x58] sm:$0xff] %v2717
    %2734 = vst [vmem:[%s4 + $0x60] sm:$0xff] %v2718
    %2735 = vst [vmem:[%s4 + $0x68] sm:$0xff] %v2719
    %2736 = vst [vmem:[%s4 + $0x70] sm:$0xff] %v2720
    %2737 = vst [vmem:[%s4 + $0x78] sm:$0xff] %v2721
    // Predicated region
    $region18: #{_gat_conv_impl.3} parent=1 // pred_check
      _
    $region19: #{_gat_conv_impl.3} parent=1 // pred_check_branch
      %2739 = sbr.rel (0) target = $region21
    $region20: #{_gat_conv_impl.3} parent=1 // pred_region
      _
    $region21: #{_gat_conv_impl.3} parent=1 // pred_fallthru
      _
    // Predicated region
    $region22: #{_gat_conv_impl.3} parent=1 // pred_check
      _
    $region23: #{_gat_conv_impl.3} parent=1 // pred_check_branch
      %2741 = sbr.rel (0) target = $region25
    $region24: #{_gat_conv_impl.3} parent=1 // pred_region
      %s2743 = ssub.s32 4096, 4096
      %2744 = vsyncadd [#allocation3], %s2743
      %s2745 = sshll.u32 [#allocation2], 4
      %s2746 = int_to_ptr.vmem [resolvable:$true] %s2745
      %2751 = dma.vmem_to_hbm [thread:$0]  %s2746, 4096, %s5, [#allocation3], 64, 64, 4
    $region25: #{_gat_conv_impl.3} parent=1 // pred_fallthru
      _
    // Predicated region
    $region26: #{_gat_conv_impl.3} parent=1 // pred_check
      _
    $region27: #{_gat_conv_impl.3} parent=1 // pred_check_branch
      %2753 = sbr.rel (0) target = $region29
    $region28: #{_gat_conv_impl.3} parent=1 // pred_region
      _
    $region29: #{_gat_conv_impl.3} parent=1 // pred_fallthru
      _
    // Predicated region
    $region30: #{_gat_conv_impl.3} parent=1 // pred_check
      _
    $region31: #{_gat_conv_impl.3} parent=1 // pred_check_branch
      %2755 = sbr.rel (0) target = $region33
    $region32: #{_gat_conv_impl.3} parent=1 // pred_region
      %2756 = dma.done [#allocation3], 4096
    $region33: #{_gat_conv_impl.3} parent=1 // pred_fallthru
      _
    %2757 = vsyncpa [#allocation3], 1

</llo_original>
